<compile_context>
chip_gen: v6e
topology: v6e:2x2x1
jax: 0.10.0
libtpu: 0.0.40
codegen_flags: <defaults>
</compile_context>

<pallas_src>
import jax
import jax.numpy as jnp
from jax import lax
from jax.experimental import pallas as pl
from jax.experimental.pallas import tpu as pltpu

DIM_HEAD = 16            # SelfAttention(dim=1, heads=1, dim_head=16)
HIDDEN = 1024            # nn.Linear(x_dims, 1024) hard-coded in the module
BN_EPS = 1e-5            # nn.BatchNorm1d default eps
ATTN_SCALE = DIM_HEAD ** -0.5
LANE = 128               # TPU lane width; m-chunk size


def _pick_score_dtype():
    """bf16 score/exp path only on chips with bf16 VPU/EUP (v6e and newer)."""
    try:
        kind = jax.devices()[0].device_kind.lower()
    except Exception:
        return jnp.float32
    for old in ("v2", "v3", "v4", "v5"):
        if old in kind:
            return jnp.float32
    return jnp.bfloat16


def _make_kernel(B, N, TK, TN, Z, score_dtype):
    """Fused encoder kernel for static shapes.

    Grid: one "arbitrary" axis over x_dims tiles of size TK (fc reduction axis).
    """
    TM = LANE
    nm_full = N // TM                 # full (unmasked) m chunks
    n_tail = N - nm_full * TM         # valid columns in the masked tail chunk
    n_strips = TK // TN

    def kernel(stats_ref, x_hbm_ref, wfc_ref, bfc_ref, gamma_ref, beta_ref,
               wh_ref, bh_ref, eps_ref, z_ref, mu_ref, var_ref,
               x_res, acc_ref, dma_sem):
        k = pl.program_id(0)
        nk = pl.num_programs(0)

        # --- one-time prologue: x HBM -> VMEM (single-buffered, resident), zero acc ---
        @pl.when(k == 0)
        def _prologue():
            cp = pltpu.make_async_copy(x_hbm_ref, x_res, dma_sem)
            cp.start()
            cp.wait()
            acc_ref[...] = jnp.zeros_like(acc_ref)

        x_max = stats_ref[:, 0:1]     # (B, 1) per-row max of x (computed in wrapper)
        x_min = stats_ref[:, 1:2]     # (B, 1) per-row min of x
        c_qk = stats_ref[:, 2:3]      # (B, 1) (wq.wk)*scale, replicated per row

        # ---------------- rank-1 attention for this (B, TK) row tile ----------------
        n_base = pl.multiple_of(k * TK, TK)
        x_tile = x_res[:, pl.ds(n_base, TK)]                  # (B, TK)
        t_tile = c_qk * x_tile                                 # score coeff per row n
        # Exact softmax row max: scores are monotone in x_m for a fixed sign of t.
        rmax_tile = jnp.maximum(t_tile * x_max, t_tile * x_min)

        strips = []
        for si in range(n_strips):                             # static n sub-blocking
            sl = slice(si * TN, (si + 1) * TN)
            t_b = t_tile[:, sl][:, :, None]                    # (B, TN, 1) hoisted
            rm_b = rmax_tile[:, sl][:, :, None]                # broadcasts (once)

            def chunk(m0, num_acc, den_acc, mask=None):
                xm = x_res[:, pl.ds(m0, TM)]                   # (B, 128)
                xm_b = xm[:, None, :]                          # (B, 1, 128)
                s = t_b * xm_b - rm_b                          # (B, TN, 128) f32
                p = jnp.exp(s.astype(score_dtype)).astype(jnp.float32)
                if mask is not None:
                    p = jnp.where(mask, p, 0.0)
                # lane-resident accumulation: pure VPU adds, no per-chunk XLU reduce
                return num_acc + p * xm_b, den_acc + p

            def body(mi, carry):
                m0 = pl.multiple_of(mi * TM, TM)
                return chunk(m0, *carry)

            acc0 = (jnp.zeros((B, TN, TM), jnp.float32),
                    jnp.zeros((B, TN, TM), jnp.float32))
            if nm_full > 0:
                num_acc, den_acc = lax.fori_loop(0, nm_full, body, acc0,
                                                 unroll=nm_full <= 4)
            else:
                num_acc, den_acc = acc0
            if n_tail:                                         # static masked tail chunk
                lane = lax.broadcasted_iota(jnp.int32, (1, 1, TM), 2)
                num_acc, den_acc = chunk(nm_full * TM, num_acc, den_acc,
                                         mask=lane < n_tail)

            numer = jnp.sum(num_acc, axis=-1)                  # (B, TN): one XLU reduce
            denom = jnp.sum(den_acc, axis=-1)
            strips.append(numer / denom)                       # softmax(QK^T) @ V collapsed

        attn = jnp.concatenate(strips, axis=-1) if n_strips > 1 else strips[0]

        # ---------------- K-tiled fc matmul with f32 VMEM accumulator ----------------
        acc_ref[...] += jnp.dot(attn.astype(jnp.bfloat16), wfc_ref[...],
                                preferred_element_type=jnp.float32)

        # -------- finalize: BN (batch stats) -> ReLU -> fused heads -> sample --------
        @pl.when(k == nk - 1)
        def _finalize():
            h = acc_ref[...] + bfc_ref[...]                              # (B, HIDDEN)
            mean = jnp.mean(h, axis=0, keepdims=True)
            var_b = jnp.mean((h - mean) ** 2, axis=0, keepdims=True)     # biased (training BN)
            h = (h - mean) * lax.rsqrt(var_b + BN_EPS)
            h = jnp.maximum(h * gamma_ref[...] + beta_ref[...], 0.0)     # ReLU

            heads = jnp.dot(h, wh_ref[...],
                            preferred_element_type=jnp.float32) + bh_ref[...]
            mu = heads[:, :Z]
            var = jnp.exp(heads[:, Z:2 * Z])
            z_ref[...] = mu + jnp.sqrt(var) * eps_ref[...]   # Normal(mu, sqrt(var)).rsample()
            mu_ref[...] = mu
            var_ref[...] = var

    return kernel


def encoder_scrna_forward(x, params, eps, *, tk=256, score_dtype=None):
    """x: (B, x_dims) float32; eps: (B, z_dims) standard-normal noise."""
    B, N = x.shape
    Z = params['wmu'].shape[1]
    assert tk % LANE == 0
    if score_dtype is None:
        score_dtype = _pick_score_dtype()

    # n-strip width: keep the live (B, TN, 128) score tile ~8 f32 vregs (spill-free).
    tn = min(tk, max(8, (64 // max(B, 1)) // 8 * 8))
    assert tk % tn == 0

    # ---- wrapper-side algebraic folding of the rank-1 attention ----
    wq = params['wq'].reshape(-1)
    wk = params['wk'].reshape(-1)
    wv = params['wv'].reshape(-1)
    wo = params['wo_t'].reshape(-1)
    bo = params['bo'].reshape(())
    c_qk = jnp.sum(wq * wk) * ATTN_SCALE        # scores[b,n,m] = c_qk * x[b,n] * x[b,m]
    c_vo = jnp.sum(wv * wo)                     # to_out: c_vo * (attn @ x) + bo

    # Fold the to_out affine into fc:  (c_vo*a + bo) @ Wfc + bfc
    wfc_eff = c_vo * params['wfc']                                            # (N, HIDDEN)
    bfc_eff = params['bfc'] + bo * jnp.sum(params['wfc'], axis=0, keepdims=True)

    # Fused mu|logvar head, lane-padded to a multiple of 128 columns.
    hp = max(LANE, -(-2 * Z // LANE) * LANE)
    w_heads = jnp.pad(jnp.concatenate([params['wmu'], params['wvar']], axis=1),
                      ((0, 0), (0, hp - 2 * Z)))                              # (HIDDEN, hp)
    b_heads = jnp.pad(jnp.concatenate([params['bmu'], params['bvar']], axis=1),
                      ((0, 0), (0, hp - 2 * Z)))                              # (1, hp)

    # ---- padding / per-row stats (computed once, outside the O(B*N^2) kernel) ----
    n_pad = -(-N // tk) * tk
    # Edge padding keeps per-row max/min exact; padded m columns are masked in-kernel,
    # padded n rows hit zero-padded wfc rows and contribute nothing.
    x_pad = jnp.pad(x, ((0, 0), (0, n_pad - N)), mode='edge')
    # TODO(synk): on v7x (64 MiB VMEM) ship x_pad in bf16 to halve the resident footprint.
    wfc_pad = jnp.pad(wfc_eff, ((0, n_pad - N), (0, 0))).astype(jnp.bfloat16)
    stats = jnp.concatenate(
        [jnp.max(x, axis=-1, keepdims=True),
         jnp.min(x, axis=-1, keepdims=True),
         jnp.broadcast_to(jnp.reshape(c_qk, (1, 1)), (B, 1))], axis=-1)       # (B, 3)

    nk = n_pad // tk
    kernel = _make_kernel(B, N, tk, tn, Z, score_dtype)

    grid_spec = pltpu.PrefetchScalarGridSpec(
        num_scalar_prefetch=0,
        grid=(nk,),
        in_specs=[
            pl.BlockSpec((B, 3), lambda k: (0, 0)),            # [x_max | x_min | c_qk]
            pl.BlockSpec(memory_space=pl.ANY),                 # x (HBM; copied once)
            pl.BlockSpec((tk, HIDDEN), lambda k: (k, 0)),      # wfc tile (bf16, streamed)
            pl.BlockSpec((1, HIDDEN), lambda k: (0, 0)),       # bfc_eff
            pl.BlockSpec((1, HIDDEN), lambda k: (0, 0)),       # gamma
            pl.BlockSpec((1, HIDDEN), lambda k: (0, 0)),       # beta
            pl.BlockSpec((HIDDEN, hp), lambda k: (0, 0)),      # fused mu|logvar weights
            pl.BlockSpec((1, hp), lambda k: (0, 0)),           # fused mu|logvar bias
            pl.BlockSpec((B, Z), lambda k: (0, 0)),            # eps
        ],
        out_specs=(
            pl.BlockSpec((B, Z), lambda k: (0, 0)),            # z
            pl.BlockSpec((B, Z), lambda k: (0, 0)),            # mu
            pl.BlockSpec((B, Z), lambda k: (0, 0)),            # var
        ),
        scratch_shapes=[
            pltpu.VMEM((B, n_pad), jnp.float32),   # resident x (single-buffered)
            pltpu.VMEM((B, HIDDEN), jnp.float32),  # fc accumulator
            pltpu.SemaphoreType.DMA,               # one-time x HBM->VMEM copy
        ],
    )

    out_shape = (jax.ShapeDtypeStruct((B, Z), jnp.float32),
                 jax.ShapeDtypeStruct((B, Z), jnp.float32),
                 jax.ShapeDtypeStruct((B, Z), jnp.float32))

    # VMEM budget from actual buffers (+2x slack), clamped to be safe on v7x's 64 MiB.
    est = (B * n_pad * 4                # resident x scratch
           + 2 * tk * HIDDEN * 2        # double-buffered bf16 wfc tile
           + B * HIDDEN * 4             # fc accumulator
           + 2 * (HIDDEN + 1) * hp * 4  # fused head weights / bias
           + 8 * HIDDEN * 4 + 8 * B * LANE * 4)
    vmem_limit = int(min(56 * 2 ** 20, max(32 * 2 ** 20, 2 * est)))

    # TODO(synk): on v7x the row tiles (attention) could be split across the two
    # TensorCores with per-core partial fc accumulators combined before the BN/head
    # finalize; kept single-core here.
    return pl.pallas_call(
        kernel,
        out_shape=out_shape,
        grid_spec=grid_spec,
        compiler_params=pltpu.CompilerParams(
            dimension_semantics=("arbitrary",),     # K-reduction with revisited outputs
            vmem_limit_bytes=vmem_limit,
        ),
    )(stats, x_pad, wfc_pad, bfc_eff, params['gamma'], params['beta'],
      w_heads, b_heads, eps)


def init_params(key, x_dims, z_dims):
    """Deterministic synthetic init mirroring nn.Linear fan-in uniform bounds."""
    ks = jax.random.split(key, 11)

    def lin(k, fan_in, shape):
        bound = 1.0 / (fan_in ** 0.5)
        return jax.random.uniform(k, shape, jnp.float32, -bound, bound)

    return dict(
        # SelfAttention.to_qkv: Linear(1, 3*16, bias=False) -> three (1, 16) slices
        wq=lin(ks[0], 1, (1, DIM_HEAD)),
        wk=lin(ks[1], 1, (1, DIM_HEAD)),
        wv=lin(ks[2], 1, (1, DIM_HEAD)),
        # SelfAttention.to_out[0]: Linear(16, 1); stored transposed as (1, 16)
        wo_t=lin(ks[3], DIM_HEAD, (1, DIM_HEAD)),
        bo=lin(ks[4], DIM_HEAD, (1, 1)),
        # fc: Linear(x_dims, 1024) stored as (x_dims, 1024)
        wfc=lin(ks[5], x_dims, (x_dims, HIDDEN)),
        bfc=lin(ks[6], x_dims, (1, HIDDEN)),
        # BatchNorm1d(1024): default affine init
        gamma=jnp.ones((1, HIDDEN), jnp.float32),
        beta=jnp.zeros((1, HIDDEN), jnp.float32),
        # fc_mu / fc_var: Linear(1024, z_dims)
        wmu=lin(ks[7], HIDDEN, (HIDDEN, z_dims)),
        bmu=lin(ks[8], HIDDEN, (1, z_dims)),
        wvar=lin(ks[9], HIDDEN, (HIDDEN, z_dims)),
        bvar=lin(ks[10], HIDDEN, (1, z_dims)),
    )


if __name__ == "__main__":
    # Small shapes consistent with the module; x_dims chosen so the K-grid (4 steps of
    # 256), the dynamic fori m-loop (7 full chunks), the masked tail chunk (104 valid
    # lanes) and the n-strip sub-blocking (8 strips of 32) all execute.
    B, X_DIMS, Z_DIMS = 2, 1000, 32
    key = jax.random.PRNGKey(0)
    k_x, k_eps, k_params = jax.random.split(key, 3)

    x = jax.random.normal(k_x, (B, X_DIMS), jnp.float32)
    eps = jax.random.normal(k_eps, (B, Z_DIMS), jnp.float32)   # reparameterization noise
    params = init_params(k_params, X_DIMS, Z_DIMS)

    z, mu, var = encoder_scrna_forward(x, params, eps)
    jax.block_until_ready((z, mu, var))

    assert z.shape == (B, Z_DIMS) and mu.shape == (B, Z_DIMS) and var.shape == (B, Z_DIMS)
    assert bool(jnp.all(jnp.isfinite(z))) and bool(jnp.all(jnp.isfinite(mu)))
    assert bool(jnp.all(var > 0))
    print("KERNEL_OK")
</pallas_src>

<mosaic_0001>
module attributes {stable_mosaic.version = 11 : i64} {
  func.func @kernel(%arg0: i32, %arg1: memref<2x3xf32, #tpu.memory_space<vmem>>, %arg2: memref<2x1024xf32, #tpu.memory_space<any>>, %arg3: memref<256x1024xbf16, #tpu.memory_space<vmem>>, %arg4: memref<1x1024xf32, #tpu.memory_space<vmem>>, %arg5: memref<1x1024xf32, #tpu.memory_space<vmem>>, %arg6: memref<1x1024xf32, #tpu.memory_space<vmem>>, %arg7: memref<1024x128xf32, #tpu.memory_space<vmem>>, %arg8: memref<1x128xf32, #tpu.memory_space<vmem>>, %arg9: memref<2x32xf32, #tpu.memory_space<vmem>>, %arg10: memref<2x32xf32, #tpu.memory_space<vmem>>, %arg11: memref<2x32xf32, #tpu.memory_space<vmem>>, %arg12: memref<2x32xf32, #tpu.memory_space<vmem>>, %arg13: memref<2x1024xf32, #tpu.memory_space<vmem>>, %arg14: memref<2x1024xf32, #tpu.memory_space<vmem>>, %arg15: memref<!tpu.dma_semaphore, #tpu.memory_space<semaphore_mem>>) attributes {dimension_semantics = [#tpu.dimension_semantics<arbitrary>], iteration_bounds = array<i64: 4>, scalar_prefetch = 0 : i64, scratch_operands = 3 : i64, tpu.core_type = #tpu.core_type<tc>, window_params = [{pipeline_mode = #tpu.pipeline_mode<synchronous>, transform_indices = @transform_0, window_bounds = array<i64: 2, 3>}, {}, {transform_indices = @transform_2, window_bounds = array<i64: 256, 1024>}, {pipeline_mode = #tpu.pipeline_mode<synchronous>, transform_indices = @transform_3, window_bounds = array<i64: 1, 1024>}, {pipeline_mode = #tpu.pipeline_mode<synchronous>, transform_indices = @transform_4, window_bounds = array<i64: 1, 1024>}, {pipeline_mode = #tpu.pipeline_mode<synchronous>, transform_indices = @transform_5, window_bounds = array<i64: 1, 1024>}, {pipeline_mode = #tpu.pipeline_mode<synchronous>, transform_indices = @transform_6, window_bounds = array<i64: 1024, 128>}, {pipeline_mode = #tpu.pipeline_mode<synchronous>, transform_indices = @transform_7, window_bounds = array<i64: 1, 128>}, {pipeline_mode = #tpu.pipeline_mode<synchronous>, transform_indices = @transform_8, window_bounds = array<i64: 2, 32>}, {pipeline_mode = #tpu.pipeline_mode<synchronous>, transform_indices = @transform_9, window_bounds = array<i64: 2, 32>}, {pipeline_mode = #tpu.pipeline_mode<synchronous>, transform_indices = @transform_10, window_bounds = array<i64: 2, 32>}, {pipeline_mode = #tpu.pipeline_mode<synchronous>, transform_indices = @transform_11, window_bounds = array<i64: 2, 32>}]} {
    %c0_i32 = arith.constant 0 : i32
    %0 = arith.cmpi eq, %arg0, %c0_i32 : i32
    %1 = arith.extui %0 : i1 to i32
    %c0_i32_0 = arith.constant 0 : i32
    %2 = arith.cmpi ne, %1, %c0_i32_0 : i32
    scf.if %2 {
      tpu.enqueue_dma source(%arg2 : memref<2x1024xf32, #tpu.memory_space<any>>) target(%arg13 : memref<2x1024xf32, #tpu.memory_space<vmem>>) target_semaphore(%arg15 : memref<!tpu.dma_semaphore, #tpu.memory_space<semaphore_mem>>)
      tpu.wait_dma2 semaphore(%arg15 : memref<!tpu.dma_semaphore, #tpu.memory_space<semaphore_mem>>) src(%arg2 : memref<2x1024xf32, #tpu.memory_space<any>>) dst(%arg13 : memref<2x1024xf32, #tpu.memory_space<vmem>>)
      %cst_104 = arith.constant 0.000000e+00 : f32
      %283 = vector.broadcast %cst_104 : f32 to vector<2x1024xf32>
      %c0_105 = arith.constant 0 : index
      %c0_106 = arith.constant 0 : index
      %284 = vector.load %arg14[%c0_105, %c0_106] : memref<2x1024xf32, #tpu.memory_space<vmem>>, vector<2x1024xf32>
      tpu.vector_store %arg14[%c0_105, %c0_106], %283 {strides = array<i32>} : memref<2x1024xf32, #tpu.memory_space<vmem>>, vector<2x1024xf32>,
    } else {
    }
    %c0 = arith.constant 0 : index
    %c0_1 = arith.constant 0 : index
    %3 = vector.load %arg1[%c0, %c0_1] : memref<2x3xf32, #tpu.memory_space<vmem>>, vector<2x1xf32>
    %c0_2 = arith.constant 0 : index
    %c1 = arith.constant 1 : index
    %4 = vector.load %arg1[%c0_2, %c1] : memref<2x3xf32, #tpu.memory_space<vmem>>, vector<2x1xf32>
    %c0_3 = arith.constant 0 : index
    %c2 = arith.constant 2 : index
    %5 = vector.load %arg1[%c0_3, %c2] : memref<2x3xf32, #tpu.memory_space<vmem>>, vector<2x1xf32>
    %c256_i32 = arith.constant 256 : i32
    %6 = arith.muli %arg0, %c256_i32 : i32
    %7 = tpu.assume_multiple %6, 256 : i32
    %c0_4 = arith.constant 0 : index
    %8 = arith.index_cast %7 : i32 to index
    %9 = vector.load %arg13[%c0_4, %8] : memref<2x1024xf32, #tpu.memory_space<vmem>>, vector<2x256xf32>
    %10 = vector.broadcast %5 : vector<2x1xf32> to vector<2x256xf32>
    %11 = arith.mulf %10, %9 : vector<2x256xf32>
    %12 = vector.broadcast %3 : vector<2x1xf32> to vector<2x256xf32>
    %13 = arith.mulf %11, %12 : vector<2x256xf32>
    %14 = vector.broadcast %4 : vector<2x1xf32> to vector<2x256xf32>
    %15 = arith.mulf %11, %14 : vector<2x256xf32>
    %16 = arith.maximumf %13, %15 : vector<2x256xf32>
    %17 = vector.extract_strided_slice %11 {offsets = [0, 0], sizes = [2, 32], strides = [1, 1]} : vector<2x256xf32> to vector<2x32xf32>
    %18 = vector.shape_cast %17 : vector<2x32xf32> to vector<2x32x1xf32>
    %19 = vector.extract_strided_slice %16 {offsets = [0, 0], sizes = [2, 32], strides = [1, 1]} : vector<2x256xf32> to vector<2x32xf32>
    %20 = vector.shape_cast %19 : vector<2x32xf32> to vector<2x32x1xf32>
    %cst = arith.constant 0.000000e+00 : f32
    %21 = vector.broadcast %cst : f32 to vector<2x32x128xf32>
    %cst_5 = arith.constant 0.000000e+00 : f32
    %22 = vector.broadcast %cst_5 : f32 to vector<2x32x128xf32>
    %c0_i32_6 = arith.constant 0 : i32
    %c7_i32 = arith.constant 7 : i32
    %23 = arith.addi %c0_i32_6, %c7_i32 : i32
    %c1_i32 = arith.constant 1 : i32
    %24:2 = scf.for %arg16 = %c0_i32_6 to %23 step %c1_i32 iter_args(%arg17 = %21, %arg18 = %22) -> (vector<2x32x128xf32>, vector<2x32x128xf32>)  : i32 {
      %c128_i32 = arith.constant 128 : i32
      %283 = arith.muli %arg16, %c128_i32 : i32
      %284 = tpu.assume_multiple %283, 128 : i32
      %c0_104 = arith.constant 0 : index
      %285 = arith.index_cast %284 : i32 to index
      %286 = vector.load %arg13[%c0_104, %285] : memref<2x1024xf32, #tpu.memory_space<vmem>>, vector<2x128xf32>
      %287 = vector.shape_cast %286 : vector<2x128xf32> to vector<2x1x128xf32>
      %288 = vector.broadcast %18 : vector<2x32x1xf32> to vector<2x32x128xf32>
      %289 = vector.broadcast %287 : vector<2x1x128xf32> to vector<2x32x128xf32>
      %290 = arith.mulf %288, %289 : vector<2x32x128xf32>
      %291 = vector.broadcast %20 : vector<2x32x1xf32> to vector<2x32x128xf32>
      %292 = arith.subf %290, %291 : vector<2x32x128xf32>
      %293 = arith.truncf %292 : vector<2x32x128xf32> to vector<2x32x128xbf16>
      %294 = math.exp %293 : vector<2x32x128xbf16>
      %295 = arith.extf %294 : vector<2x32x128xbf16> to vector<2x32x128xf32>
      %296 = vector.broadcast %287 : vector<2x1x128xf32> to vector<2x32x128xf32>
      %297 = arith.mulf %295, %296 : vector<2x32x128xf32>
      %298 = arith.addf %arg17, %297 : vector<2x32x128xf32>
      %299 = arith.addf %arg18, %295 : vector<2x32x128xf32>
      scf.yield %298, %299 : vector<2x32x128xf32>, vector<2x32x128xf32>
    }
    %c7_i32_7 = arith.constant 7 : i32
    %25 = tpu.iota {dimensions = array<i32: 2>} : vector<1x1x128xi32>
    %c104_i32 = arith.constant 104 : i32
    %26 = vector.broadcast %c104_i32 : i32 to vector<1x1x128xi32>
    %27 = arith.cmpi slt, %25, %26 : vector<1x1x128xi32>
    %c0_8 = arith.constant 0 : index
    %c896 = arith.constant 896 : index
    %28 = vector.load %arg13[%c0_8, %c896] : memref<2x1024xf32, #tpu.memory_space<vmem>>, vector<2x128xf32>
    %29 = vector.shape_cast %28 : vector<2x128xf32> to vector<2x1x128xf32>
    %30 = vector.broadcast %18 : vector<2x32x1xf32> to vector<2x32x128xf32>
    %31 = vector.broadcast %29 : vector<2x1x128xf32> to vector<2x32x128xf32>
    %32 = arith.mulf %30, %31 : vector<2x32x128xf32>
    %33 = vector.broadcast %20 : vector<2x32x1xf32> to vector<2x32x128xf32>
    %34 = arith.subf %32, %33 : vector<2x32x128xf32>
    %35 = arith.truncf %34 : vector<2x32x128xf32> to vector<2x32x128xbf16>
    %36 = math.exp %35 : vector<2x32x128xbf16>
    %37 = arith.extf %36 : vector<2x32x128xbf16> to vector<2x32x128xf32>
    %cst_9 = arith.constant 0.000000e+00 : f32
    %38 = vector.shape_cast %27 : vector<1x1x128xi1> to vector<1x1x128xi1>
    %39 = vector.broadcast %38 : vector<1x1x128xi1> to vector<2x32x128xi1>
    %40 = vector.broadcast %cst_9 : f32 to vector<2x32x128xf32>
    %41 = arith.select %39, %37, %40 : vector<2x32x128xi1>, vector<2x32x128xf32>
    %42 = vector.broadcast %29 : vector<2x1x128xf32> to vector<2x32x128xf32>
    %43 = arith.mulf %41, %42 : vector<2x32x128xf32>
    %44 = arith.addf %24#0, %43 : vector<2x32x128xf32>
    %45 = arith.addf %24#1, %41 : vector<2x32x128xf32>
    %cst_10 = arith.constant dense<0.000000e+00> : vector<2x32xf32>
    %46 = vector.multi_reduction <add>, %44, %cst_10 [2] : vector<2x32x128xf32> to vector<2x32xf32>
    %cst_11 = arith.constant dense<0.000000e+00> : vector<2x32xf32>
    %47 = vector.multi_reduction <add>, %45, %cst_11 [2] : vector<2x32x128xf32> to vector<2x32xf32>
    %48 = arith.divf %46, %47 : vector<2x32xf32>
    %49 = vector.extract_strided_slice %11 {offsets = [0, 32], sizes = [2, 32], strides = [1, 1]} : vector<2x256xf32> to vector<2x32xf32>
    %50 = vector.shape_cast %49 : vector<2x32xf32> to vector<2x32x1xf32>
    %51 = vector.extract_strided_slice %16 {offsets = [0, 32], sizes = [2, 32], strides = [1, 1]} : vector<2x256xf32> to vector<2x32xf32>
    %52 = vector.shape_cast %51 : vector<2x32xf32> to vector<2x32x1xf32>
    %cst_12 = arith.constant 0.000000e+00 : f32
    %53 = vector.broadcast %cst_12 : f32 to vector<2x32x128xf32>
    %cst_13 = arith.constant 0.000000e+00 : f32
    %54 = vector.broadcast %cst_13 : f32 to vector<2x32x128xf32>
    %c0_i32_14 = arith.constant 0 : i32
    %c7_i32_15 = arith.constant 7 : i32
    %55 = arith.addi %c0_i32_14, %c7_i32_15 : i32
    %c1_i32_16 = arith.constant 1 : i32
    %56:2 = scf.for %arg16 = %c0_i32_14 to %55 step %c1_i32_16 iter_args(%arg17 = %53, %arg18 = %54) -> (vector<2x32x128xf32>, vector<2x32x128xf32>)  : i32 {
      %c128_i32 = arith.constant 128 : i32
      %283 = arith.muli %arg16, %c128_i32 : i32
      %284 = tpu.assume_multiple %283, 128 : i32
      %c0_104 = arith.constant 0 : index
      %285 = arith.index_cast %284 : i32 to index
      %286 = vector.load %arg13[%c0_104, %285] : memref<2x1024xf32, #tpu.memory_space<vmem>>, vector<2x128xf32>
      %287 = vector.shape_cast %286 : vector<2x128xf32> to vector<2x1x128xf32>
      %288 = vector.broadcast %50 : vector<2x32x1xf32> to vector<2x32x128xf32>
      %289 = vector.broadcast %287 : vector<2x1x128xf32> to vector<2x32x128xf32>
      %290 = arith.mulf %288, %289 : vector<2x32x128xf32>
      %291 = vector.broadcast %52 : vector<2x32x1xf32> to vector<2x32x128xf32>
      %292 = arith.subf %290, %291 : vector<2x32x128xf32>
      %293 = arith.truncf %292 : vector<2x32x128xf32> to vector<2x32x128xbf16>
      %294 = math.exp %293 : vector<2x32x128xbf16>
      %295 = arith.extf %294 : vector<2x32x128xbf16> to vector<2x32x128xf32>
      %296 = vector.broadcast %287 : vector<2x1x128xf32> to vector<2x32x128xf32>
      %297 = arith.mulf %295, %296 : vector<2x32x128xf32>
      %298 = arith.addf %arg17, %297 : vector<2x32x128xf32>
      %299 = arith.addf %arg18, %295 : vector<2x32x128xf32>
      scf.yield %298, %299 : vector<2x32x128xf32>, vector<2x32x128xf32>
    }
    %c7_i32_17 = arith.constant 7 : i32
    %57 = tpu.iota {dimensions = array<i32: 2>} : vector<1x1x128xi32>
    %c104_i32_18 = arith.constant 104 : i32
    %58 = vector.broadcast %c104_i32_18 : i32 to vector<1x1x128xi32>
    %59 = arith.cmpi slt, %57, %58 : vector<1x1x128xi32>
    %c0_19 = arith.constant 0 : index
    %c896_20 = arith.constant 896 : index
    %60 = vector.load %arg13[%c0_19, %c896_20] : memref<2x1024xf32, #tpu.memory_space<vmem>>, vector<2x128xf32>
    %61 = vector.shape_cast %60 : vector<2x128xf32> to vector<2x1x128xf32>
    %62 = vector.broadcast %50 : vector<2x32x1xf32> to vector<2x32x128xf32>
    %63 = vector.broadcast %61 : vector<2x1x128xf32> to vector<2x32x128xf32>
    %64 = arith.mulf %62, %63 : vector<2x32x128xf32>
    %65 = vector.broadcast %52 : vector<2x32x1xf32> to vector<2x32x128xf32>
    %66 = arith.subf %64, %65 : vector<2x32x128xf32>
    %67 = arith.truncf %66 : vector<2x32x128xf32> to vector<2x32x128xbf16>
    %68 = math.exp %67 : vector<2x32x128xbf16>
    %69 = arith.extf %68 : vector<2x32x128xbf16> to vector<2x32x128xf32>
    %cst_21 = arith.constant 0.000000e+00 : f32
    %70 = vector.shape_cast %59 : vector<1x1x128xi1> to vector<1x1x128xi1>
    %71 = vector.broadcast %70 : vector<1x1x128xi1> to vector<2x32x128xi1>
    %72 = vector.broadcast %cst_21 : f32 to vector<2x32x128xf32>
    %73 = arith.select %71, %69, %72 : vector<2x32x128xi1>, vector<2x32x128xf32>
    %74 = vector.broadcast %61 : vector<2x1x128xf32> to vector<2x32x128xf32>
    %75 = arith.mulf %73, %74 : vector<2x32x128xf32>
    %76 = arith.addf %56#0, %75 : vector<2x32x128xf32>
    %77 = arith.addf %56#1, %73 : vector<2x32x128xf32>
    %cst_22 = arith.constant dense<0.000000e+00> : vector<2x32xf32>
    %78 = vector.multi_reduction <add>, %76, %cst_22 [2] : vector<2x32x128xf32> to vector<2x32xf32>
    %cst_23 = arith.constant dense<0.000000e+00> : vector<2x32xf32>
    %79 = vector.multi_reduction <add>, %77, %cst_23 [2] : vector<2x32x128xf32> to vector<2x32xf32>
    %80 = arith.divf %78, %79 : vector<2x32xf32>
    %81 = vector.extract_strided_slice %11 {offsets = [0, 64], sizes = [2, 32], strides = [1, 1]} : vector<2x256xf32> to vector<2x32xf32>
    %82 = vector.shape_cast %81 : vector<2x32xf32> to vector<2x32x1xf32>
    %83 = vector.extract_strided_slice %16 {offsets = [0, 64], sizes = [2, 32], strides = [1, 1]} : vector<2x256xf32> to vector<2x32xf32>
    %84 = vector.shape_cast %83 : vector<2x32xf32> to vector<2x32x1xf32>
    %cst_24 = arith.constant 0.000000e+00 : f32
    %85 = vector.broadcast %cst_24 : f32 to vector<2x32x128xf32>
    %cst_25 = arith.constant 0.000000e+00 : f32
    %86 = vector.broadcast %cst_25 : f32 to vector<2x32x128xf32>
    %c0_i32_26 = arith.constant 0 : i32
    %c7_i32_27 = arith.constant 7 : i32
    %87 = arith.addi %c0_i32_26, %c7_i32_27 : i32
    %c1_i32_28 = arith.constant 1 : i32
    %88:2 = scf.for %arg16 = %c0_i32_26 to %87 step %c1_i32_28 iter_args(%arg17 = %85, %arg18 = %86) -> (vector<2x32x128xf32>, vector<2x32x128xf32>)  : i32 {
      %c128_i32 = arith.constant 128 : i32
      %283 = arith.muli %arg16, %c128_i32 : i32
      %284 = tpu.assume_multiple %283, 128 : i32
      %c0_104 = arith.constant 0 : index
      %285 = arith.index_cast %284 : i32 to index
      %286 = vector.load %arg13[%c0_104, %285] : memref<2x1024xf32, #tpu.memory_space<vmem>>, vector<2x128xf32>
      %287 = vector.shape_cast %286 : vector<2x128xf32> to vector<2x1x128xf32>
      %288 = vector.broadcast %82 : vector<2x32x1xf32> to vector<2x32x128xf32>
      %289 = vector.broadcast %287 : vector<2x1x128xf32> to vector<2x32x128xf32>
      %290 = arith.mulf %288, %289 : vector<2x32x128xf32>
      %291 = vector.broadcast %84 : vector<2x32x1xf32> to vector<2x32x128xf32>
      %292 = arith.subf %290, %291 : vector<2x32x128xf32>
      %293 = arith.truncf %292 : vector<2x32x128xf32> to vector<2x32x128xbf16>
      %294 = math.exp %293 : vector<2x32x128xbf16>
      %295 = arith.extf %294 : vector<2x32x128xbf16> to vector<2x32x128xf32>
      %296 = vector.broadcast %287 : vector<2x1x128xf32> to vector<2x32x128xf32>
      %297 = arith.mulf %295, %296 : vector<2x32x128xf32>
      %298 = arith.addf %arg17, %297 : vector<2x32x128xf32>
      %299 = arith.addf %arg18, %295 : vector<2x32x128xf32>
      scf.yield %298, %299 : vector<2x32x128xf32>, vector<2x32x128xf32>
    }
    %c7_i32_29 = arith.constant 7 : i32
    %89 = tpu.iota {dimensions = array<i32: 2>} : vector<1x1x128xi32>
    %c104_i32_30 = arith.constant 104 : i32
    %90 = vector.broadcast %c104_i32_30 : i32 to vector<1x1x128xi32>
    %91 = arith.cmpi slt, %89, %90 : vector<1x1x128xi32>
    %c0_31 = arith.constant 0 : index
    %c896_32 = arith.constant 896 : index
    %92 = vector.load %arg13[%c0_31, %c896_32] : memref<2x1024xf32, #tpu.memory_space<vmem>>, vector<2x128xf32>
    %93 = vector.shape_cast %92 : vector<2x128xf32> to vector<2x1x128xf32>
    %94 = vector.broadcast %82 : vector<2x32x1xf32> to vector<2x32x128xf32>
    %95 = vector.broadcast %93 : vector<2x1x128xf32> to vector<2x32x128xf32>
    %96 = arith.mulf %94, %95 : vector<2x32x128xf32>
    %97 = vector.broadcast %84 : vector<2x32x1xf32> to vector<2x32x128xf32>
    %98 = arith.subf %96, %97 : vector<2x32x128xf32>
    %99 = arith.truncf %98 : vector<2x32x128xf32> to vector<2x32x128xbf16>
    %100 = math.exp %99 : vector<2x32x128xbf16>
    %101 = arith.extf %100 : vector<2x32x128xbf16> to vector<2x32x128xf32>
    %cst_33 = arith.constant 0.000000e+00 : f32
    %102 = vector.shape_cast %91 : vector<1x1x128xi1> to vector<1x1x128xi1>
    %103 = vector.broadcast %102 : vector<1x1x128xi1> to vector<2x32x128xi1>
    %104 = vector.broadcast %cst_33 : f32 to vector<2x32x128xf32>
    %105 = arith.select %103, %101, %104 : vector<2x32x128xi1>, vector<2x32x128xf32>
    %106 = vector.broadcast %93 : vector<2x1x128xf32> to vector<2x32x128xf32>
    %107 = arith.mulf %105, %106 : vector<2x32x128xf32>
    %108 = arith.addf %88#0, %107 : vector<2x32x128xf32>
    %109 = arith.addf %88#1, %105 : vector<2x32x128xf32>
    %cst_34 = arith.constant dense<0.000000e+00> : vector<2x32xf32>
    %110 = vector.multi_reduction <add>, %108, %cst_34 [2] : vector<2x32x128xf32> to vector<2x32xf32>
    %cst_35 = arith.constant dense<0.000000e+00> : vector<2x32xf32>
    %111 = vector.multi_reduction <add>, %109, %cst_35 [2] : vector<2x32x128xf32> to vector<2x32xf32>
    %112 = arith.divf %110, %111 : vector<2x32xf32>
    %113 = vector.extract_strided_slice %11 {offsets = [0, 96], sizes = [2, 32], strides = [1, 1]} : vector<2x256xf32> to vector<2x32xf32>
    %114 = vector.shape_cast %113 : vector<2x32xf32> to vector<2x32x1xf32>
    %115 = vector.extract_strided_slice %16 {offsets = [0, 96], sizes = [2, 32], strides = [1, 1]} : vector<2x256xf32> to vector<2x32xf32>
    %116 = vector.shape_cast %115 : vector<2x32xf32> to vector<2x32x1xf32>
    %cst_36 = arith.constant 0.000000e+00 : f32
    %117 = vector.broadcast %cst_36 : f32 to vector<2x32x128xf32>
    %cst_37 = arith.constant 0.000000e+00 : f32
    %118 = vector.broadcast %cst_37 : f32 to vector<2x32x128xf32>
    %c0_i32_38 = arith.constant 0 : i32
    %c7_i32_39 = arith.constant 7 : i32
    %119 = arith.addi %c0_i32_38, %c7_i32_39 : i32
    %c1_i32_40 = arith.constant 1 : i32
    %120:2 = scf.for %arg16 = %c0_i32_38 to %119 step %c1_i32_40 iter_args(%arg17 = %117, %arg18 = %118) -> (vector<2x32x128xf32>, vector<2x32x128xf32>)  : i32 {
      %c128_i32 = arith.constant 128 : i32
      %283 = arith.muli %arg16, %c128_i32 : i32
      %284 = tpu.assume_multiple %283, 128 : i32
      %c0_104 = arith.constant 0 : index
      %285 = arith.index_cast %284 : i32 to index
      %286 = vector.load %arg13[%c0_104, %285] : memref<2x1024xf32, #tpu.memory_space<vmem>>, vector<2x128xf32>
      %287 = vector.shape_cast %286 : vector<2x128xf32> to vector<2x1x128xf32>
      %288 = vector.broadcast %114 : vector<2x32x1xf32> to vector<2x32x128xf32>
      %289 = vector.broadcast %287 : vector<2x1x128xf32> to vector<2x32x128xf32>
      %290 = arith.mulf %288, %289 : vector<2x32x128xf32>
      %291 = vector.broadcast %116 : vector<2x32x1xf32> to vector<2x32x128xf32>
      %292 = arith.subf %290, %291 : vector<2x32x128xf32>
      %293 = arith.truncf %292 : vector<2x32x128xf32> to vector<2x32x128xbf16>
      %294 = math.exp %293 : vector<2x32x128xbf16>
      %295 = arith.extf %294 : vector<2x32x128xbf16> to vector<2x32x128xf32>
      %296 = vector.broadcast %287 : vector<2x1x128xf32> to vector<2x32x128xf32>
      %297 = arith.mulf %295, %296 : vector<2x32x128xf32>
      %298 = arith.addf %arg17, %297 : vector<2x32x128xf32>
      %299 = arith.addf %arg18, %295 : vector<2x32x128xf32>
      scf.yield %298, %299 : vector<2x32x128xf32>, vector<2x32x128xf32>
    }
    %c7_i32_41 = arith.constant 7 : i32
    %121 = tpu.iota {dimensions = array<i32: 2>} : vector<1x1x128xi32>
    %c104_i32_42 = arith.constant 104 : i32
    %122 = vector.broadcast %c104_i32_42 : i32 to vector<1x1x128xi32>
    %123 = arith.cmpi slt, %121, %122 : vector<1x1x128xi32>
    %c0_43 = arith.constant 0 : index
    %c896_44 = arith.constant 896 : index
    %124 = vector.load %arg13[%c0_43, %c896_44] : memref<2x1024xf32, #tpu.memory_space<vmem>>, vector<2x128xf32>
    %125 = vector.shape_cast %124 : vector<2x128xf32> to vector<2x1x128xf32>
    %126 = vector.broadcast %114 : vector<2x32x1xf32> to vector<2x32x128xf32>
    %127 = vector.broadcast %125 : vector<2x1x128xf32> to vector<2x32x128xf32>
    %128 = arith.mulf %126, %127 : vector<2x32x128xf32>
    %129 = vector.broadcast %116 : vector<2x32x1xf32> to vector<2x32x128xf32>
    %130 = arith.subf %128, %129 : vector<2x32x128xf32>
    %131 = arith.truncf %130 : vector<2x32x128xf32> to vector<2x32x128xbf16>
    %132 = math.exp %131 : vector<2x32x128xbf16>
    %133 = arith.extf %132 : vector<2x32x128xbf16> to vector<2x32x128xf32>
    %cst_45 = arith.constant 0.000000e+00 : f32
    %134 = vector.shape_cast %123 : vector<1x1x128xi1> to vector<1x1x128xi1>
    %135 = vector.broadcast %134 : vector<1x1x128xi1> to vector<2x32x128xi1>
    %136 = vector.broadcast %cst_45 : f32 to vector<2x32x128xf32>
    %137 = arith.select %135, %133, %136 : vector<2x32x128xi1>, vector<2x32x128xf32>
    %138 = vector.broadcast %125 : vector<2x1x128xf32> to vector<2x32x128xf32>
    %139 = arith.mulf %137, %138 : vector<2x32x128xf32>
    %140 = arith.addf %120#0, %139 : vector<2x32x128xf32>
    %141 = arith.addf %120#1, %137 : vector<2x32x128xf32>
    %cst_46 = arith.constant dense<0.000000e+00> : vector<2x32xf32>
    %142 = vector.multi_reduction <add>, %140, %cst_46 [2] : vector<2x32x128xf32> to vector<2x32xf32>
    %cst_47 = arith.constant dense<0.000000e+00> : vector<2x32xf32>
    %143 = vector.multi_reduction <add>, %141, %cst_47 [2] : vector<2x32x128xf32> to vector<2x32xf32>
    %144 = arith.divf %142, %143 : vector<2x32xf32>
    %145 = vector.extract_strided_slice %11 {offsets = [0, 128], sizes = [2, 32], strides = [1, 1]} : vector<2x256xf32> to vector<2x32xf32>
    %146 = vector.shape_cast %145 : vector<2x32xf32> to vector<2x32x1xf32>
    %147 = vector.extract_strided_slice %16 {offsets = [0, 128], sizes = [2, 32], strides = [1, 1]} : vector<2x256xf32> to vector<2x32xf32>
    %148 = vector.shape_cast %147 : vector<2x32xf32> to vector<2x32x1xf32>
    %cst_48 = arith.constant 0.000000e+00 : f32
    %149 = vector.broadcast %cst_48 : f32 to vector<2x32x128xf32>
    %cst_49 = arith.constant 0.000000e+00 : f32
    %150 = vector.broadcast %cst_49 : f32 to vector<2x32x128xf32>
    %c0_i32_50 = arith.constant 0 : i32
    %c7_i32_51 = arith.constant 7 : i32
    %151 = arith.addi %c0_i32_50, %c7_i32_51 : i32
    %c1_i32_52 = arith.constant 1 : i32
    %152:2 = scf.for %arg16 = %c0_i32_50 to %151 step %c1_i32_52 iter_args(%arg17 = %149, %arg18 = %150) -> (vector<2x32x128xf32>, vector<2x32x128xf32>)  : i32 {
      %c128_i32 = arith.constant 128 : i32
      %283 = arith.muli %arg16, %c128_i32 : i32
      %284 = tpu.assume_multiple %283, 128 : i32
      %c0_104 = arith.constant 0 : index
      %285 = arith.index_cast %284 : i32 to index
      %286 = vector.load %arg13[%c0_104, %285] : memref<2x1024xf32, #tpu.memory_space<vmem>>, vector<2x128xf32>
      %287 = vector.shape_cast %286 : vector<2x128xf32> to vector<2x1x128xf32>
      %288 = vector.broadcast %146 : vector<2x32x1xf32> to vector<2x32x128xf32>
      %289 = vector.broadcast %287 : vector<2x1x128xf32> to vector<2x32x128xf32>
      %290 = arith.mulf %288, %289 : vector<2x32x128xf32>
      %291 = vector.broadcast %148 : vector<2x32x1xf32> to vector<2x32x128xf32>
      %292 = arith.subf %290, %291 : vector<2x32x128xf32>
      %293 = arith.truncf %292 : vector<2x32x128xf32> to vector<2x32x128xbf16>
      %294 = math.exp %293 : vector<2x32x128xbf16>
      %295 = arith.extf %294 : vector<2x32x128xbf16> to vector<2x32x128xf32>
      %296 = vector.broadcast %287 : vector<2x1x128xf32> to vector<2x32x128xf32>
      %297 = arith.mulf %295, %296 : vector<2x32x128xf32>
      %298 = arith.addf %arg17, %297 : vector<2x32x128xf32>
      %299 = arith.addf %arg18, %295 : vector<2x32x128xf32>
      scf.yield %298, %299 : vector<2x32x128xf32>, vector<2x32x128xf32>
    }
    %c7_i32_53 = arith.constant 7 : i32
    %153 = tpu.iota {dimensions = array<i32: 2>} : vector<1x1x128xi32>
    %c104_i32_54 = arith.constant 104 : i32
    %154 = vector.broadcast %c104_i32_54 : i32 to vector<1x1x128xi32>
    %155 = arith.cmpi slt, %153, %154 : vector<1x1x128xi32>
    %c0_55 = arith.constant 0 : index
    %c896_56 = arith.constant 896 : index
    %156 = vector.load %arg13[%c0_55, %c896_56] : memref<2x1024xf32, #tpu.memory_space<vmem>>, vector<2x128xf32>
    %157 = vector.shape_cast %156 : vector<2x128xf32> to vector<2x1x128xf32>
    %158 = vector.broadcast %146 : vector<2x32x1xf32> to vector<2x32x128xf32>
    %159 = vector.broadcast %157 : vector<2x1x128xf32> to vector<2x32x128xf32>
    %160 = arith.mulf %158, %159 : vector<2x32x128xf32>
    %161 = vector.broadcast %148 : vector<2x32x1xf32> to vector<2x32x128xf32>
    %162 = arith.subf %160, %161 : vector<2x32x128xf32>
    %163 = arith.truncf %162 : vector<2x32x128xf32> to vector<2x32x128xbf16>
    %164 = math.exp %163 : vector<2x32x128xbf16>
    %165 = arith.extf %164 : vector<2x32x128xbf16> to vector<2x32x128xf32>
    %cst_57 = arith.constant 0.000000e+00 : f32
    %166 = vector.shape_cast %155 : vector<1x1x128xi1> to vector<1x1x128xi1>
    %167 = vector.broadcast %166 : vector<1x1x128xi1> to vector<2x32x128xi1>
    %168 = vector.broadcast %cst_57 : f32 to vector<2x32x128xf32>
    %169 = arith.select %167, %165, %168 : vector<2x32x128xi1>, vector<2x32x128xf32>
    %170 = vector.broadcast %157 : vector<2x1x128xf32> to vector<2x32x128xf32>
    %171 = arith.mulf %169, %170 : vector<2x32x128xf32>
    %172 = arith.addf %152#0, %171 : vector<2x32x128xf32>
    %173 = arith.addf %152#1, %169 : vector<2x32x128xf32>
    %cst_58 = arith.constant dense<0.000000e+00> : vector<2x32xf32>
    %174 = vector.multi_reduction <add>, %172, %cst_58 [2] : vector<2x32x128xf32> to vector<2x32xf32>
    %cst_59 = arith.constant dense<0.000000e+00> : vector<2x32xf32>
    %175 = vector.multi_reduction <add>, %173, %cst_59 [2] : vector<2x32x128xf32> to vector<2x32xf32>
    %176 = arith.divf %174, %175 : vector<2x32xf32>
    %177 = vector.extract_strided_slice %11 {offsets = [0, 160], sizes = [2, 32], strides = [1, 1]} : vector<2x256xf32> to vector<2x32xf32>
    %178 = vector.shape_cast %177 : vector<2x32xf32> to vector<2x32x1xf32>
    %179 = vector.extract_strided_slice %16 {offsets = [0, 160], sizes = [2, 32], strides = [1, 1]} : vector<2x256xf32> to vector<2x32xf32>
    %180 = vector.shape_cast %179 : vector<2x32xf32> to vector<2x32x1xf32>
    %cst_60 = arith.constant 0.000000e+00 : f32
    %181 = vector.broadcast %cst_60 : f32 to vector<2x32x128xf32>
    %cst_61 = arith.constant 0.000000e+00 : f32
    %182 = vector.broadcast %cst_61 : f32 to vector<2x32x128xf32>
    %c0_i32_62 = arith.constant 0 : i32
    %c7_i32_63 = arith.constant 7 : i32
    %183 = arith.addi %c0_i32_62, %c7_i32_63 : i32
    %c1_i32_64 = arith.constant 1 : i32
    %184:2 = scf.for %arg16 = %c0_i32_62 to %183 step %c1_i32_64 iter_args(%arg17 = %181, %arg18 = %182) -> (vector<2x32x128xf32>, vector<2x32x128xf32>)  : i32 {
      %c128_i32 = arith.constant 128 : i32
      %283 = arith.muli %arg16, %c128_i32 : i32
      %284 = tpu.assume_multiple %283, 128 : i32
      %c0_104 = arith.constant 0 : index
      %285 = arith.index_cast %284 : i32 to index
      %286 = vector.load %arg13[%c0_104, %285] : memref<2x1024xf32, #tpu.memory_space<vmem>>, vector<2x128xf32>
      %287 = vector.shape_cast %286 : vector<2x128xf32> to vector<2x1x128xf32>
      %288 = vector.broadcast %178 : vector<2x32x1xf32> to vector<2x32x128xf32>
      %289 = vector.broadcast %287 : vector<2x1x128xf32> to vector<2x32x128xf32>
      %290 = arith.mulf %288, %289 : vector<2x32x128xf32>
      %291 = vector.broadcast %180 : vector<2x32x1xf32> to vector<2x32x128xf32>
      %292 = arith.subf %290, %291 : vector<2x32x128xf32>
      %293 = arith.truncf %292 : vector<2x32x128xf32> to vector<2x32x128xbf16>
      %294 = math.exp %293 : vector<2x32x128xbf16>
      %295 = arith.extf %294 : vector<2x32x128xbf16> to vector<2x32x128xf32>
      %296 = vector.broadcast %287 : vector<2x1x128xf32> to vector<2x32x128xf32>
      %297 = arith.mulf %295, %296 : vector<2x32x128xf32>
      %298 = arith.addf %arg17, %297 : vector<2x32x128xf32>
      %299 = arith.addf %arg18, %295 : vector<2x32x128xf32>
      scf.yield %298, %299 : vector<2x32x128xf32>, vector<2x32x128xf32>
    }
    %c7_i32_65 = arith.constant 7 : i32
    %185 = tpu.iota {dimensions = array<i32: 2>} : vector<1x1x128xi32>
    %c104_i32_66 = arith.constant 104 : i32
    %186 = vector.broadcast %c104_i32_66 : i32 to vector<1x1x128xi32>
    %187 = arith.cmpi slt, %185, %186 : vector<1x1x128xi32>
    %c0_67 = arith.constant 0 : index
    %c896_68 = arith.constant 896 : index
    %188 = vector.load %arg13[%c0_67, %c896_68] : memref<2x1024xf32, #tpu.memory_space<vmem>>, vector<2x128xf32>
    %189 = vector.shape_cast %188 : vector<2x128xf32> to vector<2x1x128xf32>
    %190 = vector.broadcast %178 : vector<2x32x1xf32> to vector<2x32x128xf32>
    %191 = vector.broadcast %189 : vector<2x1x128xf32> to vector<2x32x128xf32>
    %192 = arith.mulf %190, %191 : vector<2x32x128xf32>
    %193 = vector.broadcast %180 : vector<2x32x1xf32> to vector<2x32x128xf32>
    %194 = arith.subf %192, %193 : vector<2x32x128xf32>
    %195 = arith.truncf %194 : vector<2x32x128xf32> to vector<2x32x128xbf16>
    %196 = math.exp %195 : vector<2x32x128xbf16>
    %197 = arith.extf %196 : vector<2x32x128xbf16> to vector<2x32x128xf32>
    %cst_69 = arith.constant 0.000000e+00 : f32
    %198 = vector.shape_cast %187 : vector<1x1x128xi1> to vector<1x1x128xi1>
    %199 = vector.broadcast %198 : vector<1x1x128xi1> to vector<2x32x128xi1>
    %200 = vector.broadcast %cst_69 : f32 to vector<2x32x128xf32>
    %201 = arith.select %199, %197, %200 : vector<2x32x128xi1>, vector<2x32x128xf32>
    %202 = vector.broadcast %189 : vector<2x1x128xf32> to vector<2x32x128xf32>
    %203 = arith.mulf %201, %202 : vector<2x32x128xf32>
    %204 = arith.addf %184#0, %203 : vector<2x32x128xf32>
    %205 = arith.addf %184#1, %201 : vector<2x32x128xf32>
    %cst_70 = arith.constant dense<0.000000e+00> : vector<2x32xf32>
    %206 = vector.multi_reduction <add>, %204, %cst_70 [2] : vector<2x32x128xf32> to vector<2x32xf32>
    %cst_71 = arith.constant dense<0.000000e+00> : vector<2x32xf32>
    %207 = vector.multi_reduction <add>, %205, %cst_71 [2] : vector<2x32x128xf32> to vector<2x32xf32>
    %208 = arith.divf %206, %207 : vector<2x32xf32>
    %209 = vector.extract_strided_slice %11 {offsets = [0, 192], sizes = [2, 32], strides = [1, 1]} : vector<2x256xf32> to vector<2x32xf32>
    %210 = vector.shape_cast %209 : vector<2x32xf32> to vector<2x32x1xf32>
    %211 = vector.extract_strided_slice %16 {offsets = [0, 192], sizes = [2, 32], strides = [1, 1]} : vector<2x256xf32> to vector<2x32xf32>
    %212 = vector.shape_cast %211 : vector<2x32xf32> to vector<2x32x1xf32>
    %cst_72 = arith.constant 0.000000e+00 : f32
    %213 = vector.broadcast %cst_72 : f32 to vector<2x32x128xf32>
    %cst_73 = arith.constant 0.000000e+00 : f32
    %214 = vector.broadcast %cst_73 : f32 to vector<2x32x128xf32>
    %c0_i32_74 = arith.constant 0 : i32
    %c7_i32_75 = arith.constant 7 : i32
    %215 = arith.addi %c0_i32_74, %c7_i32_75 : i32
    %c1_i32_76 = arith.constant 1 : i32
    %216:2 = scf.for %arg16 = %c0_i32_74 to %215 step %c1_i32_76 iter_args(%arg17 = %213, %arg18 = %214) -> (vector<2x32x128xf32>, vector<2x32x128xf32>)  : i32 {
      %c128_i32 = arith.constant 128 : i32
      %283 = arith.muli %arg16, %c128_i32 : i32
      %284 = tpu.assume_multiple %283, 128 : i32
      %c0_104 = arith.constant 0 : index
      %285 = arith.index_cast %284 : i32 to index
      %286 = vector.load %arg13[%c0_104, %285] : memref<2x1024xf32, #tpu.memory_space<vmem>>, vector<2x128xf32>
      %287 = vector.shape_cast %286 : vector<2x128xf32> to vector<2x1x128xf32>
      %288 = vector.broadcast %210 : vector<2x32x1xf32> to vector<2x32x128xf32>
      %289 = vector.broadcast %287 : vector<2x1x128xf32> to vector<2x32x128xf32>
      %290 = arith.mulf %288, %289 : vector<2x32x128xf32>
      %291 = vector.broadcast %212 : vector<2x32x1xf32> to vector<2x32x128xf32>
      %292 = arith.subf %290, %291 : vector<2x32x128xf32>
      %293 = arith.truncf %292 : vector<2x32x128xf32> to vector<2x32x128xbf16>
      %294 = math.exp %293 : vector<2x32x128xbf16>
      %295 = arith.extf %294 : vector<2x32x128xbf16> to vector<2x32x128xf32>
      %296 = vector.broadcast %287 : vector<2x1x128xf32> to vector<2x32x128xf32>
      %297 = arith.mulf %295, %296 : vector<2x32x128xf32>
      %298 = arith.addf %arg17, %297 : vector<2x32x128xf32>
      %299 = arith.addf %arg18, %295 : vector<2x32x128xf32>
      scf.yield %298, %299 : vector<2x32x128xf32>, vector<2x32x128xf32>
    }
    %c7_i32_77 = arith.constant 7 : i32
    %217 = tpu.iota {dimensions = array<i32: 2>} : vector<1x1x128xi32>
    %c104_i32_78 = arith.constant 104 : i32
    %218 = vector.broadcast %c104_i32_78 : i32 to vector<1x1x128xi32>
    %219 = arith.cmpi slt, %217, %218 : vector<1x1x128xi32>
    %c0_79 = arith.constant 0 : index
    %c896_80 = arith.constant 896 : index
    %220 = vector.load %arg13[%c0_79, %c896_80] : memref<2x1024xf32, #tpu.memory_space<vmem>>, vector<2x128xf32>
    %221 = vector.shape_cast %220 : vector<2x128xf32> to vector<2x1x128xf32>
    %222 = vector.broadcast %210 : vector<2x32x1xf32> to vector<2x32x128xf32>
    %223 = vector.broadcast %221 : vector<2x1x128xf32> to vector<2x32x128xf32>
    %224 = arith.mulf %222, %223 : vector<2x32x128xf32>
    %225 = vector.broadcast %212 : vector<2x32x1xf32> to vector<2x32x128xf32>
    %226 = arith.subf %224, %225 : vector<2x32x128xf32>
    %227 = arith.truncf %226 : vector<2x32x128xf32> to vector<2x32x128xbf16>
    %228 = math.exp %227 : vector<2x32x128xbf16>
    %229 = arith.extf %228 : vector<2x32x128xbf16> to vector<2x32x128xf32>
    %cst_81 = arith.constant 0.000000e+00 : f32
    %230 = vector.shape_cast %219 : vector<1x1x128xi1> to vector<1x1x128xi1>
    %231 = vector.broadcast %230 : vector<1x1x128xi1> to vector<2x32x128xi1>
    %232 = vector.broadcast %cst_81 : f32 to vector<2x32x128xf32>
    %233 = arith.select %231, %229, %232 : vector<2x32x128xi1>, vector<2x32x128xf32>
    %234 = vector.broadcast %221 : vector<2x1x128xf32> to vector<2x32x128xf32>
    %235 = arith.mulf %233, %234 : vector<2x32x128xf32>
    %236 = arith.addf %216#0, %235 : vector<2x32x128xf32>
    %237 = arith.addf %216#1, %233 : vector<2x32x128xf32>
    %cst_82 = arith.constant dense<0.000000e+00> : vector<2x32xf32>
    %238 = vector.multi_reduction <add>, %236, %cst_82 [2] : vector<2x32x128xf32> to vector<2x32xf32>
    %cst_83 = arith.constant dense<0.000000e+00> : vector<2x32xf32>
    %239 = vector.multi_reduction <add>, %237, %cst_83 [2] : vector<2x32x128xf32> to vector<2x32xf32>
    %240 = arith.divf %238, %239 : vector<2x32xf32>
    %241 = vector.extract_strided_slice %11 {offsets = [0, 224], sizes = [2, 32], strides = [1, 1]} : vector<2x256xf32> to vector<2x32xf32>
    %242 = vector.shape_cast %241 : vector<2x32xf32> to vector<2x32x1xf32>
    %243 = vector.extract_strided_slice %16 {offsets = [0, 224], sizes = [2, 32], strides = [1, 1]} : vector<2x256xf32> to vector<2x32xf32>
    %244 = vector.shape_cast %243 : vector<2x32xf32> to vector<2x32x1xf32>
    %cst_84 = arith.constant 0.000000e+00 : f32
    %245 = vector.broadcast %cst_84 : f32 to vector<2x32x128xf32>
    %cst_85 = arith.constant 0.000000e+00 : f32
    %246 = vector.broadcast %cst_85 : f32 to vector<2x32x128xf32>
    %c0_i32_86 = arith.constant 0 : i32
    %c7_i32_87 = arith.constant 7 : i32
    %247 = arith.addi %c0_i32_86, %c7_i32_87 : i32
    %c1_i32_88 = arith.constant 1 : i32
    %248:2 = scf.for %arg16 = %c0_i32_86 to %247 step %c1_i32_88 iter_args(%arg17 = %245, %arg18 = %246) -> (vector<2x32x128xf32>, vector<2x32x128xf32>)  : i32 {
      %c128_i32 = arith.constant 128 : i32
      %283 = arith.muli %arg16, %c128_i32 : i32
      %284 = tpu.assume_multiple %283, 128 : i32
      %c0_104 = arith.constant 0 : index
      %285 = arith.index_cast %284 : i32 to index
      %286 = vector.load %arg13[%c0_104, %285] : memref<2x1024xf32, #tpu.memory_space<vmem>>, vector<2x128xf32>
      %287 = vector.shape_cast %286 : vector<2x128xf32> to vector<2x1x128xf32>
      %288 = vector.broadcast %242 : vector<2x32x1xf32> to vector<2x32x128xf32>
      %289 = vector.broadcast %287 : vector<2x1x128xf32> to vector<2x32x128xf32>
      %290 = arith.mulf %288, %289 : vector<2x32x128xf32>
      %291 = vector.broadcast %244 : vector<2x32x1xf32> to vector<2x32x128xf32>
      %292 = arith.subf %290, %291 : vector<2x32x128xf32>
      %293 = arith.truncf %292 : vector<2x32x128xf32> to vector<2x32x128xbf16>
      %294 = math.exp %293 : vector<2x32x128xbf16>
      %295 = arith.extf %294 : vector<2x32x128xbf16> to vector<2x32x128xf32>
      %296 = vector.broadcast %287 : vector<2x1x128xf32> to vector<2x32x128xf32>
      %297 = arith.mulf %295, %296 : vector<2x32x128xf32>
      %298 = arith.addf %arg17, %297 : vector<2x32x128xf32>
      %299 = arith.addf %arg18, %295 : vector<2x32x128xf32>
      scf.yield %298, %299 : vector<2x32x128xf32>, vector<2x32x128xf32>
    }
    %c7_i32_89 = arith.constant 7 : i32
    %249 = tpu.iota {dimensions = array<i32: 2>} : vector<1x1x128xi32>
    %c104_i32_90 = arith.constant 104 : i32
    %250 = vector.broadcast %c104_i32_90 : i32 to vector<1x1x128xi32>
    %251 = arith.cmpi slt, %249, %250 : vector<1x1x128xi32>
    %c0_91 = arith.constant 0 : index
    %c896_92 = arith.constant 896 : index
    %252 = vector.load %arg13[%c0_91, %c896_92] : memref<2x1024xf32, #tpu.memory_space<vmem>>, vector<2x128xf32>
    %253 = vector.shape_cast %252 : vector<2x128xf32> to vector<2x1x128xf32>
    %254 = vector.broadcast %242 : vector<2x32x1xf32> to vector<2x32x128xf32>
    %255 = vector.broadcast %253 : vector<2x1x128xf32> to vector<2x32x128xf32>
    %256 = arith.mulf %254, %255 : vector<2x32x128xf32>
    %257 = vector.broadcast %244 : vector<2x32x1xf32> to vector<2x32x128xf32>
    %258 = arith.subf %256, %257 : vector<2x32x128xf32>
    %259 = arith.truncf %258 : vector<2x32x128xf32> to vector<2x32x128xbf16>
    %260 = math.exp %259 : vector<2x32x128xbf16>
    %261 = arith.extf %260 : vector<2x32x128xbf16> to vector<2x32x128xf32>
    %cst_93 = arith.constant 0.000000e+00 : f32
    %262 = vector.shape_cast %251 : vector<1x1x128xi1> to vector<1x1x128xi1>
    %263 = vector.broadcast %262 : vector<1x1x128xi1> to vector<2x32x128xi1>
    %264 = vector.broadcast %cst_93 : f32 to vector<2x32x128xf32>
    %265 = arith.select %263, %261, %264 : vector<2x32x128xi1>, vector<2x32x128xf32>
    %266 = vector.broadcast %253 : vector<2x1x128xf32> to vector<2x32x128xf32>
    %267 = arith.mulf %265, %266 : vector<2x32x128xf32>
    %268 = arith.addf %248#0, %267 : vector<2x32x128xf32>
    %269 = arith.addf %248#1, %265 : vector<2x32x128xf32>
    %cst_94 = arith.constant dense<0.000000e+00> : vector<2x32xf32>
    %270 = vector.multi_reduction <add>, %268, %cst_94 [2] : vector<2x32x128xf32> to vector<2x32xf32>
    %cst_95 = arith.constant dense<0.000000e+00> : vector<2x32xf32>
    %271 = vector.multi_reduction <add>, %269, %cst_95 [2] : vector<2x32x128xf32> to vector<2x32xf32>
    %272 = arith.divf %270, %271 : vector<2x32xf32>
    %273 = tpu.concatenate %48, %80, %112, %144, %176, %208, %240, %272 in 1 : vector<2x32xf32>, vector<2x32xf32>, vector<2x32xf32>, vector<2x32xf32>, vector<2x32xf32>, vector<2x32xf32>, vector<2x32xf32>, vector<2x32xf32> -> vector<2x256xf32>
    %c0_96 = arith.constant 0 : index
    %c0_97 = arith.constant 0 : index
    %274 = vector.load %arg14[%c0_96, %c0_97] : memref<2x1024xf32, #tpu.memory_space<vmem>>, vector<2x1024xf32>
    %275 = arith.truncf %273 : vector<2x256xf32> to vector<2x256xbf16>
    %c0_98 = arith.constant 0 : index
    %c0_99 = arith.constant 0 : index
    %276 = vector.load %arg3[%c0_98, %c0_99] : memref<256x1024xbf16, #tpu.memory_space<vmem>>, vector<256x1024xbf16>
    %cst_100 = arith.constant dense<0.000000e+00> : vector<2x1024xf32>
    %277 = tpu.matmul %275, %276, %cst_100 {dimension_numbers = #tpu.dot_dimension_numbers<[1], [0], [0], [1], [0, 0, 1, 1], [], []>} : vector<2x256xbf16>, vector<256x1024xbf16>, vector<2x1024xf32> -> vector<2x1024xf32>
    %278 = arith.addf %274, %277 : vector<2x1024xf32>
    %c0_101 = arith.constant 0 : index
    %c0_102 = arith.constant 0 : index
    %279 = vector.load %arg14[%c0_101, %c0_102] : memref<2x1024xf32, #tpu.memory_space<vmem>>, vector<2x1024xf32>
    tpu.vector_store %arg14[%c0_101, %c0_102], %278 {strides = array<i32>} : memref<2x1024xf32, #tpu.memory_space<vmem>>, vector<2x1024xf32>,
    %c3_i32 = arith.constant 3 : i32
    %280 = arith.cmpi eq, %arg0, %c3_i32 : i32
    %281 = arith.extui %280 : i1 to i32
    %c0_i32_103 = arith.constant 0 : i32
    %282 = arith.cmpi ne, %281, %c0_i32_103 : i32
    scf.if %282 {
      %c0_104 = arith.constant 0 : index
      %c0_105 = arith.constant 0 : index
      %283 = vector.load %arg14[%c0_104, %c0_105] : memref<2x1024xf32, #tpu.memory_space<vmem>>, vector<2x1024xf32>
      %c0_106 = arith.constant 0 : index
      %c0_107 = arith.constant 0 : index
      %284 = vector.load %arg4[%c0_106, %c0_107] : memref<1x1024xf32, #tpu.memory_space<vmem>>, vector<1x1024xf32>
      %285 = vector.broadcast %284 : vector<1x1024xf32> to vector<2x1024xf32>
      %286 = arith.addf %283, %285 : vector<2x1024xf32>
      %cst_108 = arith.constant dense<0.000000e+00> : vector<1024xf32>
      %287 = vector.multi_reduction <add>, %286, %cst_108 [0] : vector<2x1024xf32> to vector<1024xf32>
      %288 = vector.shape_cast %287 : vector<1024xf32> to vector<1x1024xf32>
      %cst_109 = arith.constant 2.000000e+00 : f32
      %289 = vector.broadcast %cst_109 : f32 to vector<1x1024xf32>
      %290 = arith.divf %288, %289 : vector<1x1024xf32>
      %291 = vector.broadcast %290 : vector<1x1024xf32> to vector<2x1024xf32>
      %292 = arith.subf %286, %291 : vector<2x1024xf32>
      %293 = arith.mulf %292, %292 : vector<2x1024xf32>
      %cst_110 = arith.constant dense<0.000000e+00> : vector<1024xf32>
      %294 = vector.multi_reduction <add>, %293, %cst_110 [0] : vector<2x1024xf32> to vector<1024xf32>
      %295 = vector.shape_cast %294 : vector<1024xf32> to vector<1x1024xf32>
      %cst_111 = arith.constant 2.000000e+00 : f32
      %296 = vector.broadcast %cst_111 : f32 to vector<1x1024xf32>
      %297 = arith.divf %295, %296 : vector<1x1024xf32>
      %298 = vector.broadcast %290 : vector<1x1024xf32> to vector<2x1024xf32>
      %299 = arith.subf %286, %298 : vector<2x1024xf32>
      %cst_112 = arith.constant 9.99999974E-6 : f32
      %300 = vector.broadcast %cst_112 : f32 to vector<1x1024xf32>
      %301 = arith.addf %297, %300 : vector<1x1024xf32>
      %302 = math.rsqrt %301 : vector<1x1024xf32>
      %303 = vector.broadcast %302 : vector<1x1024xf32> to vector<2x1024xf32>
      %304 = arith.mulf %299, %303 : vector<2x1024xf32>
      %c0_113 = arith.constant 0 : index
      %c0_114 = arith.constant 0 : index
      %305 = vector.load %arg5[%c0_113, %c0_114] : memref<1x1024xf32, #tpu.memory_space<vmem>>, vector<1x1024xf32>
      %306 = vector.broadcast %305 : vector<1x1024xf32> to vector<2x1024xf32>
      %307 = arith.mulf %304, %306 : vector<2x1024xf32>
      %c0_115 = arith.constant 0 : index
      %c0_116 = arith.constant 0 : index
      %308 = vector.load %arg6[%c0_115, %c0_116] : memref<1x1024xf32, #tpu.memory_space<vmem>>, vector<1x1024xf32>
      %309 = vector.broadcast %308 : vector<1x1024xf32> to vector<2x1024xf32>
      %310 = arith.addf %307, %309 : vector<2x1024xf32>
      %cst_117 = arith.constant 0.000000e+00 : f32
      %311 = vector.broadcast %cst_117 : f32 to vector<2x1024xf32>
      %312 = arith.maximumf %310, %311 : vector<2x1024xf32>
      %c0_118 = arith.constant 0 : index
      %c0_119 = arith.constant 0 : index
      %313 = vector.load %arg7[%c0_118, %c0_119] : memref<1024x128xf32, #tpu.memory_space<vmem>>, vector<1024x128xf32>
      %cst_120 = arith.constant dense<0.000000e+00> : vector<2x128xf32>
      %314 = tpu.matmul %312, %313, %cst_120 {dimension_numbers = #tpu.dot_dimension_numbers<[1], [0], [0], [1], [0, 0, 1, 1], [], []>} : vector<2x1024xf32>, vector<1024x128xf32>, vector<2x128xf32> -> vector<2x128xf32>
      %c0_121 = arith.constant 0 : index
      %c0_122 = arith.constant 0 : index
      %315 = vector.load %arg8[%c0_121, %c0_122] : memref<1x128xf32, #tpu.memory_space<vmem>>, vector<1x128xf32>
      %316 = vector.broadcast %315 : vector<1x128xf32> to vector<2x128xf32>
      %317 = arith.addf %314, %316 : vector<2x128xf32>
      %318 = vector.extract_strided_slice %317 {offsets = [0, 0], sizes = [2, 32], strides = [1, 1]} : vector<2x128xf32> to vector<2x32xf32>
      %319 = vector.extract_strided_slice %317 {offsets = [0, 32], sizes = [2, 32], strides = [1, 1]} : vector<2x128xf32> to vector<2x32xf32>
      %320 = math.exp %319 : vector<2x32xf32>
      %321 = math.sqrt %320 : vector<2x32xf32>
      %c0_123 = arith.constant 0 : index
      %c0_124 = arith.constant 0 : index
      %322 = vector.load %arg9[%c0_123, %c0_124] : memref<2x32xf32, #tpu.memory_space<vmem>>, vector<2x32xf32>
      %323 = arith.mulf %321, %322 : vector<2x32xf32>
      %324 = arith.addf %318, %323 : vector<2x32xf32>
      %c0_125 = arith.constant 0 : index
      %c0_126 = arith.constant 0 : index
      %325 = vector.load %arg10[%c0_125, %c0_126] : memref<2x32xf32, #tpu.memory_space<vmem>>, vector<2x32xf32>
      tpu.vector_store %arg10[%c0_125, %c0_126], %324 {strides = array<i32>} : memref<2x32xf32, #tpu.memory_space<vmem>>, vector<2x32xf32>,
      %c0_127 = arith.constant 0 : index
      %c0_128 = arith.constant 0 : index
      %326 = vector.load %arg11[%c0_127, %c0_128] : memref<2x32xf32, #tpu.memory_space<vmem>>, vector<2x32xf32>
      tpu.vector_store %arg11[%c0_127, %c0_128], %318 {strides = array<i32>} : memref<2x32xf32, #tpu.memory_space<vmem>>, vector<2x32xf32>,
      %c0_129 = arith.constant 0 : index
      %c0_130 = arith.constant 0 : index
      %327 = vector.load %arg12[%c0_129, %c0_130] : memref<2x32xf32, #tpu.memory_space<vmem>>, vector<2x32xf32>
      tpu.vector_store %arg12[%c0_129, %c0_130], %320 {strides = array<i32>} : memref<2x32xf32, #tpu.memory_space<vmem>>, vector<2x32xf32>,
    } else {
    }
    return
  }
  func.func @transform_0(%arg0: i32) -> (i32, i32) {
    %c0_i32 = arith.constant 0 : i32
    %c0_i32_0 = arith.constant 0 : i32
    %c0_i32_1 = arith.constant 0 : i32
    return %c0_i32, %c0_i32_0 : i32, i32
  }
  func.func @transform_2(%arg0: i32) -> (i32, i32) {
    %c0_i32 = arith.constant 0 : i32
    %c0_i32_0 = arith.constant 0 : i32
    return %arg0, %c0_i32 : i32, i32
  }
  func.func @transform_3(%arg0: i32) -> (i32, i32) {
    %c0_i32 = arith.constant 0 : i32
    %c0_i32_0 = arith.constant 0 : i32
    %c0_i32_1 = arith.constant 0 : i32
    return %c0_i32, %c0_i32_0 : i32, i32
  }
  func.func @transform_4(%arg0: i32) -> (i32, i32) {
    %c0_i32 = arith.constant 0 : i32
    %c0_i32_0 = arith.constant 0 : i32
    %c0_i32_1 = arith.constant 0 : i32
    return %c0_i32, %c0_i32_0 : i32, i32
  }
  func.func @transform_5(%arg0: i32) -> (i32, i32) {
    %c0_i32 = arith.constant 0 : i32
    %c0_i32_0 = arith.constant 0 : i32
    %c0_i32_1 = arith.constant 0 : i32
    return %c0_i32, %c0_i32_0 : i32, i32
  }
  func.func @transform_6(%arg0: i32) -> (i32, i32) {
    %c0_i32 = arith.constant 0 : i32
    %c0_i32_0 = arith.constant 0 : i32
    %c0_i32_1 = arith.constant 0 : i32
    return %c0_i32, %c0_i32_0 : i32, i32
  }
  func.func @transform_7(%arg0: i32) -> (i32, i32) {
    %c0_i32 = arith.constant 0 : i32
    %c0_i32_0 = arith.constant 0 : i32
    %c0_i32_1 = arith.constant 0 : i32
    return %c0_i32, %c0_i32_0 : i32, i32
  }
  func.func @transform_8(%arg0: i32) -> (i32, i32) {
    %c0_i32 = arith.constant 0 : i32
    %c0_i32_0 = arith.constant 0 : i32
    %c0_i32_1 = arith.constant 0 : i32
    return %c0_i32, %c0_i32_0 : i32, i32
  }
  func.func @transform_9(%arg0: i32) -> (i32, i32) {
    %c0_i32 = arith.constant 0 : i32
    %c0_i32_0 = arith.constant 0 : i32
    %c0_i32_1 = arith.constant 0 : i32
    return %c0_i32, %c0_i32_0 : i32, i32
  }
  func.func @transform_10(%arg0: i32) -> (i32, i32) {
    %c0_i32 = arith.constant 0 : i32
    %c0_i32_0 = arith.constant 0 : i32
    %c0_i32_1 = arith.constant 0 : i32
    return %c0_i32, %c0_i32_0 : i32, i32
  }
  func.func @transform_11(%arg0: i32) -> (i32, i32) {
    %c0_i32 = arith.constant 0 : i32
    %c0_i32_0 = arith.constant 0 : i32
    %c0_i32_1 = arith.constant 0 : i32
    return %c0_i32, %c0_i32_0 : i32, i32
  }
}

</mosaic_0001>

<llo_original>
// kernel: tpu_custom_call.1
$region0: #{tpu_custom_call.1}
  #allocation0 [shape = 'u32[]', space=smem, size = 0x4, offset = 0x4, fixed_abs, tag = 'smem constant byte address 0x4 - core index']
  #allocation1 [shape = 'u32[144,128]{1,0:T(1,128)}', space=vmem, size = 0x12000, scoped, tag = 'internal scratch']
  #allocation2 [shape = 'f32[2,1024]{1,0:T(2,128)}', space=vmem, size = 0x2000, scoped, tag = 'scratch operand']
  #allocation3 [shape = 'f32[2,1024]{1,0:T(2,128)}', space=vmem, size = 0x2000, scoped, tag = 'scratch operand']
  #allocation4 [shape = 's32[1]{0}', space=sflag, size = 0x4, scoped, tag = 'scratch operand']
  #allocation23 [shape = 's32[]', space=sflag, size = 0x4, offset = 0, fixed_abs, tag = 'sflag constant byte address 0x0 - dummy sync flag']
  #allocation24 [shape = 's32[]', space=sflag, size = 0x4, offset = 0, fixed_abs, tag = 'sflag constant byte address 0x0 - dummy sync flag']
  #allocation25 [shape = 'u32[]', space=smem, size = 0x4, offset = 0x44, fixed_abs, tag = 'smem constant byte address 0x44 - assertion arg 0']
  #allocation26 [shape = 'u32[]', space=smem, size = 0x4, offset = 0x48, fixed_abs, tag = 'smem constant byte address 0x48 - assertion arg 1']
  %s0 = inlined_call_operand.hbm [shape: f32[2,3], index: 0, kind: input, shape index: {}]
  %s1 = inlined_call_operand.hbm [shape: f32[2,1024], index: 1, kind: input, shape index: {}]
  %s2 = inlined_call_operand.hbm [shape: bf16[1024,1024], index: 2, kind: input, shape index: {}]
  %s3 = inlined_call_operand.hbm [shape: f32[1,1024], index: 3, kind: input, shape index: {}]
  %s4 = inlined_call_operand.hbm [shape: f32[1,1024], index: 4, kind: input, shape index: {}]
  %s5 = inlined_call_operand.hbm [shape: f32[1,1024], index: 5, kind: input, shape index: {}]
  %s6 = inlined_call_operand.hbm [shape: f32[1024,128], index: 6, kind: input, shape index: {}]
  %s7 = inlined_call_operand.hbm [shape: f32[1,128], index: 7, kind: input, shape index: {}]
  %s8 = inlined_call_operand.hbm [shape: f32[2,32], index: 8, kind: input, shape index: {}]
  %s9 = inlined_call_operand.hbm [shape: f32[2,32], index: 9, kind: output, shape index: {0}]
  %s10 = inlined_call_operand.hbm [shape: f32[2,32], index: 10, kind: output, shape index: {1}]
  %s11 = inlined_call_operand.hbm [shape: f32[2,32], index: 11, kind: output, shape index: {2}]
  %12 = xla_tuple %s9, %s10, %s11
  %s13 = sld [smem:[#allocation0]]
  $region181: #{tpu_custom_call.1} parent=0
    _
  %s15 = ssub.s32 1, %s13
  %s16 = scalar_select 0, %s15, %s13
  $region1: #{tpu_custom_call.1} parent=0
    #allocation5 [shape = 'u8[1024]{0}', space=vmem, size = 0x400, scoped, tag = 'input window, operand 0, single buffered']
    #allocation6 [shape = 's32[2]{0}', space=sflag, size = 0x8, scoped, tag = 'scoped memory for tpu_custom_call.1']
    #allocation7 [shape = 's32[2]{0}', space=sflag, size = 0x8, scoped, tag = 'scoped memory for tpu_custom_call.1']
    #allocation8 [shape = 'u8[1048576]{0}', space=vmem, size = 0x100000, scoped, tag = 'input window, operand 2']
    #allocation9 [shape = 's32[2]{0}', space=sflag, size = 0x8, scoped, tag = 'scoped memory for tpu_custom_call.1']
    #allocation10 [shape = 'u8[4096]{0}', space=vmem, size = 0x1000, scoped, tag = 'input window, operand 3, single buffered']
    #allocation11 [shape = 'u8[4096]{0}', space=vmem, size = 0x1000, scoped, tag = 'input window, operand 4, single buffered']
    #allocation12 [shape = 's32[1]{0}', space=sflag, size = 0x4, scoped, tag = 'scoped memory for tpu_custom_call.1']
    #allocation13 [shape = 'u8[4096]{0}', space=vmem, size = 0x1000, scoped, tag = 'input window, operand 5, single buffered']
    #allocation14 [shape = 'u8[524288]{0}', space=vmem, size = 0x80000, scoped, tag = 'input window, operand 6, single buffered']
    #allocation15 [shape = 's32[1]{0}', space=sflag, size = 0x4, scoped, tag = 'scoped memory for tpu_custom_call.1']
    #allocation16 [shape = 'u8[512]{0}', space=vmem, size = 0x400, scoped, tag = 'input window, operand 7, single buffered']
    #allocation17 [shape = 'u8[1024]{0}', space=vmem, size = 0x400, scoped, tag = 'input window, operand 8, single buffered']
    #allocation18 [shape = 's32[1]{0}', space=sflag, size = 0x4, scoped, tag = 'scoped memory for tpu_custom_call.1']
    #allocation19 [shape = 'u8[1024]{0}', space=vmem, size = 0x400, scoped, tag = 'output window, operand 0, single buffered']
    #allocation20 [shape = 'u8[1024]{0}', space=vmem, size = 0x400, scoped, tag = 'output window, operand 1, single buffered']
    #allocation21 [shape = 's32[1]{0}', space=sflag, size = 0x4, scoped, tag = 'scoped memory for tpu_custom_call.1']
    #allocation22 [shape = 'u8[1024]{0}', space=vmem, size = 0x400, scoped, tag = 'output window, operand 2, single buffered']
    %17 = vsyncpa [#allocation6], 0
    %18 = vsyncpa [#allocation9], 0
    %s19 = scalar_lea.sflag [#allocation9], 1
    %20 = vsyncpa %s19, 0
    %21 = vsyncpa [#allocation12], 0
    %22 = vsyncpa [#allocation15], 0
    %23 = vsyncpa [#allocation18], 0
    %24 = vsyncpa [#allocation7], 0
    %25 = vsyncpa [#allocation21], 0
    loop: start=0, step=1, limit=6
    $region2: #{tpu_custom_call.1} parent=1 // loop_pre_header
      _
    $region3: #{tpu_custom_call.1} parent=1 // loop_header
      %s27 = sphi 0, %s31
      %p28 = scmp.ge.s32.totalorder %s27, 6
      %s35 = sphi 0, %s35
      %s37 = sphi 0, %s35
      %s38 = sphi 0, %s37
      %s52 = sphi 0, %s38
      %s58 = sphi 0, %s60
      %s61 = sphi 0, %s58
      %s62 = sphi 0, %s61
      %s78 = sphi 0, %s62
      %s82 = sphi 0, %s82
      %s84 = sphi 0, %s82
      %s85 = sphi 0, %s84
      %s99 = sphi 0, %s85
      %s103 = sphi 0, %s103
      %s105 = sphi 0, %s103
      %s106 = sphi 0, %s105
      %s120 = sphi 0, %s106
      %s124 = sphi 0, %s124
      %s126 = sphi 0, %s124
      %s127 = sphi 0, %s126
      %s141 = sphi 0, %s127
      %s145 = sphi 0, %s145
      %s147 = sphi 0, %s145
      %s148 = sphi 0, %s147
      %s162 = sphi 0, %s148
      %s166 = sphi 0, %s166
      %s168 = sphi 0, %s166
      %s169 = sphi 0, %s168
      %s183 = sphi 0, %s169
      %s187 = sphi 0, %s187
      %s189 = sphi 0, %s187
      %s190 = sphi 0, %s189
      %s204 = sphi 0, %s190
      %s208 = sphi 0, %s208
      %s210 = sphi 0, %s208
      %s211 = sphi 0, %s210
      %s225 = sphi 0, %s211
      %s229 = sphi 0, %s229
      %s231 = sphi 0, %s229
      %s232 = sphi 0, %s231
      %s246 = sphi 0, %s232
      %s250 = sphi 0, %s250
      %s252 = sphi 0, %s250
      %s253 = sphi 0, %s252
      %s267 = sphi 0, %s253
    $region4: #{tpu_custom_call.1} parent=1 // loop_header_branch
      %30 = sbr.rel (%p28) target = $region8
    $region5: #{tpu_custom_call.1} parent=1 // loop_body
      %s32 = ssub.s32 %s27, 1
      %s33 = ssub.s32 %s27, 2
      %s34 = sadd.s32 %s27, 1
      %s36 = sadd.s32 %s35, 1
      %p39 = scmp.eq.s32.totalorder %s27, 3
      %p40 = scmp.ne.s32.totalorder %s35, %s37
      %p41 = scmp.eq.s32.totalorder %s27, 0
      %p42 = por %p40, %p41
      %p43 = scmp.ne.s32.totalorder %s35, %s37
      %p44 = scmp.eq.s32.totalorder %s32, 3
      %p45 = por %p43, %p44
      %p46 = scmp.ne.s32.totalorder %s37, %s38
      %p47 = scmp.eq.s32.totalorder %s32, 0
      %p48 = por %p46, %p47
      %p49 = scmp.ne.s32.totalorder %s37, %s38
      %p50 = scmp.eq.s32.totalorder %s33, 3
      %p51 = por %p49, %p50
      %p53 = scmp.ne.s32.totalorder %s38, %s52
      %p54 = scmp.eq.s32.totalorder %s33, 0
      %p55 = por %p53, %p54
      %s56 = ssub.s32 %s27, %s34
      %p57 = scmp.eq.s32.totalorder %s56, 0
      %s59 = sadd.s32 %s58, 1
      %s60 = scalar_select %p57, %s58, %s59
      %p63 = pneg %p57
      %p64 = scmp.eq.s32.totalorder %s27, 3
      %p65 = por %p63, %p64
      %p66 = scmp.ne.s32.totalorder %s58, %s61
      %p67 = scmp.eq.s32.totalorder %s27, 0
      %p68 = por %p66, %p67
      %p69 = scmp.ne.s32.totalorder %s58, %s61
      %p70 = scmp.eq.s32.totalorder %s32, 3
      %p71 = por %p69, %p70
      %p72 = scmp.ne.s32.totalorder %s61, %s62
      %p73 = scmp.eq.s32.totalorder %s32, 0
      %p74 = por %p72, %p73
      %p75 = scmp.ne.s32.totalorder %s61, %s62
      %p76 = scmp.eq.s32.totalorder %s33, 3
      %p77 = por %p75, %p76
      %p79 = scmp.ne.s32.totalorder %s62, %s78
      %p80 = scmp.eq.s32.totalorder %s33, 0
      %p81 = por %p79, %p80
      %s83 = sadd.s32 %s82, 1
      %p86 = scmp.eq.s32.totalorder %s27, 3
      %p87 = scmp.ne.s32.totalorder %s82, %s84
      %p88 = scmp.eq.s32.totalorder %s27, 0
      %p89 = por %p87, %p88
      %p90 = scmp.ne.s32.totalorder %s82, %s84
      %p91 = scmp.eq.s32.totalorder %s32, 3
      %p92 = por %p90, %p91
      %p93 = scmp.ne.s32.totalorder %s84, %s85
      %p94 = scmp.eq.s32.totalorder %s32, 0
      %p95 = por %p93, %p94
      %p96 = scmp.ne.s32.totalorder %s84, %s85
      %p97 = scmp.eq.s32.totalorder %s33, 3
      %p98 = por %p96, %p97
      %p100 = scmp.ne.s32.totalorder %s85, %s99
      %p101 = scmp.eq.s32.totalorder %s33, 0
      %p102 = por %p100, %p101
      %s104 = sadd.s32 %s103, 1
      %p107 = scmp.eq.s32.totalorder %s27, 3
      %p108 = scmp.ne.s32.totalorder %s103, %s105
      %p109 = scmp.eq.s32.totalorder %s27, 0
      %p110 = por %p108, %p109
      %p111 = scmp.ne.s32.totalorder %s103, %s105
      %p112 = scmp.eq.s32.totalorder %s32, 3
      %p113 = por %p111, %p112
      %p114 = scmp.ne.s32.totalorder %s105, %s106
      %p115 = scmp.eq.s32.totalorder %s32, 0
      %p116 = por %p114, %p115
      %p117 = scmp.ne.s32.totalorder %s105, %s106
      %p118 = scmp.eq.s32.totalorder %s33, 3
      %p119 = por %p117, %p118
      %p121 = scmp.ne.s32.totalorder %s106, %s120
      %p122 = scmp.eq.s32.totalorder %s33, 0
      %p123 = por %p121, %p122
      %s125 = sadd.s32 %s124, 1
      %p128 = scmp.eq.s32.totalorder %s27, 3
      %p129 = scmp.ne.s32.totalorder %s124, %s126
      %p130 = scmp.eq.s32.totalorder %s27, 0
      %p131 = por %p129, %p130
      %p132 = scmp.ne.s32.totalorder %s124, %s126
      %p133 = scmp.eq.s32.totalorder %s32, 3
      %p134 = por %p132, %p133
      %p135 = scmp.ne.s32.totalorder %s126, %s127
      %p136 = scmp.eq.s32.totalorder %s32, 0
      %p137 = por %p135, %p136
      %p138 = scmp.ne.s32.totalorder %s126, %s127
      %p139 = scmp.eq.s32.totalorder %s33, 3
      %p140 = por %p138, %p139
      %p142 = scmp.ne.s32.totalorder %s127, %s141
      %p143 = scmp.eq.s32.totalorder %s33, 0
      %p144 = por %p142, %p143
      %s146 = sadd.s32 %s145, 1
      %p149 = scmp.eq.s32.totalorder %s27, 3
      %p150 = scmp.ne.s32.totalorder %s145, %s147
      %p151 = scmp.eq.s32.totalorder %s27, 0
      %p152 = por %p150, %p151
      %p153 = scmp.ne.s32.totalorder %s145, %s147
      %p154 = scmp.eq.s32.totalorder %s32, 3
      %p155 = por %p153, %p154
      %p156 = scmp.ne.s32.totalorder %s147, %s148
      %p157 = scmp.eq.s32.totalorder %s32, 0
      %p158 = por %p156, %p157
      %p159 = scmp.ne.s32.totalorder %s147, %s148
      %p160 = scmp.eq.s32.totalorder %s33, 3
      %p161 = por %p159, %p160
      %p163 = scmp.ne.s32.totalorder %s148, %s162
      %p164 = scmp.eq.s32.totalorder %s33, 0
      %p165 = por %p163, %p164
      %s167 = sadd.s32 %s166, 1
      %p170 = scmp.eq.s32.totalorder %s27, 3
      %p171 = scmp.ne.s32.totalorder %s166, %s168
      %p172 = scmp.eq.s32.totalorder %s27, 0
      %p173 = por %p171, %p172
      %p174 = scmp.ne.s32.totalorder %s166, %s168
      %p175 = scmp.eq.s32.totalorder %s32, 3
      %p176 = por %p174, %p175
      %p177 = scmp.ne.s32.totalorder %s168, %s169
      %p178 = scmp.eq.s32.totalorder %s32, 0
      %p179 = por %p177, %p178
      %p180 = scmp.ne.s32.totalorder %s168, %s169
      %p181 = scmp.eq.s32.totalorder %s33, 3
      %p182 = por %p180, %p181
      %p184 = scmp.ne.s32.totalorder %s169, %s183
      %p185 = scmp.eq.s32.totalorder %s33, 0
      %p186 = por %p184, %p185
      %s188 = sadd.s32 %s187, 1
      %p191 = scmp.eq.s32.totalorder %s27, 3
      %p192 = scmp.ne.s32.totalorder %s187, %s189
      %p193 = scmp.eq.s32.totalorder %s27, 0
      %p194 = por %p192, %p193
      %p195 = scmp.ne.s32.totalorder %s187, %s189
      %p196 = scmp.eq.s32.totalorder %s32, 3
      %p197 = por %p195, %p196
      %p198 = scmp.ne.s32.totalorder %s189, %s190
      %p199 = scmp.eq.s32.totalorder %s32, 0
      %p200 = por %p198, %p199
      %p201 = scmp.ne.s32.totalorder %s189, %s190
      %p202 = scmp.eq.s32.totalorder %s33, 3
      %p203 = por %p201, %p202
      %p205 = scmp.ne.s32.totalorder %s190, %s204
      %p206 = scmp.eq.s32.totalorder %s33, 0
      %p207 = por %p205, %p206
      %s209 = sadd.s32 %s208, 1
      %p212 = scmp.eq.s32.totalorder %s27, 3
      %p213 = scmp.ne.s32.totalorder %s208, %s210
      %p214 = scmp.eq.s32.totalorder %s27, 0
      %p215 = por %p213, %p214
      %p216 = scmp.ne.s32.totalorder %s208, %s210
      %p217 = scmp.eq.s32.totalorder %s32, 3
      %p218 = por %p216, %p217
      %p219 = scmp.ne.s32.totalorder %s210, %s211
      %p220 = scmp.eq.s32.totalorder %s32, 0
      %p221 = por %p219, %p220
      %p222 = scmp.ne.s32.totalorder %s210, %s211
      %p223 = scmp.eq.s32.totalorder %s33, 3
      %p224 = por %p222, %p223
      %p226 = scmp.ne.s32.totalorder %s211, %s225
      %p227 = scmp.eq.s32.totalorder %s33, 0
      %p228 = por %p226, %p227
      %s230 = sadd.s32 %s229, 1
      %p233 = scmp.eq.s32.totalorder %s27, 3
      %p234 = scmp.ne.s32.totalorder %s229, %s231
      %p235 = scmp.eq.s32.totalorder %s27, 0
      %p236 = por %p234, %p235
      %p237 = scmp.ne.s32.totalorder %s229, %s231
      %p238 = scmp.eq.s32.totalorder %s32, 3
      %p239 = por %p237, %p238
      %p240 = scmp.ne.s32.totalorder %s231, %s232
      %p241 = scmp.eq.s32.totalorder %s32, 0
      %p242 = por %p240, %p241
      %p243 = scmp.ne.s32.totalorder %s231, %s232
      %p244 = scmp.eq.s32.totalorder %s33, 3
      %p245 = por %p243, %p244
      %p247 = scmp.ne.s32.totalorder %s232, %s246
      %p248 = scmp.eq.s32.totalorder %s33, 0
      %p249 = por %p247, %p248
      %s251 = sadd.s32 %s250, 1
      %p254 = scmp.eq.s32.totalorder %s27, 3
      %p255 = scmp.ne.s32.totalorder %s250, %s252
      %p256 = scmp.eq.s32.totalorder %s27, 0
      %p257 = por %p255, %p256
      %p258 = scmp.ne.s32.totalorder %s250, %s252
      %p259 = scmp.eq.s32.totalorder %s32, 3
      %p260 = por %p258, %p259
      %p261 = scmp.ne.s32.totalorder %s252, %s253
      %p262 = scmp.eq.s32.totalorder %s32, 0
      %p263 = por %p261, %p262
      %p264 = scmp.ne.s32.totalorder %s252, %s253
      %p265 = scmp.eq.s32.totalorder %s33, 3
      %p266 = por %p264, %p265
      %p268 = scmp.ne.s32.totalorder %s253, %s267
      %p269 = scmp.eq.s32.totalorder %s33, 0
      %p270 = por %p268, %p269
      %p271 = scmp.le.s32.totalorder 1, %s27
      %p272 = scmp.lt.s32.totalorder %s27, 5
      %p273 = pnand %p271, %p272
      %p274 = pneg %p273
      // Predicated region
      $region9: #{tpu_custom_call.1} parent=5 // pred_check
        _
      $region10: #{tpu_custom_call.1} parent=5 // pred_check_branch
        %276 = sbr.rel (%p273) target = $region12
      $region11: #{tpu_custom_call.1} parent=5 // pred_region
        %s277 = ssub.s32 %s27, 1
        // Predicated region
        $region13: #{tpu_custom_call.1} parent=11 // pred_check
          %p278 = pneg %p48
        $region14: #{tpu_custom_call.1} parent=11 // pred_check_branch
          %280 = sbr.rel (%p278) target = $region16
        $region15: #{tpu_custom_call.1} parent=11 // pred_region
          %s282 = ssub.s32 32, 32
          %283 = vsyncadd [#allocation6], %s282
          %s285 = sshll.u32 [#allocation5], 4
          %s286 = int_to_ptr.vmem [resolvable:$true] %s285
          %288 = dma.hbm_to_vmem [thread:$0]  %s0, 32, %s286, [#allocation6]
        $region16: #{tpu_custom_call.1} parent=11 // pred_fallthru
          _
        // Predicated region
        $region17: #{tpu_custom_call.1} parent=11 // pred_check
          %p289 = pneg %p95
        $region18: #{tpu_custom_call.1} parent=11 // pred_check_branch
          %291 = sbr.rel (%p289) target = $region20
        $region19: #{tpu_custom_call.1} parent=11 // pred_region
          %s293 = ssub.s32 128, 128
          %294 = vsyncadd [#allocation9], %s293
          %s296 = sshll.u32 [#allocation10], 4
          %s297 = int_to_ptr.vmem [resolvable:$true] %s296
          %299 = dma.hbm_to_vmem [thread:$0]  %s3, 128, %s297, [#allocation9]
        $region20: #{tpu_custom_call.1} parent=11 // pred_fallthru
          _
        // Predicated region
        $region21: #{tpu_custom_call.1} parent=11 // pred_check
          %p300 = pneg %p116
        $region22: #{tpu_custom_call.1} parent=11 // pred_check_branch
          %302 = sbr.rel (%p300) target = $region24
        $region23: #{tpu_custom_call.1} parent=11 // pred_region
          %s304 = ssub.s32 128, 128
          %305 = vsyncadd [#allocation12], %s304
          %s307 = sshll.u32 [#allocation11], 4
          %s308 = int_to_ptr.vmem [resolvable:$true] %s307
          %310 = dma.hbm_to_vmem [thread:$0]  %s4, 128, %s308, [#allocation12]
        $region24: #{tpu_custom_call.1} parent=11 // pred_fallthru
          _
        // Predicated region
        $region25: #{tpu_custom_call.1} parent=11 // pred_check
          %p311 = pneg %p137
        $region26: #{tpu_custom_call.1} parent=11 // pred_check_branch
          %313 = sbr.rel (%p311) target = $region28
        $region27: #{tpu_custom_call.1} parent=11 // pred_region
          %s315 = ssub.s32 128, 128
          %316 = vsyncadd [#allocation12], %s315
          %s318 = sshll.u32 [#allocation13], 4
          %s319 = int_to_ptr.vmem [resolvable:$true] %s318
          %321 = dma.hbm_to_vmem [thread:$0]  %s5, 128, %s319, [#allocation12]
        $region28: #{tpu_custom_call.1} parent=11 // pred_fallthru
          _
        // Predicated region
        $region29: #{tpu_custom_call.1} parent=11 // pred_check
          %p322 = pneg %p158
        $region30: #{tpu_custom_call.1} parent=11 // pred_check_branch
          %324 = sbr.rel (%p322) target = $region32
        $region31: #{tpu_custom_call.1} parent=11 // pred_region
          %s326 = ssub.s32 16384, 16384
          %327 = vsyncadd [#allocation15], %s326
          %s328 = sshll.u32 [#allocation14], 4
          %s329 = int_to_ptr.vmem [resolvable:$true] %s328
          %334 = dma.hbm_to_vmem [thread:$0]  %s6, 16384, %s329, [#allocation15], 128, 128, 8
        $region32: #{tpu_custom_call.1} parent=11 // pred_fallthru
          _
        // Predicated region
        $region33: #{tpu_custom_call.1} parent=11 // pred_check
          %p335 = pneg %p179
        $region34: #{tpu_custom_call.1} parent=11 // pred_check_branch
          %337 = sbr.rel (%p335) target = $region36
        $region35: #{tpu_custom_call.1} parent=11 // pred_region
          %s339 = ssub.s32 16, 16
          %340 = vsyncadd [#allocation15], %s339
          %s342 = sshll.u32 [#allocation16], 4
          %s343 = int_to_ptr.vmem [resolvable:$true] %s342
          %345 = dma.hbm_to_vmem [thread:$0]  %s7, 16, %s343, [#allocation15]
        $region36: #{tpu_custom_call.1} parent=11 // pred_fallthru
          _
        // Predicated region
        $region37: #{tpu_custom_call.1} parent=11 // pred_check
          %p346 = pneg %p200
        $region38: #{tpu_custom_call.1} parent=11 // pred_check_branch
          %348 = sbr.rel (%p346) target = $region40
        $region39: #{tpu_custom_call.1} parent=11 // pred_region
          %s350 = ssub.s32 32, 32
          %351 = vsyncadd [#allocation18], %s350
          %s353 = sshll.u32 [#allocation17], 4
          %s354 = int_to_ptr.vmem [resolvable:$true] %s353
          %356 = dma.hbm_to_vmem [thread:$0]  %s8, 32, %s354, [#allocation18]
        $region40: #{tpu_custom_call.1} parent=11 // pred_fallthru
          _
      $region12: #{tpu_custom_call.1} parent=5 // pred_fallthru
        _
      %p357 = scmp.lt.s32.totalorder %s27, 4
      // Predicated region
      $region41: #{tpu_custom_call.1} parent=5 // pred_check
        %p358 = pneg %p357
      $region42: #{tpu_custom_call.1} parent=5 // pred_check_branch
        %360 = sbr.rel (%p358) target = $region44
      $region43: #{tpu_custom_call.1} parent=5 // pred_region
        // Predicated region
        $region45: #{tpu_custom_call.1} parent=43 // pred_check
          %p361 = pneg %p68
        $region46: #{tpu_custom_call.1} parent=43 // pred_check_branch
          %363 = sbr.rel (%p361) target = $region48
        $region47: #{tpu_custom_call.1} parent=43 // pred_region
          %s364 = sand.u32 %s27, 1
          %s365 = scalar_lea.sflag [#allocation9], %s364
          %s366 = sand.u32 %s58, 1
          %s367 = smul.addr %s366, 1024
          %s368 = scalar_lea.vmem [#allocation8], %s367
          %s369 = smul.u32 32, %s27
          %s371 = ssub.s32 16384, 16384
          %372 = vsyncadd %s365, %s371
          %s373 = smul.addr %s369, 8
          %s374 = smul.addr %s373, 64
          %s375 = scalar_lea.hbm %s2, %s374
          %s376 = sshll.u32 %s368, 4
          %s377 = int_to_ptr.vmem [resolvable:$true] %s376
          %382 = dma.hbm_to_vmem [thread:$0]  %s375, 16384, %s377, %s365, 512, 512, 32
        $region48: #{tpu_custom_call.1} parent=43 // pred_fallthru
          _
      $region44: #{tpu_custom_call.1} parent=5 // pred_fallthru
        _
      %p383 = scmp.le.s32.totalorder 1, %s27
      %p384 = scmp.lt.s32.totalorder %s27, 5
      %p385 = pnand %p383, %p384
      %p386 = pneg %p385
      // Predicated region
      $region49: #{tpu_custom_call.1} parent=5 // pred_check
        _
      $region50: #{tpu_custom_call.1} parent=5 // pred_check_branch
        %388 = sbr.rel (%p385) target = $region52
      $region51: #{tpu_custom_call.1} parent=5 // pred_region
        %s389 = ssub.s32 %s27, 1
        // Predicated region
        $region53: #{tpu_custom_call.1} parent=51 // pred_check
          %p390 = pneg %p48
        $region54: #{tpu_custom_call.1} parent=51 // pred_check_branch
          %392 = sbr.rel (%p390) target = $region56
        $region55: #{tpu_custom_call.1} parent=51 // pred_region
          %393 = dma.done [#allocation6], 32
        $region56: #{tpu_custom_call.1} parent=51 // pred_fallthru
          _
        %s394 = sand.u32 %s32, 1
        %s395 = scalar_lea.sflag [#allocation9], %s394
        %s396 = sand.u32 %s61, 1
        %s397 = smul.addr %s396, 1024
        %s398 = scalar_lea.vmem [#allocation8], %s397
        // Predicated region
        $region57: #{tpu_custom_call.1} parent=51 // pred_check
          %p399 = pneg %p74
        $region58: #{tpu_custom_call.1} parent=51 // pred_check_branch
          %401 = sbr.rel (%p399) target = $region60
        $region59: #{tpu_custom_call.1} parent=51 // pred_region
          %402 = dma.done %s395, 16384
        $region60: #{tpu_custom_call.1} parent=51 // pred_fallthru
          _
        // Predicated region
        $region61: #{tpu_custom_call.1} parent=51 // pred_check
          %p403 = pneg %p95
        $region62: #{tpu_custom_call.1} parent=51 // pred_check_branch
          %405 = sbr.rel (%p403) target = $region64
        $region63: #{tpu_custom_call.1} parent=51 // pred_region
          %406 = dma.done [#allocation9], 128
        $region64: #{tpu_custom_call.1} parent=51 // pred_fallthru
          _
        // Predicated region
        $region65: #{tpu_custom_call.1} parent=51 // pred_check
          %p407 = pneg %p116
        $region66: #{tpu_custom_call.1} parent=51 // pred_check_branch
          %409 = sbr.rel (%p407) target = $region68
        $region67: #{tpu_custom_call.1} parent=51 // pred_region
          %410 = dma.done [#allocation12], 128
        $region68: #{tpu_custom_call.1} parent=51 // pred_fallthru
          _
        // Predicated region
        $region69: #{tpu_custom_call.1} parent=51 // pred_check
          %p411 = pneg %p137
        $region70: #{tpu_custom_call.1} parent=51 // pred_check_branch
          %413 = sbr.rel (%p411) target = $region72
        $region71: #{tpu_custom_call.1} parent=51 // pred_region
          %414 = dma.done [#allocation12], 128
        $region72: #{tpu_custom_call.1} parent=51 // pred_fallthru
          _
        // Predicated region
        $region73: #{tpu_custom_call.1} parent=51 // pred_check
          %p415 = pneg %p158
        $region74: #{tpu_custom_call.1} parent=51 // pred_check_branch
          %417 = sbr.rel (%p415) target = $region76
        $region75: #{tpu_custom_call.1} parent=51 // pred_region
          %418 = dma.done [#allocation15], 16384
        $region76: #{tpu_custom_call.1} parent=51 // pred_fallthru
          _
        // Predicated region
        $region77: #{tpu_custom_call.1} parent=51 // pred_check
          %p419 = pneg %p179
        $region78: #{tpu_custom_call.1} parent=51 // pred_check_branch
          %421 = sbr.rel (%p419) target = $region80
        $region79: #{tpu_custom_call.1} parent=51 // pred_region
          %422 = dma.done [#allocation15], 16
        $region80: #{tpu_custom_call.1} parent=51 // pred_fallthru
          _
        // Predicated region
        $region81: #{tpu_custom_call.1} parent=51 // pred_check
          %p423 = pneg %p200
        $region82: #{tpu_custom_call.1} parent=51 // pred_check_branch
          %425 = sbr.rel (%p423) target = $region84
        $region83: #{tpu_custom_call.1} parent=51 // pred_region
          %426 = dma.done [#allocation18], 32
        $region84: #{tpu_custom_call.1} parent=51 // pred_fallthru
          _
        %p427 = pneg %p48
        %p428 = pneg %p45
        %s429 = sand.u32 %s32, 1
        %s430 = scalar_lea.sflag [#allocation9], %s429
        %s431 = sand.u32 %s61, 1
        %s432 = smul.addr %s431, 1024
        %s433 = scalar_lea.vmem [#allocation8], %s432
        %p434 = pneg %p74
        %p435 = pneg %p71
        %p436 = pneg %p95
        %p437 = pneg %p92
        %p438 = pneg %p116
        %p439 = pneg %p113
        %p440 = pneg %p137
        %p441 = pneg %p134
        %p442 = pneg %p158
        %p443 = pneg %p155
        %p444 = pneg %p179
        %p445 = pneg %p176
        %p446 = pneg %p200
        %p447 = pneg %p197
        %p448 = pneg %p221
        %p449 = pneg %p218
        %p450 = pneg %p242
        %p451 = pneg %p239
        %p452 = pneg %p263
        %p453 = pneg %p260
        %s454 = smul.u32 32, %s32
        %p455 = scmp.eq.s32.totalorder %s32, 0
        // Predicated region
        $region85: #{tpu_custom_call.1} parent=51 // pred_check
          %p456 = pneg %p455
        $region86: #{tpu_custom_call.1} parent=51 // pred_check_branch
          %458 = sbr.rel (%p456) target = $region88
        $region87: #{tpu_custom_call.1} parent=51 // pred_region
          // Predicated region
          $region89: #{tpu_custom_call.1} parent=87 // pred_check
            _
          $region90: #{tpu_custom_call.1} parent=87 // pred_check_branch
            %460 = sbr.rel target = $region92
          $region91: #{tpu_custom_call.1} parent=87 // pred_region
            %461 = sst [smem:[#allocation25]] [#allocation24]
            %462 = sst [smem:[#allocation26]] [#allocation23]
          $region92: #{tpu_custom_call.1} parent=87 // pred_fallthru
            _
          %464 = shalt.err (0)
          %s466 = sshll.u32 [#allocation2], 4
          %s467 = int_to_ptr.vmem [resolvable:$true] %s466
          %469 = dma.hbm_to_vmem [thread:$0]  %s1, 256, %s467, [#allocation4]
          %s470 = smul.u32 2, 1
          %s471 = smul.u32 %s470, 8
          %s472 = sshll.u32 %s471, 4
          %473 = dma.done [#allocation4], %s472
          %474 = vst [vmem:[#allocation3] sm:$0xff] 0.0
          %475 = vst [vmem:[#allocation3 + $0x8] sm:$0xff] 0.0
        $region88: #{tpu_custom_call.1} parent=51 // pred_fallthru
          _
        %v476 = vld [vmem:[#allocation5] sm:$0x3]
        %s477 = smul.u32 %s32, 256
        %s478 = sshra.s32 %s477, 7
        %s479 = sand.u32 %s477, 127
        %s480 = smul.addr %s478, 2
        %s481 = scalar_lea.vmem [#allocation2], %s480
        %v482 = vld [vmem:[%s481] sm:$0xf]
        %484 = vset.pattern.permute.xlu0 2
        %485 = vperm.xlu0 %484, %v476
        %v486 = vpop.permute.xlu0 %485
        %v490 = vunpack.c.l.s4 1983009808
        %v491 = vunpack.c.0.s8 %v490
        %v492 = vlaneseq
        %v493 = vshrl.u32 %v492, 7
        %v494 = vsub.s32 %v491, %v493
        %v495 = vrot.slane %v482, %v494
        %v496 = vcombine.high %v495, %v495
        %v499 = vmul.f32 %v486, %v495
        %v500 = vmul.f32 %v486, %v496
        %501 = vset.pattern.permute.xlu0 0
        %502 = vperm.xlu0 %501, %v476
        %v503 = vpop.permute.xlu0 %502
        %v505 = vmul.f32 %v499, %v503
        %v506 = vmul.f32 %v500, %v503
        %507 = vset.pattern.permute.xlu0 1
        %508 = vperm.xlu0 %507, %v476
        %v509 = vpop.permute.xlu0 %508
        %v511 = vmul.f32 %v499, %v509
        %v512 = vmul.f32 %v500, %v509
        %v513 = vmax.f32 %v505, %v511
        %v514 = vmax.f32 %v506, %v512
        %v515 = vlaneseq
        %v516 = vshrl.u32 %v515, 7
        %v517 = vsub.s32 0, %v516
        %v518 = vrot.slane %v499, %v517
        %520 = vbcast.lane.b32.xlu0 %v518, 256
        %v521 = vpop.permute.xlu0 %520
        %s523 = sor.u32 256, 8
        %524 = vbcast.lane.b32.xlu0 %v518, %s523
        %v525 = vpop.permute.xlu0 %524
        %s527 = sor.u32 256, 16
        %528 = vbcast.lane.b32.xlu0 %v518, %s527
        %v529 = vpop.permute.xlu0 %528
        %s531 = sor.u32 256, 24
        %532 = vbcast.lane.b32.xlu0 %v518, %s531
        %v533 = vpop.permute.xlu0 %532
        %v534 = vlaneseq
        %v535 = vshrl.u32 %v534, 7
        %v536 = vsub.s32 1, %v535
        %v537 = vrot.slane %v499, %v536
        %539 = vbcast.lane.b32.xlu0 %v537, 256
        %v540 = vpop.permute.xlu0 %539
        %s542 = sor.u32 256, 8
        %543 = vbcast.lane.b32.xlu0 %v537, %s542
        %v544 = vpop.permute.xlu0 %543
        %s546 = sor.u32 256, 16
        %547 = vbcast.lane.b32.xlu0 %v537, %s546
        %v548 = vpop.permute.xlu0 %547
        %s550 = sor.u32 256, 24
        %551 = vbcast.lane.b32.xlu0 %v537, %s550
        %v552 = vpop.permute.xlu0 %551
        %v553 = vlaneseq
        %v554 = vshrl.u32 %v553, 7
        %v555 = vsub.s32 0, %v554
        %v556 = vrot.slane %v513, %v555
        %558 = vbcast.lane.b32.xlu0 %v556, 256
        %v559 = vpop.permute.xlu0 %558
        %s561 = sor.u32 256, 8
        %562 = vbcast.lane.b32.xlu0 %v556, %s561
        %v563 = vpop.permute.xlu0 %562
        %s565 = sor.u32 256, 16
        %566 = vbcast.lane.b32.xlu0 %v556, %s565
        %v567 = vpop.permute.xlu0 %566
        %s569 = sor.u32 256, 24
        %570 = vbcast.lane.b32.xlu0 %v556, %s569
        %v571 = vpop.permute.xlu0 %570
        %v572 = vlaneseq
        %v573 = vshrl.u32 %v572, 7
        %v574 = vsub.s32 1, %v573
        %v575 = vrot.slane %v513, %v574
        %577 = vbcast.lane.b32.xlu0 %v575, 256
        %v578 = vpop.permute.xlu0 %577
        %s580 = sor.u32 256, 8
        %581 = vbcast.lane.b32.xlu0 %v575, %s580
        %v582 = vpop.permute.xlu0 %581
        %s584 = sor.u32 256, 16
        %585 = vbcast.lane.b32.xlu0 %v575, %s584
        %v586 = vpop.permute.xlu0 %585
        %s588 = sor.u32 256, 24
        %589 = vbcast.lane.b32.xlu0 %v575, %s588
        %v590 = vpop.permute.xlu0 %589
        loop: start=0, step=1, limit=7
        $region93: #{tpu_custom_call.1} parent=51 // loop_pre_header
          _
        $region94: #{tpu_custom_call.1} parent=51 // loop_header
          %s592 = sphi 0, %s596
          %p593 = scmp.ge.s32.totalorder %s592, 7
          %v597 = vphi 0.0, %v686
          %v598 = vphi 0.0, %v687
          %v599 = vphi 0.0, %v688
          %v600 = vphi 0.0, %v689
          %v601 = vphi 0.0, %v690
          %v602 = vphi 0.0, %v691
          %v603 = vphi 0.0, %v692
          %v604 = vphi 0.0, %v693
          %v605 = vphi 0.0, %v694
          %v606 = vphi 0.0, %v695
          %v607 = vphi 0.0, %v696
          %v608 = vphi 0.0, %v697
          %v609 = vphi 0.0, %v698
          %v610 = vphi 0.0, %v699
          %v611 = vphi 0.0, %v700
          %v612 = vphi 0.0, %v701
        $region95: #{tpu_custom_call.1} parent=51 // loop_header_branch
          %595 = sbr.rel (%p593) target = $region99
        $region96: #{tpu_custom_call.1} parent=51 // loop_body
          %s613 = smul.u32 %s592, 128
          %s614 = sshra.s32 %s613, 7
          %s615 = sand.u32 %s613, 127
          %s616 = smul.addr %s614, 2
          %s617 = scalar_lea.vmem [#allocation2], %s616
          %v618 = vld [vmem:[%s617] sm:$0x3]
          %v621 = vunpack.c.l.s4 1966171168
          %v622 = vunpack.c.0.s8 %v621
          %v623 = vlaneseq
          %v624 = vshrl.u32 %v623, 7
          %v625 = vsub.s32 %v622, %v624
          %v626 = vrot.slane %v618, %v625
          %v627 = vcombine.high %v626, %v626
          %v628 = vlaneseq
          %v629 = vshrl.u32 %v628, 7
          %v630 = vsub.s32 0, %v629
          %v631 = vrot.slane %v626, %v630
          %v632 = vlaneseq
          %v633 = vshrl.u32 %v632, 7
          %v634 = vsub.s32 0, %v633
          %v635 = vrot.slane %v627, %v634
          %v638 = vmul.f32 %v521, %v631
          %v639 = vmul.f32 %v525, %v631
          %v640 = vmul.f32 %v529, %v631
          %v641 = vmul.f32 %v533, %v631
          %v642 = vmul.f32 %v540, %v635
          %v643 = vmul.f32 %v544, %v635
          %v644 = vmul.f32 %v548, %v635
          %v645 = vmul.f32 %v552, %v635
          %v646 = vsub.f32 %v638, %v559
          %v647 = vsub.f32 %v639, %v563
          %v648 = vsub.f32 %v640, %v567
          %v649 = vsub.f32 %v641, %v571
          %v650 = vsub.f32 %v642, %v578
          %v651 = vsub.f32 %v643, %v582
          %v652 = vsub.f32 %v644, %v586
          %v653 = vsub.f32 %v645, %v590
          %v654 = vpack.c.bf16 %v647, %v646
          %v655 = vpack.c.bf16 %v649, %v648
          %v656 = vpack.c.bf16 %v651, %v650
          %v657 = vpack.c.bf16 %v653, %v652
          %v659 = vmul.bf16 %v654, 1069105081
          %v660 = vpow.bf16.pop %v659
          %v662 = vmul.bf16 %v655, 1069105081
          %v663 = vpow.bf16.pop %v662
          %v665 = vmul.bf16 %v656, 1069105081
          %v666 = vpow.bf16.pop %v665
          %v668 = vmul.bf16 %v657, 1069105081
          %v669 = vpow.bf16.pop %v668
          %v670 = vunpack.c.l.bf16 %v660
          %v671 = vunpack.c.h.bf16 %v660
          %v672 = vunpack.c.l.bf16 %v663
          %v673 = vunpack.c.h.bf16 %v663
          %v674 = vunpack.c.l.bf16 %v666
          %v675 = vunpack.c.h.bf16 %v666
          %v676 = vunpack.c.l.bf16 %v669
          %v677 = vunpack.c.h.bf16 %v669
          %v678 = vmul.f32 %v670, %v631
          %v679 = vmul.f32 %v671, %v631
          %v680 = vmul.f32 %v672, %v631
          %v681 = vmul.f32 %v673, %v631
          %v682 = vmul.f32 %v674, %v635
          %v683 = vmul.f32 %v675, %v635
          %v684 = vmul.f32 %v676, %v635
          %v685 = vmul.f32 %v677, %v635
          %v686 = vadd.f32 %v597, %v678
          %v687 = vadd.f32 %v598, %v679
          %v688 = vadd.f32 %v599, %v680
          %v689 = vadd.f32 %v600, %v681
          %v690 = vadd.f32 %v601, %v682
          %v691 = vadd.f32 %v602, %v683
          %v692 = vadd.f32 %v603, %v684
          %v693 = vadd.f32 %v604, %v685
          %v694 = vadd.f32 %v605, %v670
          %v695 = vadd.f32 %v606, %v671
          %v696 = vadd.f32 %v607, %v672
          %v697 = vadd.f32 %v608, %v673
          %v698 = vadd.f32 %v609, %v674
          %v699 = vadd.f32 %v610, %v675
          %v700 = vadd.f32 %v611, %v676
          %v701 = vadd.f32 %v612, %v677
        $region97: #{tpu_custom_call.1} parent=51 // loop_footer
          %s596 = sadd.s32 1, %s592
        $region98: #{tpu_custom_call.1} parent=51 // loop_footer_branch
          %591 = sbr.rel target = $region94
        $region99: #{tpu_custom_call.1} parent=51 // loop_exit
          _
        %v702 = vlaneseq
        %v703 = vand.u32 %v702, 127
        %vm704 = vcmp.lt.s32.totalorder %v703, 104
        %v705 = vld [vmem:[#allocation2 + $0xe] sm:$0x3]
        %v708 = vunpack.c.l.s4 1966171168
        %v709 = vunpack.c.0.s8 %v708
        %v710 = vlaneseq
        %v711 = vshrl.u32 %v710, 7
        %v712 = vsub.s32 %v709, %v711
        %v713 = vrot.slane %v705, %v712
        %v714 = vcombine.high %v713, %v713
        %v715 = vlaneseq
        %v716 = vshrl.u32 %v715, 7
        %v717 = vsub.s32 0, %v716
        %v718 = vrot.slane %v713, %v717
        %v719 = vlaneseq
        %v720 = vshrl.u32 %v719, 7
        %v721 = vsub.s32 0, %v720
        %v722 = vrot.slane %v714, %v721
        %v725 = vmul.f32 %v521, %v718
        %v726 = vmul.f32 %v525, %v718
        %v727 = vmul.f32 %v529, %v718
        %v728 = vmul.f32 %v533, %v718
        %v729 = vmul.f32 %v540, %v722
        %v730 = vmul.f32 %v544, %v722
        %v731 = vmul.f32 %v548, %v722
        %v732 = vmul.f32 %v552, %v722
        %v733 = vsub.f32 %v725, %v559
        %v734 = vsub.f32 %v726, %v563
        %v735 = vsub.f32 %v727, %v567
        %v736 = vsub.f32 %v728, %v571
        %v737 = vsub.f32 %v729, %v578
        %v738 = vsub.f32 %v730, %v582
        %v739 = vsub.f32 %v731, %v586
        %v740 = vsub.f32 %v732, %v590
        %v741 = vpack.c.bf16 %v734, %v733
        %v742 = vpack.c.bf16 %v736, %v735
        %v743 = vpack.c.bf16 %v738, %v737
        %v744 = vpack.c.bf16 %v740, %v739
        %v746 = vmul.bf16 %v741, 1069105081
        %v747 = vpow.bf16.pop %v746
        %v749 = vmul.bf16 %v742, 1069105081
        %v750 = vpow.bf16.pop %v749
        %v752 = vmul.bf16 %v743, 1069105081
        %v753 = vpow.bf16.pop %v752
        %v755 = vmul.bf16 %v744, 1069105081
        %v756 = vpow.bf16.pop %v755
        %v757 = vunpack.c.l.bf16 %v747
        %v758 = vunpack.c.h.bf16 %v747
        %v759 = vunpack.c.l.bf16 %v750
        %v760 = vunpack.c.h.bf16 %v750
        %v761 = vunpack.c.l.bf16 %v753
        %v762 = vunpack.c.h.bf16 %v753
        %v763 = vunpack.c.l.bf16 %v756
        %v764 = vunpack.c.h.bf16 %v756
        %v765 = vsel %vm704, 1, 0
        %vm766 = vcmp.eq.s32.totalorder %v765, 1
        %v767 = vsel %vm766, %v757, 0.0
        %v768 = vsel %vm766, %v758, 0.0
        %v769 = vsel %vm766, %v759, 0.0
        %v770 = vsel %vm766, %v760, 0.0
        %v771 = vsel %vm766, %v761, 0.0
        %v772 = vsel %vm766, %v762, 0.0
        %v773 = vsel %vm766, %v763, 0.0
        %v774 = vsel %vm766, %v764, 0.0
        %v775 = vmul.f32 %v767, %v718
        %v776 = vmul.f32 %v768, %v718
        %v777 = vmul.f32 %v769, %v718
        %v778 = vmul.f32 %v770, %v718
        %v779 = vmul.f32 %v771, %v722
        %v780 = vmul.f32 %v772, %v722
        %v781 = vmul.f32 %v773, %v722
        %v782 = vmul.f32 %v774, %v722
        %v783 = vadd.f32 %v597, %v775
        %v784 = vadd.f32 %v598, %v776
        %v785 = vadd.f32 %v599, %v777
        %v786 = vadd.f32 %v600, %v778
        %v787 = vadd.f32 %v601, %v779
        %v788 = vadd.f32 %v602, %v780
        %v789 = vadd.f32 %v603, %v781
        %v790 = vadd.f32 %v604, %v782
        %v791 = vadd.f32 %v605, %v767
        %v792 = vadd.f32 %v606, %v768
        %v793 = vadd.f32 %v607, %v769
        %v794 = vadd.f32 %v608, %v770
        %v795 = vadd.f32 %v609, %v771
        %v796 = vadd.f32 %v610, %v772
        %v797 = vadd.f32 %v611, %v773
        %v798 = vadd.f32 %v612, %v774
        %799 = vadd.xlane.f32.xlu0 %v783
        %v800 = vpop.xlane.xlu0 %799
        %801 = vadd.xlane.f32.xlu0 %v784
        %v802 = vpop.xlane.xlu0 %801
        %803 = vadd.xlane.f32.xlu0 %v785
        %v804 = vpop.xlane.xlu0 %803
        %805 = vadd.xlane.f32.xlu0 %v786
        %v806 = vpop.xlane.xlu0 %805
        %807 = vadd.xlane.f32.xlu0 %v787
        %v808 = vpop.xlane.xlu0 %807
        %809 = vadd.xlane.f32.xlu0 %v788
        %v810 = vpop.xlane.xlu0 %809
        %811 = vadd.xlane.f32.xlu0 %v789
        %v812 = vpop.xlane.xlu0 %811
        %813 = vadd.xlane.f32.xlu0 %v790
        %v814 = vpop.xlane.xlu0 %813
        %815 = vadd.xlane.f32.xlu0 %v791
        %v816 = vpop.xlane.xlu0 %815
        %817 = vadd.xlane.f32.xlu0 %v792
        %v818 = vpop.xlane.xlu0 %817
        %819 = vadd.xlane.f32.xlu0 %v793
        %v820 = vpop.xlane.xlu0 %819
        %821 = vadd.xlane.f32.xlu0 %v794
        %v822 = vpop.xlane.xlu0 %821
        %823 = vadd.xlane.f32.xlu0 %v795
        %v824 = vpop.xlane.xlu0 %823
        %825 = vadd.xlane.f32.xlu0 %v796
        %v826 = vpop.xlane.xlu0 %825
        %827 = vadd.xlane.f32.xlu0 %v797
        %v828 = vpop.xlane.xlu0 %827
        %829 = vadd.xlane.f32.xlu0 %v798
        %v830 = vpop.xlane.xlu0 %829
        %v831 = vrcp.pop %v816
        %v832 = vmul.f32 %v800, %v831
        %v833 = vrcp.pop %v818
        %v834 = vmul.f32 %v802, %v833
        %v835 = vrcp.pop %v820
        %v836 = vmul.f32 %v804, %v835
        %v837 = vrcp.pop %v822
        %v838 = vmul.f32 %v806, %v837
        %v839 = vrcp.pop %v824
        %v840 = vmul.f32 %v808, %v839
        %v841 = vrcp.pop %v826
        %v842 = vmul.f32 %v810, %v841
        %v843 = vrcp.pop %v828
        %v844 = vmul.f32 %v812, %v843
        %v845 = vrcp.pop %v830
        %v846 = vmul.f32 %v814, %v845
        %s848 = sor.u32 256, 32
        %849 = vbcast.lane.b32.xlu0 %v518, %s848
        %v850 = vpop.permute.xlu0 %849
        %s852 = sor.u32 256, 40
        %853 = vbcast.lane.b32.xlu0 %v518, %s852
        %v854 = vpop.permute.xlu0 %853
        %s856 = sor.u32 256, 48
        %857 = vbcast.lane.b32.xlu0 %v518, %s856
        %v858 = vpop.permute.xlu0 %857
        %s860 = sor.u32 256, 56
        %861 = vbcast.lane.b32.xlu0 %v518, %s860
        %v862 = vpop.permute.xlu0 %861
        %s864 = sor.u32 256, 32
        %865 = vbcast.lane.b32.xlu0 %v537, %s864
        %v866 = vpop.permute.xlu0 %865
        %s868 = sor.u32 256, 40
        %869 = vbcast.lane.b32.xlu0 %v537, %s868
        %v870 = vpop.permute.xlu0 %869
        %s872 = sor.u32 256, 48
        %873 = vbcast.lane.b32.xlu0 %v537, %s872
        %v874 = vpop.permute.xlu0 %873
        %s876 = sor.u32 256, 56
        %877 = vbcast.lane.b32.xlu0 %v537, %s876
        %v878 = vpop.permute.xlu0 %877
        %s880 = sor.u32 256, 32
        %881 = vbcast.lane.b32.xlu0 %v556, %s880
        %v882 = vpop.permute.xlu0 %881
        %s884 = sor.u32 256, 40
        %885 = vbcast.lane.b32.xlu0 %v556, %s884
        %v886 = vpop.permute.xlu0 %885
        %s888 = sor.u32 256, 48
        %889 = vbcast.lane.b32.xlu0 %v556, %s888
        %v890 = vpop.permute.xlu0 %889
        %s892 = sor.u32 256, 56
        %893 = vbcast.lane.b32.xlu0 %v556, %s892
        %v894 = vpop.permute.xlu0 %893
        %s896 = sor.u32 256, 32
        %897 = vbcast.lane.b32.xlu0 %v575, %s896
        %v898 = vpop.permute.xlu0 %897
        %s900 = sor.u32 256, 40
        %901 = vbcast.lane.b32.xlu0 %v575, %s900
        %v902 = vpop.permute.xlu0 %901
        %s904 = sor.u32 256, 48
        %905 = vbcast.lane.b32.xlu0 %v575, %s904
        %v906 = vpop.permute.xlu0 %905
        %s908 = sor.u32 256, 56
        %909 = vbcast.lane.b32.xlu0 %v575, %s908
        %v910 = vpop.permute.xlu0 %909
        loop: start=0, step=1, limit=7
        $region100: #{tpu_custom_call.1} parent=51 // loop_pre_header
          _
        $region101: #{tpu_custom_call.1} parent=51 // loop_header
          %s912 = sphi 0, %s916
          %p913 = scmp.ge.s32.totalorder %s912, 7
          %v917 = vphi 0.0, %v1006
          %v918 = vphi 0.0, %v1007
          %v919 = vphi 0.0, %v1008
          %v920 = vphi 0.0, %v1009
          %v921 = vphi 0.0, %v1010
          %v922 = vphi 0.0, %v1011
          %v923 = vphi 0.0, %v1012
          %v924 = vphi 0.0, %v1013
          %v925 = vphi 0.0, %v1014
          %v926 = vphi 0.0, %v1015
          %v927 = vphi 0.0, %v1016
          %v928 = vphi 0.0, %v1017
          %v929 = vphi 0.0, %v1018
          %v930 = vphi 0.0, %v1019
          %v931 = vphi 0.0, %v1020
          %v932 = vphi 0.0, %v1021
        $region102: #{tpu_custom_call.1} parent=51 // loop_header_branch
          %915 = sbr.rel (%p913) target = $region106
        $region103: #{tpu_custom_call.1} parent=51 // loop_body
          %s933 = smul.u32 %s912, 128
          %s934 = sshra.s32 %s933, 7
          %s935 = sand.u32 %s933, 127
          %s936 = smul.addr %s934, 2
          %s937 = scalar_lea.vmem [#allocation2], %s936
          %v938 = vld [vmem:[%s937] sm:$0x3]
          %v941 = vunpack.c.l.s4 1966171168
          %v942 = vunpack.c.0.s8 %v941
          %v943 = vlaneseq
          %v944 = vshrl.u32 %v943, 7
          %v945 = vsub.s32 %v942, %v944
          %v946 = vrot.slane %v938, %v945
          %v947 = vcombine.high %v946, %v946
          %v948 = vlaneseq
          %v949 = vshrl.u32 %v948, 7
          %v950 = vsub.s32 0, %v949
          %v951 = vrot.slane %v946, %v950
          %v952 = vlaneseq
          %v953 = vshrl.u32 %v952, 7
          %v954 = vsub.s32 0, %v953
          %v955 = vrot.slane %v947, %v954
          %v958 = vmul.f32 %v850, %v951
          %v959 = vmul.f32 %v854, %v951
          %v960 = vmul.f32 %v858, %v951
          %v961 = vmul.f32 %v862, %v951
          %v962 = vmul.f32 %v866, %v955
          %v963 = vmul.f32 %v870, %v955
          %v964 = vmul.f32 %v874, %v955
          %v965 = vmul.f32 %v878, %v955
          %v966 = vsub.f32 %v958, %v882
          %v967 = vsub.f32 %v959, %v886
          %v968 = vsub.f32 %v960, %v890
          %v969 = vsub.f32 %v961, %v894
          %v970 = vsub.f32 %v962, %v898
          %v971 = vsub.f32 %v963, %v902
          %v972 = vsub.f32 %v964, %v906
          %v973 = vsub.f32 %v965, %v910
          %v974 = vpack.c.bf16 %v967, %v966
          %v975 = vpack.c.bf16 %v969, %v968
          %v976 = vpack.c.bf16 %v971, %v970
          %v977 = vpack.c.bf16 %v973, %v972
          %v979 = vmul.bf16 %v974, 1069105081
          %v980 = vpow.bf16.pop %v979
          %v982 = vmul.bf16 %v975, 1069105081
          %v983 = vpow.bf16.pop %v982
          %v985 = vmul.bf16 %v976, 1069105081
          %v986 = vpow.bf16.pop %v985
          %v988 = vmul.bf16 %v977, 1069105081
          %v989 = vpow.bf16.pop %v988
          %v990 = vunpack.c.l.bf16 %v980
          %v991 = vunpack.c.h.bf16 %v980
          %v992 = vunpack.c.l.bf16 %v983
          %v993 = vunpack.c.h.bf16 %v983
          %v994 = vunpack.c.l.bf16 %v986
          %v995 = vunpack.c.h.bf16 %v986
          %v996 = vunpack.c.l.bf16 %v989
          %v997 = vunpack.c.h.bf16 %v989
          %v998 = vmul.f32 %v990, %v951
          %v999 = vmul.f32 %v991, %v951
          %v1000 = vmul.f32 %v992, %v951
          %v1001 = vmul.f32 %v993, %v951
          %v1002 = vmul.f32 %v994, %v955
          %v1003 = vmul.f32 %v995, %v955
          %v1004 = vmul.f32 %v996, %v955
          %v1005 = vmul.f32 %v997, %v955
          %v1006 = vadd.f32 %v917, %v998
          %v1007 = vadd.f32 %v918, %v999
          %v1008 = vadd.f32 %v919, %v1000
          %v1009 = vadd.f32 %v920, %v1001
          %v1010 = vadd.f32 %v921, %v1002
          %v1011 = vadd.f32 %v922, %v1003
          %v1012 = vadd.f32 %v923, %v1004
          %v1013 = vadd.f32 %v924, %v1005
          %v1014 = vadd.f32 %v925, %v990
          %v1015 = vadd.f32 %v926, %v991
          %v1016 = vadd.f32 %v927, %v992
          %v1017 = vadd.f32 %v928, %v993
          %v1018 = vadd.f32 %v929, %v994
          %v1019 = vadd.f32 %v930, %v995
          %v1020 = vadd.f32 %v931, %v996
          %v1021 = vadd.f32 %v932, %v997
        $region104: #{tpu_custom_call.1} parent=51 // loop_footer
          %s916 = sadd.s32 1, %s912
        $region105: #{tpu_custom_call.1} parent=51 // loop_footer_branch
          %911 = sbr.rel target = $region101
        $region106: #{tpu_custom_call.1} parent=51 // loop_exit
          _
        %v1022 = vmul.f32 %v850, %v718
        %v1023 = vmul.f32 %v854, %v718
        %v1024 = vmul.f32 %v858, %v718
        %v1025 = vmul.f32 %v862, %v718
        %v1026 = vmul.f32 %v866, %v722
        %v1027 = vmul.f32 %v870, %v722
        %v1028 = vmul.f32 %v874, %v722
        %v1029 = vmul.f32 %v878, %v722
        %v1030 = vsub.f32 %v1022, %v882
        %v1031 = vsub.f32 %v1023, %v886
        %v1032 = vsub.f32 %v1024, %v890
        %v1033 = vsub.f32 %v1025, %v894
        %v1034 = vsub.f32 %v1026, %v898
        %v1035 = vsub.f32 %v1027, %v902
        %v1036 = vsub.f32 %v1028, %v906
        %v1037 = vsub.f32 %v1029, %v910
        %v1038 = vpack.c.bf16 %v1031, %v1030
        %v1039 = vpack.c.bf16 %v1033, %v1032
        %v1040 = vpack.c.bf16 %v1035, %v1034
        %v1041 = vpack.c.bf16 %v1037, %v1036
        %v1043 = vmul.bf16 %v1038, 1069105081
        %v1044 = vpow.bf16.pop %v1043
        %v1046 = vmul.bf16 %v1039, 1069105081
        %v1047 = vpow.bf16.pop %v1046
        %v1049 = vmul.bf16 %v1040, 1069105081
        %v1050 = vpow.bf16.pop %v1049
        %v1052 = vmul.bf16 %v1041, 1069105081
        %v1053 = vpow.bf16.pop %v1052
        %v1054 = vunpack.c.l.bf16 %v1044
        %v1055 = vunpack.c.h.bf16 %v1044
        %v1056 = vunpack.c.l.bf16 %v1047
        %v1057 = vunpack.c.h.bf16 %v1047
        %v1058 = vunpack.c.l.bf16 %v1050
        %v1059 = vunpack.c.h.bf16 %v1050
        %v1060 = vunpack.c.l.bf16 %v1053
        %v1061 = vunpack.c.h.bf16 %v1053
        %v1062 = vsel %vm766, %v1054, 0.0
        %v1063 = vsel %vm766, %v1055, 0.0
        %v1064 = vsel %vm766, %v1056, 0.0
        %v1065 = vsel %vm766, %v1057, 0.0
        %v1066 = vsel %vm766, %v1058, 0.0
        %v1067 = vsel %vm766, %v1059, 0.0
        %v1068 = vsel %vm766, %v1060, 0.0
        %v1069 = vsel %vm766, %v1061, 0.0
        %v1070 = vmul.f32 %v1062, %v718
        %v1071 = vmul.f32 %v1063, %v718
        %v1072 = vmul.f32 %v1064, %v718
        %v1073 = vmul.f32 %v1065, %v718
        %v1074 = vmul.f32 %v1066, %v722
        %v1075 = vmul.f32 %v1067, %v722
        %v1076 = vmul.f32 %v1068, %v722
        %v1077 = vmul.f32 %v1069, %v722
        %v1078 = vadd.f32 %v917, %v1070
        %v1079 = vadd.f32 %v918, %v1071
        %v1080 = vadd.f32 %v919, %v1072
        %v1081 = vadd.f32 %v920, %v1073
        %v1082 = vadd.f32 %v921, %v1074
        %v1083 = vadd.f32 %v922, %v1075
        %v1084 = vadd.f32 %v923, %v1076
        %v1085 = vadd.f32 %v924, %v1077
        %v1086 = vadd.f32 %v925, %v1062
        %v1087 = vadd.f32 %v926, %v1063
        %v1088 = vadd.f32 %v927, %v1064
        %v1089 = vadd.f32 %v928, %v1065
        %v1090 = vadd.f32 %v929, %v1066
        %v1091 = vadd.f32 %v930, %v1067
        %v1092 = vadd.f32 %v931, %v1068
        %v1093 = vadd.f32 %v932, %v1069
        %1094 = vadd.xlane.f32.xlu0 %v1078
        %v1095 = vpop.xlane.xlu0 %1094
        %1096 = vadd.xlane.f32.xlu0 %v1079
        %v1097 = vpop.xlane.xlu0 %1096
        %1098 = vadd.xlane.f32.xlu0 %v1080
        %v1099 = vpop.xlane.xlu0 %1098
        %1100 = vadd.xlane.f32.xlu0 %v1081
        %v1101 = vpop.xlane.xlu0 %1100
        %1102 = vadd.xlane.f32.xlu0 %v1082
        %v1103 = vpop.xlane.xlu0 %1102
        %1104 = vadd.xlane.f32.xlu0 %v1083
        %v1105 = vpop.xlane.xlu0 %1104
        %1106 = vadd.xlane.f32.xlu0 %v1084
        %v1107 = vpop.xlane.xlu0 %1106
        %1108 = vadd.xlane.f32.xlu0 %v1085
        %v1109 = vpop.xlane.xlu0 %1108
        %1110 = vadd.xlane.f32.xlu0 %v1086
        %v1111 = vpop.xlane.xlu0 %1110
        %1112 = vadd.xlane.f32.xlu0 %v1087
        %v1113 = vpop.xlane.xlu0 %1112
        %1114 = vadd.xlane.f32.xlu0 %v1088
        %v1115 = vpop.xlane.xlu0 %1114
        %1116 = vadd.xlane.f32.xlu0 %v1089
        %v1117 = vpop.xlane.xlu0 %1116
        %1118 = vadd.xlane.f32.xlu0 %v1090
        %v1119 = vpop.xlane.xlu0 %1118
        %1120 = vadd.xlane.f32.xlu0 %v1091
        %v1121 = vpop.xlane.xlu0 %1120
        %1122 = vadd.xlane.f32.xlu0 %v1092
        %v1123 = vpop.xlane.xlu0 %1122
        %1124 = vadd.xlane.f32.xlu0 %v1093
        %v1125 = vpop.xlane.xlu0 %1124
        %v1126 = vrcp.pop %v1111
        %v1127 = vmul.f32 %v1095, %v1126
        %v1128 = vrcp.pop %v1113
        %v1129 = vmul.f32 %v1097, %v1128
        %v1130 = vrcp.pop %v1115
        %v1131 = vmul.f32 %v1099, %v1130
        %v1132 = vrcp.pop %v1117
        %v1133 = vmul.f32 %v1101, %v1132
        %v1134 = vrcp.pop %v1119
        %v1135 = vmul.f32 %v1103, %v1134
        %v1136 = vrcp.pop %v1121
        %v1137 = vmul.f32 %v1105, %v1136
        %v1138 = vrcp.pop %v1123
        %v1139 = vmul.f32 %v1107, %v1138
        %v1140 = vrcp.pop %v1125
        %v1141 = vmul.f32 %v1109, %v1140
        %s1143 = sor.u32 256, 64
        %1144 = vbcast.lane.b32.xlu0 %v518, %s1143
        %v1145 = vpop.permute.xlu0 %1144
        %s1147 = sor.u32 256, 72
        %1148 = vbcast.lane.b32.xlu0 %v518, %s1147
        %v1149 = vpop.permute.xlu0 %1148
        %s1151 = sor.u32 256, 80
        %1152 = vbcast.lane.b32.xlu0 %v518, %s1151
        %v1153 = vpop.permute.xlu0 %1152
        %s1155 = sor.u32 256, 88
        %1156 = vbcast.lane.b32.xlu0 %v518, %s1155
        %v1157 = vpop.permute.xlu0 %1156
        %s1159 = sor.u32 256, 64
        %1160 = vbcast.lane.b32.xlu0 %v537, %s1159
        %v1161 = vpop.permute.xlu0 %1160
        %s1163 = sor.u32 256, 72
        %1164 = vbcast.lane.b32.xlu0 %v537, %s1163
        %v1165 = vpop.permute.xlu0 %1164
        %s1167 = sor.u32 256, 80
        %1168 = vbcast.lane.b32.xlu0 %v537, %s1167
        %v1169 = vpop.permute.xlu0 %1168
        %s1171 = sor.u32 256, 88
        %1172 = vbcast.lane.b32.xlu0 %v537, %s1171
        %v1173 = vpop.permute.xlu0 %1172
        %s1175 = sor.u32 256, 64
        %1176 = vbcast.lane.b32.xlu0 %v556, %s1175
        %v1177 = vpop.permute.xlu0 %1176
        %s1179 = sor.u32 256, 72
        %1180 = vbcast.lane.b32.xlu0 %v556, %s1179
        %v1181 = vpop.permute.xlu0 %1180
        %s1183 = sor.u32 256, 80
        %1184 = vbcast.lane.b32.xlu0 %v556, %s1183
        %v1185 = vpop.permute.xlu0 %1184
        %s1187 = sor.u32 256, 88
        %1188 = vbcast.lane.b32.xlu0 %v556, %s1187
        %v1189 = vpop.permute.xlu0 %1188
        %s1191 = sor.u32 256, 64
        %1192 = vbcast.lane.b32.xlu0 %v575, %s1191
        %v1193 = vpop.permute.xlu0 %1192
        %s1195 = sor.u32 256, 72
        %1196 = vbcast.lane.b32.xlu0 %v575, %s1195
        %v1197 = vpop.permute.xlu0 %1196
        %s1199 = sor.u32 256, 80
        %1200 = vbcast.lane.b32.xlu0 %v575, %s1199
        %v1201 = vpop.permute.xlu0 %1200
        %s1203 = sor.u32 256, 88
        %1204 = vbcast.lane.b32.xlu0 %v575, %s1203
        %v1205 = vpop.permute.xlu0 %1204
        loop: start=0, step=1, limit=7
        $region107: #{tpu_custom_call.1} parent=51 // loop_pre_header
          _
        $region108: #{tpu_custom_call.1} parent=51 // loop_header
          %s1207 = sphi 0, %s1211
          %p1208 = scmp.ge.s32.totalorder %s1207, 7
          %v1212 = vphi 0.0, %v1301
          %v1213 = vphi 0.0, %v1302
          %v1214 = vphi 0.0, %v1303
          %v1215 = vphi 0.0, %v1304
          %v1216 = vphi 0.0, %v1305
          %v1217 = vphi 0.0, %v1306
          %v1218 = vphi 0.0, %v1307
          %v1219 = vphi 0.0, %v1308
          %v1220 = vphi 0.0, %v1309
          %v1221 = vphi 0.0, %v1310
          %v1222 = vphi 0.0, %v1311
          %v1223 = vphi 0.0, %v1312
          %v1224 = vphi 0.0, %v1313
          %v1225 = vphi 0.0, %v1314
          %v1226 = vphi 0.0, %v1315
          %v1227 = vphi 0.0, %v1316
        $region109: #{tpu_custom_call.1} parent=51 // loop_header_branch
          %1210 = sbr.rel (%p1208) target = $region113
        $region110: #{tpu_custom_call.1} parent=51 // loop_body
          %s1228 = smul.u32 %s1207, 128
          %s1229 = sshra.s32 %s1228, 7
          %s1230 = sand.u32 %s1228, 127
          %s1231 = smul.addr %s1229, 2
          %s1232 = scalar_lea.vmem [#allocation2], %s1231
          %v1233 = vld [vmem:[%s1232] sm:$0x3]
          %v1236 = vunpack.c.l.s4 1966171168
          %v1237 = vunpack.c.0.s8 %v1236
          %v1238 = vlaneseq
          %v1239 = vshrl.u32 %v1238, 7
          %v1240 = vsub.s32 %v1237, %v1239
          %v1241 = vrot.slane %v1233, %v1240
          %v1242 = vcombine.high %v1241, %v1241
          %v1243 = vlaneseq
          %v1244 = vshrl.u32 %v1243, 7
          %v1245 = vsub.s32 0, %v1244
          %v1246 = vrot.slane %v1241, %v1245
          %v1247 = vlaneseq
          %v1248 = vshrl.u32 %v1247, 7
          %v1249 = vsub.s32 0, %v1248
          %v1250 = vrot.slane %v1242, %v1249
          %v1253 = vmul.f32 %v1145, %v1246
          %v1254 = vmul.f32 %v1149, %v1246
          %v1255 = vmul.f32 %v1153, %v1246
          %v1256 = vmul.f32 %v1157, %v1246
          %v1257 = vmul.f32 %v1161, %v1250
          %v1258 = vmul.f32 %v1165, %v1250
          %v1259 = vmul.f32 %v1169, %v1250
          %v1260 = vmul.f32 %v1173, %v1250
          %v1261 = vsub.f32 %v1253, %v1177
          %v1262 = vsub.f32 %v1254, %v1181
          %v1263 = vsub.f32 %v1255, %v1185
          %v1264 = vsub.f32 %v1256, %v1189
          %v1265 = vsub.f32 %v1257, %v1193
          %v1266 = vsub.f32 %v1258, %v1197
          %v1267 = vsub.f32 %v1259, %v1201
          %v1268 = vsub.f32 %v1260, %v1205
          %v1269 = vpack.c.bf16 %v1262, %v1261
          %v1270 = vpack.c.bf16 %v1264, %v1263
          %v1271 = vpack.c.bf16 %v1266, %v1265
          %v1272 = vpack.c.bf16 %v1268, %v1267
          %v1274 = vmul.bf16 %v1269, 1069105081
          %v1275 = vpow.bf16.pop %v1274
          %v1277 = vmul.bf16 %v1270, 1069105081
          %v1278 = vpow.bf16.pop %v1277
          %v1280 = vmul.bf16 %v1271, 1069105081
          %v1281 = vpow.bf16.pop %v1280
          %v1283 = vmul.bf16 %v1272, 1069105081
          %v1284 = vpow.bf16.pop %v1283
          %v1285 = vunpack.c.l.bf16 %v1275
          %v1286 = vunpack.c.h.bf16 %v1275
          %v1287 = vunpack.c.l.bf16 %v1278
          %v1288 = vunpack.c.h.bf16 %v1278
          %v1289 = vunpack.c.l.bf16 %v1281
          %v1290 = vunpack.c.h.bf16 %v1281
          %v1291 = vunpack.c.l.bf16 %v1284
          %v1292 = vunpack.c.h.bf16 %v1284
          %v1293 = vmul.f32 %v1285, %v1246
          %v1294 = vmul.f32 %v1286, %v1246
          %v1295 = vmul.f32 %v1287, %v1246
          %v1296 = vmul.f32 %v1288, %v1246
          %v1297 = vmul.f32 %v1289, %v1250
          %v1298 = vmul.f32 %v1290, %v1250
          %v1299 = vmul.f32 %v1291, %v1250
          %v1300 = vmul.f32 %v1292, %v1250
          %v1301 = vadd.f32 %v1212, %v1293
          %v1302 = vadd.f32 %v1213, %v1294
          %v1303 = vadd.f32 %v1214, %v1295
          %v1304 = vadd.f32 %v1215, %v1296
          %v1305 = vadd.f32 %v1216, %v1297
          %v1306 = vadd.f32 %v1217, %v1298
          %v1307 = vadd.f32 %v1218, %v1299
          %v1308 = vadd.f32 %v1219, %v1300
          %v1309 = vadd.f32 %v1220, %v1285
          %v1310 = vadd.f32 %v1221, %v1286
          %v1311 = vadd.f32 %v1222, %v1287
          %v1312 = vadd.f32 %v1223, %v1288
          %v1313 = vadd.f32 %v1224, %v1289
          %v1314 = vadd.f32 %v1225, %v1290
          %v1315 = vadd.f32 %v1226, %v1291
          %v1316 = vadd.f32 %v1227, %v1292
        $region111: #{tpu_custom_call.1} parent=51 // loop_footer
          %s1211 = sadd.s32 1, %s1207
        $region112: #{tpu_custom_call.1} parent=51 // loop_footer_branch
          %1206 = sbr.rel target = $region108
        $region113: #{tpu_custom_call.1} parent=51 // loop_exit
          _
        %v1317 = vmul.f32 %v1145, %v718
        %v1318 = vmul.f32 %v1149, %v718
        %v1319 = vmul.f32 %v1153, %v718
        %v1320 = vmul.f32 %v1157, %v718
        %v1321 = vmul.f32 %v1161, %v722
        %v1322 = vmul.f32 %v1165, %v722
        %v1323 = vmul.f32 %v1169, %v722
        %v1324 = vmul.f32 %v1173, %v722
        %v1325 = vsub.f32 %v1317, %v1177
        %v1326 = vsub.f32 %v1318, %v1181
        %v1327 = vsub.f32 %v1319, %v1185
        %v1328 = vsub.f32 %v1320, %v1189
        %v1329 = vsub.f32 %v1321, %v1193
        %v1330 = vsub.f32 %v1322, %v1197
        %v1331 = vsub.f32 %v1323, %v1201
        %v1332 = vsub.f32 %v1324, %v1205
        %v1333 = vpack.c.bf16 %v1326, %v1325
        %v1334 = vpack.c.bf16 %v1328, %v1327
        %v1335 = vpack.c.bf16 %v1330, %v1329
        %v1336 = vpack.c.bf16 %v1332, %v1331
        %v1338 = vmul.bf16 %v1333, 1069105081
        %v1339 = vpow.bf16.pop %v1338
        %v1341 = vmul.bf16 %v1334, 1069105081
        %v1342 = vpow.bf16.pop %v1341
        %v1344 = vmul.bf16 %v1335, 1069105081
        %v1345 = vpow.bf16.pop %v1344
        %v1347 = vmul.bf16 %v1336, 1069105081
        %v1348 = vpow.bf16.pop %v1347
        %v1349 = vunpack.c.l.bf16 %v1339
        %v1350 = vunpack.c.h.bf16 %v1339
        %v1351 = vunpack.c.l.bf16 %v1342
        %v1352 = vunpack.c.h.bf16 %v1342
        %v1353 = vunpack.c.l.bf16 %v1345
        %v1354 = vunpack.c.h.bf16 %v1345
        %v1355 = vunpack.c.l.bf16 %v1348
        %v1356 = vunpack.c.h.bf16 %v1348
        %v1357 = vsel %vm766, %v1349, 0.0
        %v1358 = vsel %vm766, %v1350, 0.0
        %v1359 = vsel %vm766, %v1351, 0.0
        %v1360 = vsel %vm766, %v1352, 0.0
        %v1361 = vsel %vm766, %v1353, 0.0
        %v1362 = vsel %vm766, %v1354, 0.0
        %v1363 = vsel %vm766, %v1355, 0.0
        %v1364 = vsel %vm766, %v1356, 0.0
        %v1365 = vmul.f32 %v1357, %v718
        %v1366 = vmul.f32 %v1358, %v718
        %v1367 = vmul.f32 %v1359, %v718
        %v1368 = vmul.f32 %v1360, %v718
        %v1369 = vmul.f32 %v1361, %v722
        %v1370 = vmul.f32 %v1362, %v722
        %v1371 = vmul.f32 %v1363, %v722
        %v1372 = vmul.f32 %v1364, %v722
        %v1373 = vadd.f32 %v1212, %v1365
        %v1374 = vadd.f32 %v1213, %v1366
        %v1375 = vadd.f32 %v1214, %v1367
        %v1376 = vadd.f32 %v1215, %v1368
        %v1377 = vadd.f32 %v1216, %v1369
        %v1378 = vadd.f32 %v1217, %v1370
        %v1379 = vadd.f32 %v1218, %v1371
        %v1380 = vadd.f32 %v1219, %v1372
        %v1381 = vadd.f32 %v1220, %v1357
        %v1382 = vadd.f32 %v1221, %v1358
        %v1383 = vadd.f32 %v1222, %v1359
        %v1384 = vadd.f32 %v1223, %v1360
        %v1385 = vadd.f32 %v1224, %v1361
        %v1386 = vadd.f32 %v1225, %v1362
        %v1387 = vadd.f32 %v1226, %v1363
        %v1388 = vadd.f32 %v1227, %v1364
        %1389 = vadd.xlane.f32.xlu0 %v1373
        %v1390 = vpop.xlane.xlu0 %1389
        %1391 = vadd.xlane.f32.xlu0 %v1374
        %v1392 = vpop.xlane.xlu0 %1391
        %1393 = vadd.xlane.f32.xlu0 %v1375
        %v1394 = vpop.xlane.xlu0 %1393
        %1395 = vadd.xlane.f32.xlu0 %v1376
        %v1396 = vpop.xlane.xlu0 %1395
        %1397 = vadd.xlane.f32.xlu0 %v1377
        %v1398 = vpop.xlane.xlu0 %1397
        %1399 = vadd.xlane.f32.xlu0 %v1378
        %v1400 = vpop.xlane.xlu0 %1399
        %1401 = vadd.xlane.f32.xlu0 %v1379
        %v1402 = vpop.xlane.xlu0 %1401
        %1403 = vadd.xlane.f32.xlu0 %v1380
        %v1404 = vpop.xlane.xlu0 %1403
        %1405 = vadd.xlane.f32.xlu0 %v1381
        %v1406 = vpop.xlane.xlu0 %1405
        %1407 = vadd.xlane.f32.xlu0 %v1382
        %v1408 = vpop.xlane.xlu0 %1407
        %1409 = vadd.xlane.f32.xlu0 %v1383
        %v1410 = vpop.xlane.xlu0 %1409
        %1411 = vadd.xlane.f32.xlu0 %v1384
        %v1412 = vpop.xlane.xlu0 %1411
        %1413 = vadd.xlane.f32.xlu0 %v1385
        %v1414 = vpop.xlane.xlu0 %1413
        %1415 = vadd.xlane.f32.xlu0 %v1386
        %v1416 = vpop.xlane.xlu0 %1415
        %1417 = vadd.xlane.f32.xlu0 %v1387
        %v1418 = vpop.xlane.xlu0 %1417
        %1419 = vadd.xlane.f32.xlu0 %v1388
        %v1420 = vpop.xlane.xlu0 %1419
        %v1421 = vrcp.pop %v1406
        %v1422 = vmul.f32 %v1390, %v1421
        %v1423 = vrcp.pop %v1408
        %v1424 = vmul.f32 %v1392, %v1423
        %v1425 = vrcp.pop %v1410
        %v1426 = vmul.f32 %v1394, %v1425
        %v1427 = vrcp.pop %v1412
        %v1428 = vmul.f32 %v1396, %v1427
        %v1429 = vrcp.pop %v1414
        %v1430 = vmul.f32 %v1398, %v1429
        %v1431 = vrcp.pop %v1416
        %v1432 = vmul.f32 %v1400, %v1431
        %v1433 = vrcp.pop %v1418
        %v1434 = vmul.f32 %v1402, %v1433
        %v1435 = vrcp.pop %v1420
        %v1436 = vmul.f32 %v1404, %v1435
        %s1438 = sor.u32 256, 96
        %1439 = vbcast.lane.b32.xlu0 %v518, %s1438
        %v1440 = vpop.permute.xlu0 %1439
        %s1442 = sor.u32 256, 104
        %1443 = vbcast.lane.b32.xlu0 %v518, %s1442
        %v1444 = vpop.permute.xlu0 %1443
        %s1446 = sor.u32 256, 112
        %1447 = vbcast.lane.b32.xlu0 %v518, %s1446
        %v1448 = vpop.permute.xlu0 %1447
        %s1450 = sor.u32 256, 120
        %1451 = vbcast.lane.b32.xlu0 %v518, %s1450
        %v1452 = vpop.permute.xlu0 %1451
        %s1454 = sor.u32 256, 96
        %1455 = vbcast.lane.b32.xlu0 %v537, %s1454
        %v1456 = vpop.permute.xlu0 %1455
        %s1458 = sor.u32 256, 104
        %1459 = vbcast.lane.b32.xlu0 %v537, %s1458
        %v1460 = vpop.permute.xlu0 %1459
        %s1462 = sor.u32 256, 112
        %1463 = vbcast.lane.b32.xlu0 %v537, %s1462
        %v1464 = vpop.permute.xlu0 %1463
        %s1466 = sor.u32 256, 120
        %1467 = vbcast.lane.b32.xlu0 %v537, %s1466
        %v1468 = vpop.permute.xlu0 %1467
        %s1470 = sor.u32 256, 96
        %1471 = vbcast.lane.b32.xlu0 %v556, %s1470
        %v1472 = vpop.permute.xlu0 %1471
        %s1474 = sor.u32 256, 104
        %1475 = vbcast.lane.b32.xlu0 %v556, %s1474
        %v1476 = vpop.permute.xlu0 %1475
        %s1478 = sor.u32 256, 112
        %1479 = vbcast.lane.b32.xlu0 %v556, %s1478
        %v1480 = vpop.permute.xlu0 %1479
        %s1482 = sor.u32 256, 120
        %1483 = vbcast.lane.b32.xlu0 %v556, %s1482
        %v1484 = vpop.permute.xlu0 %1483
        %s1486 = sor.u32 256, 96
        %1487 = vbcast.lane.b32.xlu0 %v575, %s1486
        %v1488 = vpop.permute.xlu0 %1487
        %s1490 = sor.u32 256, 104
        %1491 = vbcast.lane.b32.xlu0 %v575, %s1490
        %v1492 = vpop.permute.xlu0 %1491
        %s1494 = sor.u32 256, 112
        %1495 = vbcast.lane.b32.xlu0 %v575, %s1494
        %v1496 = vpop.permute.xlu0 %1495
        %s1498 = sor.u32 256, 120
        %1499 = vbcast.lane.b32.xlu0 %v575, %s1498
        %v1500 = vpop.permute.xlu0 %1499
        loop: start=0, step=1, limit=7
        $region114: #{tpu_custom_call.1} parent=51 // loop_pre_header
          _
        $region115: #{tpu_custom_call.1} parent=51 // loop_header
          %s1502 = sphi 0, %s1506
          %p1503 = scmp.ge.s32.totalorder %s1502, 7
          %v1507 = vphi 0.0, %v1596
          %v1508 = vphi 0.0, %v1597
          %v1509 = vphi 0.0, %v1598
          %v1510 = vphi 0.0, %v1599
          %v1511 = vphi 0.0, %v1600
          %v1512 = vphi 0.0, %v1601
          %v1513 = vphi 0.0, %v1602
          %v1514 = vphi 0.0, %v1603
          %v1515 = vphi 0.0, %v1604
          %v1516 = vphi 0.0, %v1605
          %v1517 = vphi 0.0, %v1606
          %v1518 = vphi 0.0, %v1607
          %v1519 = vphi 0.0, %v1608
          %v1520 = vphi 0.0, %v1609
          %v1521 = vphi 0.0, %v1610
          %v1522 = vphi 0.0, %v1611
        $region116: #{tpu_custom_call.1} parent=51 // loop_header_branch
          %1505 = sbr.rel (%p1503) target = $region120
        $region117: #{tpu_custom_call.1} parent=51 // loop_body
          %s1523 = smul.u32 %s1502, 128
          %s1524 = sshra.s32 %s1523, 7
          %s1525 = sand.u32 %s1523, 127
          %s1526 = smul.addr %s1524, 2
          %s1527 = scalar_lea.vmem [#allocation2], %s1526
          %v1528 = vld [vmem:[%s1527] sm:$0x3]
          %v1531 = vunpack.c.l.s4 1966171168
          %v1532 = vunpack.c.0.s8 %v1531
          %v1533 = vlaneseq
          %v1534 = vshrl.u32 %v1533, 7
          %v1535 = vsub.s32 %v1532, %v1534
          %v1536 = vrot.slane %v1528, %v1535
          %v1537 = vcombine.high %v1536, %v1536
          %v1538 = vlaneseq
          %v1539 = vshrl.u32 %v1538, 7
          %v1540 = vsub.s32 0, %v1539
          %v1541 = vrot.slane %v1536, %v1540
          %v1542 = vlaneseq
          %v1543 = vshrl.u32 %v1542, 7
          %v1544 = vsub.s32 0, %v1543
          %v1545 = vrot.slane %v1537, %v1544
          %v1548 = vmul.f32 %v1440, %v1541
          %v1549 = vmul.f32 %v1444, %v1541
          %v1550 = vmul.f32 %v1448, %v1541
          %v1551 = vmul.f32 %v1452, %v1541
          %v1552 = vmul.f32 %v1456, %v1545
          %v1553 = vmul.f32 %v1460, %v1545
          %v1554 = vmul.f32 %v1464, %v1545
          %v1555 = vmul.f32 %v1468, %v1545
          %v1556 = vsub.f32 %v1548, %v1472
          %v1557 = vsub.f32 %v1549, %v1476
          %v1558 = vsub.f32 %v1550, %v1480
          %v1559 = vsub.f32 %v1551, %v1484
          %v1560 = vsub.f32 %v1552, %v1488
          %v1561 = vsub.f32 %v1553, %v1492
          %v1562 = vsub.f32 %v1554, %v1496
          %v1563 = vsub.f32 %v1555, %v1500
          %v1564 = vpack.c.bf16 %v1557, %v1556
          %v1565 = vpack.c.bf16 %v1559, %v1558
          %v1566 = vpack.c.bf16 %v1561, %v1560
          %v1567 = vpack.c.bf16 %v1563, %v1562
          %v1569 = vmul.bf16 %v1564, 1069105081
          %v1570 = vpow.bf16.pop %v1569
          %v1572 = vmul.bf16 %v1565, 1069105081
          %v1573 = vpow.bf16.pop %v1572
          %v1575 = vmul.bf16 %v1566, 1069105081
          %v1576 = vpow.bf16.pop %v1575
          %v1578 = vmul.bf16 %v1567, 1069105081
          %v1579 = vpow.bf16.pop %v1578
          %v1580 = vunpack.c.l.bf16 %v1570
          %v1581 = vunpack.c.h.bf16 %v1570
          %v1582 = vunpack.c.l.bf16 %v1573
          %v1583 = vunpack.c.h.bf16 %v1573
          %v1584 = vunpack.c.l.bf16 %v1576
          %v1585 = vunpack.c.h.bf16 %v1576
          %v1586 = vunpack.c.l.bf16 %v1579
          %v1587 = vunpack.c.h.bf16 %v1579
          %v1588 = vmul.f32 %v1580, %v1541
          %v1589 = vmul.f32 %v1581, %v1541
          %v1590 = vmul.f32 %v1582, %v1541
          %v1591 = vmul.f32 %v1583, %v1541
          %v1592 = vmul.f32 %v1584, %v1545
          %v1593 = vmul.f32 %v1585, %v1545
          %v1594 = vmul.f32 %v1586, %v1545
          %v1595 = vmul.f32 %v1587, %v1545
          %v1596 = vadd.f32 %v1507, %v1588
          %v1597 = vadd.f32 %v1508, %v1589
          %v1598 = vadd.f32 %v1509, %v1590
          %v1599 = vadd.f32 %v1510, %v1591
          %v1600 = vadd.f32 %v1511, %v1592
          %v1601 = vadd.f32 %v1512, %v1593
          %v1602 = vadd.f32 %v1513, %v1594
          %v1603 = vadd.f32 %v1514, %v1595
          %v1604 = vadd.f32 %v1515, %v1580
          %v1605 = vadd.f32 %v1516, %v1581
          %v1606 = vadd.f32 %v1517, %v1582
          %v1607 = vadd.f32 %v1518, %v1583
          %v1608 = vadd.f32 %v1519, %v1584
          %v1609 = vadd.f32 %v1520, %v1585
          %v1610 = vadd.f32 %v1521, %v1586
          %v1611 = vadd.f32 %v1522, %v1587
        $region118: #{tpu_custom_call.1} parent=51 // loop_footer
          %s1506 = sadd.s32 1, %s1502
        $region119: #{tpu_custom_call.1} parent=51 // loop_footer_branch
          %1501 = sbr.rel target = $region115
        $region120: #{tpu_custom_call.1} parent=51 // loop_exit
          _
        %v1612 = vmul.f32 %v1440, %v718
        %v1613 = vmul.f32 %v1444, %v718
        %v1614 = vmul.f32 %v1448, %v718
        %v1615 = vmul.f32 %v1452, %v718
        %v1616 = vmul.f32 %v1456, %v722
        %v1617 = vmul.f32 %v1460, %v722
        %v1618 = vmul.f32 %v1464, %v722
        %v1619 = vmul.f32 %v1468, %v722
        %v1620 = vsub.f32 %v1612, %v1472
        %v1621 = vsub.f32 %v1613, %v1476
        %v1622 = vsub.f32 %v1614, %v1480
        %v1623 = vsub.f32 %v1615, %v1484
        %v1624 = vsub.f32 %v1616, %v1488
        %v1625 = vsub.f32 %v1617, %v1492
        %v1626 = vsub.f32 %v1618, %v1496
        %v1627 = vsub.f32 %v1619, %v1500
        %v1628 = vpack.c.bf16 %v1621, %v1620
        %v1629 = vpack.c.bf16 %v1623, %v1622
        %v1630 = vpack.c.bf16 %v1625, %v1624
        %v1631 = vpack.c.bf16 %v1627, %v1626
        %v1633 = vmul.bf16 %v1628, 1069105081
        %v1634 = vpow.bf16.pop %v1633
        %v1636 = vmul.bf16 %v1629, 1069105081
        %v1637 = vpow.bf16.pop %v1636
        %v1639 = vmul.bf16 %v1630, 1069105081
        %v1640 = vpow.bf16.pop %v1639
        %v1642 = vmul.bf16 %v1631, 1069105081
        %v1643 = vpow.bf16.pop %v1642
        %v1644 = vunpack.c.l.bf16 %v1634
        %v1645 = vunpack.c.h.bf16 %v1634
        %v1646 = vunpack.c.l.bf16 %v1637
        %v1647 = vunpack.c.h.bf16 %v1637
        %v1648 = vunpack.c.l.bf16 %v1640
        %v1649 = vunpack.c.h.bf16 %v1640
        %v1650 = vunpack.c.l.bf16 %v1643
        %v1651 = vunpack.c.h.bf16 %v1643
        %v1652 = vsel %vm766, %v1644, 0.0
        %v1653 = vsel %vm766, %v1645, 0.0
        %v1654 = vsel %vm766, %v1646, 0.0
        %v1655 = vsel %vm766, %v1647, 0.0
        %v1656 = vsel %vm766, %v1648, 0.0
        %v1657 = vsel %vm766, %v1649, 0.0
        %v1658 = vsel %vm766, %v1650, 0.0
        %v1659 = vsel %vm766, %v1651, 0.0
        %v1660 = vmul.f32 %v1652, %v718
        %v1661 = vmul.f32 %v1653, %v718
        %v1662 = vmul.f32 %v1654, %v718
        %v1663 = vmul.f32 %v1655, %v718
        %v1664 = vmul.f32 %v1656, %v722
        %v1665 = vmul.f32 %v1657, %v722
        %v1666 = vmul.f32 %v1658, %v722
        %v1667 = vmul.f32 %v1659, %v722
        %v1668 = vadd.f32 %v1507, %v1660
        %v1669 = vadd.f32 %v1508, %v1661
        %v1670 = vadd.f32 %v1509, %v1662
        %v1671 = vadd.f32 %v1510, %v1663
        %v1672 = vadd.f32 %v1511, %v1664
        %v1673 = vadd.f32 %v1512, %v1665
        %v1674 = vadd.f32 %v1513, %v1666
        %v1675 = vadd.f32 %v1514, %v1667
        %v1676 = vadd.f32 %v1515, %v1652
        %v1677 = vadd.f32 %v1516, %v1653
        %v1678 = vadd.f32 %v1517, %v1654
        %v1679 = vadd.f32 %v1518, %v1655
        %v1680 = vadd.f32 %v1519, %v1656
        %v1681 = vadd.f32 %v1520, %v1657
        %v1682 = vadd.f32 %v1521, %v1658
        %v1683 = vadd.f32 %v1522, %v1659
        %1684 = vadd.xlane.f32.xlu0 %v1668
        %v1685 = vpop.xlane.xlu0 %1684
        %1686 = vadd.xlane.f32.xlu0 %v1669
        %v1687 = vpop.xlane.xlu0 %1686
        %1688 = vadd.xlane.f32.xlu0 %v1670
        %v1689 = vpop.xlane.xlu0 %1688
        %1690 = vadd.xlane.f32.xlu0 %v1671
        %v1691 = vpop.xlane.xlu0 %1690
        %1692 = vadd.xlane.f32.xlu0 %v1672
        %v1693 = vpop.xlane.xlu0 %1692
        %1694 = vadd.xlane.f32.xlu0 %v1673
        %v1695 = vpop.xlane.xlu0 %1694
        %1696 = vadd.xlane.f32.xlu0 %v1674
        %v1697 = vpop.xlane.xlu0 %1696
        %1698 = vadd.xlane.f32.xlu0 %v1675
        %v1699 = vpop.xlane.xlu0 %1698
        %1700 = vadd.xlane.f32.xlu0 %v1676
        %v1701 = vpop.xlane.xlu0 %1700
        %1702 = vadd.xlane.f32.xlu0 %v1677
        %v1703 = vpop.xlane.xlu0 %1702
        %1704 = vadd.xlane.f32.xlu0 %v1678
        %v1705 = vpop.xlane.xlu0 %1704
        %1706 = vadd.xlane.f32.xlu0 %v1679
        %v1707 = vpop.xlane.xlu0 %1706
        %1708 = vadd.xlane.f32.xlu0 %v1680
        %v1709 = vpop.xlane.xlu0 %1708
        %1710 = vadd.xlane.f32.xlu0 %v1681
        %v1711 = vpop.xlane.xlu0 %1710
        %1712 = vadd.xlane.f32.xlu0 %v1682
        %v1713 = vpop.xlane.xlu0 %1712
        %1714 = vadd.xlane.f32.xlu0 %v1683
        %v1715 = vpop.xlane.xlu0 %1714
        %v1716 = vrcp.pop %v1701
        %v1717 = vmul.f32 %v1685, %v1716
        %v1718 = vrcp.pop %v1703
        %v1719 = vmul.f32 %v1687, %v1718
        %v1720 = vrcp.pop %v1705
        %v1721 = vmul.f32 %v1689, %v1720
        %v1722 = vrcp.pop %v1707
        %v1723 = vmul.f32 %v1691, %v1722
        %v1724 = vrcp.pop %v1709
        %v1725 = vmul.f32 %v1693, %v1724
        %v1726 = vrcp.pop %v1711
        %v1727 = vmul.f32 %v1695, %v1726
        %v1728 = vrcp.pop %v1713
        %v1729 = vmul.f32 %v1697, %v1728
        %v1730 = vrcp.pop %v1715
        %v1731 = vmul.f32 %v1699, %v1730
        %v1732 = vlaneseq
        %v1733 = vshrl.u32 %v1732, 7
        %v1734 = vsub.s32 0, %v1733
        %v1735 = vrot.slane %v500, %v1734
        %1737 = vbcast.lane.b32.xlu0 %v1735, 256
        %v1738 = vpop.permute.xlu0 %1737
        %s1740 = sor.u32 256, 8
        %1741 = vbcast.lane.b32.xlu0 %v1735, %s1740
        %v1742 = vpop.permute.xlu0 %1741
        %s1744 = sor.u32 256, 16
        %1745 = vbcast.lane.b32.xlu0 %v1735, %s1744
        %v1746 = vpop.permute.xlu0 %1745
        %s1748 = sor.u32 256, 24
        %1749 = vbcast.lane.b32.xlu0 %v1735, %s1748
        %v1750 = vpop.permute.xlu0 %1749
        %v1751 = vlaneseq
        %v1752 = vshrl.u32 %v1751, 7
        %v1753 = vsub.s32 1, %v1752
        %v1754 = vrot.slane %v500, %v1753
        %1756 = vbcast.lane.b32.xlu0 %v1754, 256
        %v1757 = vpop.permute.xlu0 %1756
        %s1759 = sor.u32 256, 8
        %1760 = vbcast.lane.b32.xlu0 %v1754, %s1759
        %v1761 = vpop.permute.xlu0 %1760
        %s1763 = sor.u32 256, 16
        %1764 = vbcast.lane.b32.xlu0 %v1754, %s1763
        %v1765 = vpop.permute.xlu0 %1764
        %s1767 = sor.u32 256, 24
        %1768 = vbcast.lane.b32.xlu0 %v1754, %s1767
        %v1769 = vpop.permute.xlu0 %1768
        %v1770 = vlaneseq
        %v1771 = vshrl.u32 %v1770, 7
        %v1772 = vsub.s32 0, %v1771
        %v1773 = vrot.slane %v514, %v1772
        %1775 = vbcast.lane.b32.xlu0 %v1773, 256
        %v1776 = vpop.permute.xlu0 %1775
        %s1778 = sor.u32 256, 8
        %1779 = vbcast.lane.b32.xlu0 %v1773, %s1778
        %v1780 = vpop.permute.xlu0 %1779
        %s1782 = sor.u32 256, 16
        %1783 = vbcast.lane.b32.xlu0 %v1773, %s1782
        %v1784 = vpop.permute.xlu0 %1783
        %s1786 = sor.u32 256, 24
        %1787 = vbcast.lane.b32.xlu0 %v1773, %s1786
        %v1788 = vpop.permute.xlu0 %1787
        %v1789 = vlaneseq
        %v1790 = vshrl.u32 %v1789, 7
        %v1791 = vsub.s32 1, %v1790
        %v1792 = vrot.slane %v514, %v1791
        %1794 = vbcast.lane.b32.xlu0 %v1792, 256
        %v1795 = vpop.permute.xlu0 %1794
        %s1797 = sor.u32 256, 8
        %1798 = vbcast.lane.b32.xlu0 %v1792, %s1797
        %v1799 = vpop.permute.xlu0 %1798
        %s1801 = sor.u32 256, 16
        %1802 = vbcast.lane.b32.xlu0 %v1792, %s1801
        %v1803 = vpop.permute.xlu0 %1802
        %s1805 = sor.u32 256, 24
        %1806 = vbcast.lane.b32.xlu0 %v1792, %s1805
        %v1807 = vpop.permute.xlu0 %1806
        loop: start=0, step=1, limit=7
        $region121: #{tpu_custom_call.1} parent=51 // loop_pre_header
          _
        $region122: #{tpu_custom_call.1} parent=51 // loop_header
          %s1809 = sphi 0, %s1813
          %p1810 = scmp.ge.s32.totalorder %s1809, 7
          %v1814 = vphi 0.0, %v1903
          %v1815 = vphi 0.0, %v1904
          %v1816 = vphi 0.0, %v1905
          %v1817 = vphi 0.0, %v1906
          %v1818 = vphi 0.0, %v1907
          %v1819 = vphi 0.0, %v1908
          %v1820 = vphi 0.0, %v1909
          %v1821 = vphi 0.0, %v1910
          %v1822 = vphi 0.0, %v1911
          %v1823 = vphi 0.0, %v1912
          %v1824 = vphi 0.0, %v1913
          %v1825 = vphi 0.0, %v1914
          %v1826 = vphi 0.0, %v1915
          %v1827 = vphi 0.0, %v1916
          %v1828 = vphi 0.0, %v1917
          %v1829 = vphi 0.0, %v1918
        $region123: #{tpu_custom_call.1} parent=51 // loop_header_branch
          %1812 = sbr.rel (%p1810) target = $region127
        $region124: #{tpu_custom_call.1} parent=51 // loop_body
          %s1830 = smul.u32 %s1809, 128
          %s1831 = sshra.s32 %s1830, 7
          %s1832 = sand.u32 %s1830, 127
          %s1833 = smul.addr %s1831, 2
          %s1834 = scalar_lea.vmem [#allocation2], %s1833
          %v1835 = vld [vmem:[%s1834] sm:$0x3]
          %v1838 = vunpack.c.l.s4 1966171168
          %v1839 = vunpack.c.0.s8 %v1838
          %v1840 = vlaneseq
          %v1841 = vshrl.u32 %v1840, 7
          %v1842 = vsub.s32 %v1839, %v1841
          %v1843 = vrot.slane %v1835, %v1842
          %v1844 = vcombine.high %v1843, %v1843
          %v1845 = vlaneseq
          %v1846 = vshrl.u32 %v1845, 7
          %v1847 = vsub.s32 0, %v1846
          %v1848 = vrot.slane %v1843, %v1847
          %v1849 = vlaneseq
          %v1850 = vshrl.u32 %v1849, 7
          %v1851 = vsub.s32 0, %v1850
          %v1852 = vrot.slane %v1844, %v1851
          %v1855 = vmul.f32 %v1738, %v1848
          %v1856 = vmul.f32 %v1742, %v1848
          %v1857 = vmul.f32 %v1746, %v1848
          %v1858 = vmul.f32 %v1750, %v1848
          %v1859 = vmul.f32 %v1757, %v1852
          %v1860 = vmul.f32 %v1761, %v1852
          %v1861 = vmul.f32 %v1765, %v1852
          %v1862 = vmul.f32 %v1769, %v1852
          %v1863 = vsub.f32 %v1855, %v1776
          %v1864 = vsub.f32 %v1856, %v1780
          %v1865 = vsub.f32 %v1857, %v1784
          %v1866 = vsub.f32 %v1858, %v1788
          %v1867 = vsub.f32 %v1859, %v1795
          %v1868 = vsub.f32 %v1860, %v1799
          %v1869 = vsub.f32 %v1861, %v1803
          %v1870 = vsub.f32 %v1862, %v1807
          %v1871 = vpack.c.bf16 %v1864, %v1863
          %v1872 = vpack.c.bf16 %v1866, %v1865
          %v1873 = vpack.c.bf16 %v1868, %v1867
          %v1874 = vpack.c.bf16 %v1870, %v1869
          %v1876 = vmul.bf16 %v1871, 1069105081
          %v1877 = vpow.bf16.pop %v1876
          %v1879 = vmul.bf16 %v1872, 1069105081
          %v1880 = vpow.bf16.pop %v1879
          %v1882 = vmul.bf16 %v1873, 1069105081
          %v1883 = vpow.bf16.pop %v1882
          %v1885 = vmul.bf16 %v1874, 1069105081
          %v1886 = vpow.bf16.pop %v1885
          %v1887 = vunpack.c.l.bf16 %v1877
          %v1888 = vunpack.c.h.bf16 %v1877
          %v1889 = vunpack.c.l.bf16 %v1880
          %v1890 = vunpack.c.h.bf16 %v1880
          %v1891 = vunpack.c.l.bf16 %v1883
          %v1892 = vunpack.c.h.bf16 %v1883
          %v1893 = vunpack.c.l.bf16 %v1886
          %v1894 = vunpack.c.h.bf16 %v1886
          %v1895 = vmul.f32 %v1887, %v1848
          %v1896 = vmul.f32 %v1888, %v1848
          %v1897 = vmul.f32 %v1889, %v1848
          %v1898 = vmul.f32 %v1890, %v1848
          %v1899 = vmul.f32 %v1891, %v1852
          %v1900 = vmul.f32 %v1892, %v1852
          %v1901 = vmul.f32 %v1893, %v1852
          %v1902 = vmul.f32 %v1894, %v1852
          %v1903 = vadd.f32 %v1814, %v1895
          %v1904 = vadd.f32 %v1815, %v1896
          %v1905 = vadd.f32 %v1816, %v1897
          %v1906 = vadd.f32 %v1817, %v1898
          %v1907 = vadd.f32 %v1818, %v1899
          %v1908 = vadd.f32 %v1819, %v1900
          %v1909 = vadd.f32 %v1820, %v1901
          %v1910 = vadd.f32 %v1821, %v1902
          %v1911 = vadd.f32 %v1822, %v1887
          %v1912 = vadd.f32 %v1823, %v1888
          %v1913 = vadd.f32 %v1824, %v1889
          %v1914 = vadd.f32 %v1825, %v1890
          %v1915 = vadd.f32 %v1826, %v1891
          %v1916 = vadd.f32 %v1827, %v1892
          %v1917 = vadd.f32 %v1828, %v1893
          %v1918 = vadd.f32 %v1829, %v1894
        $region125: #{tpu_custom_call.1} parent=51 // loop_footer
          %s1813 = sadd.s32 1, %s1809
        $region126: #{tpu_custom_call.1} parent=51 // loop_footer_branch
          %1808 = sbr.rel target = $region122
        $region127: #{tpu_custom_call.1} parent=51 // loop_exit
          _
        %v1919 = vmul.f32 %v1738, %v718
        %v1920 = vmul.f32 %v1742, %v718
        %v1921 = vmul.f32 %v1746, %v718
        %v1922 = vmul.f32 %v1750, %v718
        %v1923 = vmul.f32 %v1757, %v722
        %v1924 = vmul.f32 %v1761, %v722
        %v1925 = vmul.f32 %v1765, %v722
        %v1926 = vmul.f32 %v1769, %v722
        %v1927 = vsub.f32 %v1919, %v1776
        %v1928 = vsub.f32 %v1920, %v1780
        %v1929 = vsub.f32 %v1921, %v1784
        %v1930 = vsub.f32 %v1922, %v1788
        %v1931 = vsub.f32 %v1923, %v1795
        %v1932 = vsub.f32 %v1924, %v1799
        %v1933 = vsub.f32 %v1925, %v1803
        %v1934 = vsub.f32 %v1926, %v1807
        %v1935 = vpack.c.bf16 %v1928, %v1927
        %v1936 = vpack.c.bf16 %v1930, %v1929
        %v1937 = vpack.c.bf16 %v1932, %v1931
        %v1938 = vpack.c.bf16 %v1934, %v1933
        %v1940 = vmul.bf16 %v1935, 1069105081
        %v1941 = vpow.bf16.pop %v1940
        %v1943 = vmul.bf16 %v1936, 1069105081
        %v1944 = vpow.bf16.pop %v1943
        %v1946 = vmul.bf16 %v1937, 1069105081
        %v1947 = vpow.bf16.pop %v1946
        %v1949 = vmul.bf16 %v1938, 1069105081
        %v1950 = vpow.bf16.pop %v1949
        %v1951 = vunpack.c.l.bf16 %v1941
        %v1952 = vunpack.c.h.bf16 %v1941
        %v1953 = vunpack.c.l.bf16 %v1944
        %v1954 = vunpack.c.h.bf16 %v1944
        %v1955 = vunpack.c.l.bf16 %v1947
        %v1956 = vunpack.c.h.bf16 %v1947
        %v1957 = vunpack.c.l.bf16 %v1950
        %v1958 = vunpack.c.h.bf16 %v1950
        %v1959 = vsel %vm766, %v1951, 0.0
        %v1960 = vsel %vm766, %v1952, 0.0
        %v1961 = vsel %vm766, %v1953, 0.0
        %v1962 = vsel %vm766, %v1954, 0.0
        %v1963 = vsel %vm766, %v1955, 0.0
        %v1964 = vsel %vm766, %v1956, 0.0
        %v1965 = vsel %vm766, %v1957, 0.0
        %v1966 = vsel %vm766, %v1958, 0.0
        %v1967 = vmul.f32 %v1959, %v718
        %v1968 = vmul.f32 %v1960, %v718
        %v1969 = vmul.f32 %v1961, %v718
        %v1970 = vmul.f32 %v1962, %v718
        %v1971 = vmul.f32 %v1963, %v722
        %v1972 = vmul.f32 %v1964, %v722
        %v1973 = vmul.f32 %v1965, %v722
        %v1974 = vmul.f32 %v1966, %v722
        %v1975 = vadd.f32 %v1814, %v1967
        %v1976 = vadd.f32 %v1815, %v1968
        %v1977 = vadd.f32 %v1816, %v1969
        %v1978 = vadd.f32 %v1817, %v1970
        %v1979 = vadd.f32 %v1818, %v1971
        %v1980 = vadd.f32 %v1819, %v1972
        %v1981 = vadd.f32 %v1820, %v1973
        %v1982 = vadd.f32 %v1821, %v1974
        %v1983 = vadd.f32 %v1822, %v1959
        %v1984 = vadd.f32 %v1823, %v1960
        %v1985 = vadd.f32 %v1824, %v1961
        %v1986 = vadd.f32 %v1825, %v1962
        %v1987 = vadd.f32 %v1826, %v1963
        %v1988 = vadd.f32 %v1827, %v1964
        %v1989 = vadd.f32 %v1828, %v1965
        %v1990 = vadd.f32 %v1829, %v1966
        %1991 = vadd.xlane.f32.xlu0 %v1975
        %v1992 = vpop.xlane.xlu0 %1991
        %1993 = vadd.xlane.f32.xlu0 %v1976
        %v1994 = vpop.xlane.xlu0 %1993
        %1995 = vadd.xlane.f32.xlu0 %v1977
        %v1996 = vpop.xlane.xlu0 %1995
        %1997 = vadd.xlane.f32.xlu0 %v1978
        %v1998 = vpop.xlane.xlu0 %1997
        %1999 = vadd.xlane.f32.xlu0 %v1979
        %v2000 = vpop.xlane.xlu0 %1999
        %2001 = vadd.xlane.f32.xlu0 %v1980
        %v2002 = vpop.xlane.xlu0 %2001
        %2003 = vadd.xlane.f32.xlu0 %v1981
        %v2004 = vpop.xlane.xlu0 %2003
        %2005 = vadd.xlane.f32.xlu0 %v1982
        %v2006 = vpop.xlane.xlu0 %2005
        %2007 = vadd.xlane.f32.xlu0 %v1983
        %v2008 = vpop.xlane.xlu0 %2007
        %2009 = vadd.xlane.f32.xlu0 %v1984
        %v2010 = vpop.xlane.xlu0 %2009
        %2011 = vadd.xlane.f32.xlu0 %v1985
        %v2012 = vpop.xlane.xlu0 %2011
        %2013 = vadd.xlane.f32.xlu0 %v1986
        %v2014 = vpop.xlane.xlu0 %2013
        %2015 = vadd.xlane.f32.xlu0 %v1987
        %v2016 = vpop.xlane.xlu0 %2015
        %2017 = vadd.xlane.f32.xlu0 %v1988
        %v2018 = vpop.xlane.xlu0 %2017
        %2019 = vadd.xlane.f32.xlu0 %v1989
        %v2020 = vpop.xlane.xlu0 %2019
        %2021 = vadd.xlane.f32.xlu0 %v1990
        %v2022 = vpop.xlane.xlu0 %2021
        %v2023 = vrcp.pop %v2008
        %v2024 = vmul.f32 %v1992, %v2023
        %v2025 = vrcp.pop %v2010
        %v2026 = vmul.f32 %v1994, %v2025
        %v2027 = vrcp.pop %v2012
        %v2028 = vmul.f32 %v1996, %v2027
        %v2029 = vrcp.pop %v2014
        %v2030 = vmul.f32 %v1998, %v2029
        %v2031 = vrcp.pop %v2016
        %v2032 = vmul.f32 %v2000, %v2031
        %v2033 = vrcp.pop %v2018
        %v2034 = vmul.f32 %v2002, %v2033
        %v2035 = vrcp.pop %v2020
        %v2036 = vmul.f32 %v2004, %v2035
        %v2037 = vrcp.pop %v2022
        %v2038 = vmul.f32 %v2006, %v2037
        %s2040 = sor.u32 256, 32
        %2041 = vbcast.lane.b32.xlu0 %v1735, %s2040
        %v2042 = vpop.permute.xlu0 %2041
        %s2044 = sor.u32 256, 40
        %2045 = vbcast.lane.b32.xlu0 %v1735, %s2044
        %v2046 = vpop.permute.xlu0 %2045
        %s2048 = sor.u32 256, 48
        %2049 = vbcast.lane.b32.xlu0 %v1735, %s2048
        %v2050 = vpop.permute.xlu0 %2049
        %s2052 = sor.u32 256, 56
        %2053 = vbcast.lane.b32.xlu0 %v1735, %s2052
        %v2054 = vpop.permute.xlu0 %2053
        %s2056 = sor.u32 256, 32
        %2057 = vbcast.lane.b32.xlu0 %v1754, %s2056
        %v2058 = vpop.permute.xlu0 %2057
        %s2060 = sor.u32 256, 40
        %2061 = vbcast.lane.b32.xlu0 %v1754, %s2060
        %v2062 = vpop.permute.xlu0 %2061
        %s2064 = sor.u32 256, 48
        %2065 = vbcast.lane.b32.xlu0 %v1754, %s2064
        %v2066 = vpop.permute.xlu0 %2065
        %s2068 = sor.u32 256, 56
        %2069 = vbcast.lane.b32.xlu0 %v1754, %s2068
        %v2070 = vpop.permute.xlu0 %2069
        %s2072 = sor.u32 256, 32
        %2073 = vbcast.lane.b32.xlu0 %v1773, %s2072
        %v2074 = vpop.permute.xlu0 %2073
        %s2076 = sor.u32 256, 40
        %2077 = vbcast.lane.b32.xlu0 %v1773, %s2076
        %v2078 = vpop.permute.xlu0 %2077
        %s2080 = sor.u32 256, 48
        %2081 = vbcast.lane.b32.xlu0 %v1773, %s2080
        %v2082 = vpop.permute.xlu0 %2081
        %s2084 = sor.u32 256, 56
        %2085 = vbcast.lane.b32.xlu0 %v1773, %s2084
        %v2086 = vpop.permute.xlu0 %2085
        %s2088 = sor.u32 256, 32
        %2089 = vbcast.lane.b32.xlu0 %v1792, %s2088
        %v2090 = vpop.permute.xlu0 %2089
        %s2092 = sor.u32 256, 40
        %2093 = vbcast.lane.b32.xlu0 %v1792, %s2092
        %v2094 = vpop.permute.xlu0 %2093
        %s2096 = sor.u32 256, 48
        %2097 = vbcast.lane.b32.xlu0 %v1792, %s2096
        %v2098 = vpop.permute.xlu0 %2097
        %s2100 = sor.u32 256, 56
        %2101 = vbcast.lane.b32.xlu0 %v1792, %s2100
        %v2102 = vpop.permute.xlu0 %2101
        loop: start=0, step=1, limit=7
        $region128: #{tpu_custom_call.1} parent=51 // loop_pre_header
          _
        $region129: #{tpu_custom_call.1} parent=51 // loop_header
          %s2104 = sphi 0, %s2108
          %p2105 = scmp.ge.s32.totalorder %s2104, 7
          %v2109 = vphi 0.0, %v2198
          %v2110 = vphi 0.0, %v2199
          %v2111 = vphi 0.0, %v2200
          %v2112 = vphi 0.0, %v2201
          %v2113 = vphi 0.0, %v2202
          %v2114 = vphi 0.0, %v2203
          %v2115 = vphi 0.0, %v2204
          %v2116 = vphi 0.0, %v2205
          %v2117 = vphi 0.0, %v2206
          %v2118 = vphi 0.0, %v2207
          %v2119 = vphi 0.0, %v2208
          %v2120 = vphi 0.0, %v2209
          %v2121 = vphi 0.0, %v2210
          %v2122 = vphi 0.0, %v2211
          %v2123 = vphi 0.0, %v2212
          %v2124 = vphi 0.0, %v2213
        $region130: #{tpu_custom_call.1} parent=51 // loop_header_branch
          %2107 = sbr.rel (%p2105) target = $region134
        $region131: #{tpu_custom_call.1} parent=51 // loop_body
          %s2125 = smul.u32 %s2104, 128
          %s2126 = sshra.s32 %s2125, 7
          %s2127 = sand.u32 %s2125, 127
          %s2128 = smul.addr %s2126, 2
          %s2129 = scalar_lea.vmem [#allocation2], %s2128
          %v2130 = vld [vmem:[%s2129] sm:$0x3]
          %v2133 = vunpack.c.l.s4 1966171168
          %v2134 = vunpack.c.0.s8 %v2133
          %v2135 = vlaneseq
          %v2136 = vshrl.u32 %v2135, 7
          %v2137 = vsub.s32 %v2134, %v2136
          %v2138 = vrot.slane %v2130, %v2137
          %v2139 = vcombine.high %v2138, %v2138
          %v2140 = vlaneseq
          %v2141 = vshrl.u32 %v2140, 7
          %v2142 = vsub.s32 0, %v2141
          %v2143 = vrot.slane %v2138, %v2142
          %v2144 = vlaneseq
          %v2145 = vshrl.u32 %v2144, 7
          %v2146 = vsub.s32 0, %v2145
          %v2147 = vrot.slane %v2139, %v2146
          %v2150 = vmul.f32 %v2042, %v2143
          %v2151 = vmul.f32 %v2046, %v2143
          %v2152 = vmul.f32 %v2050, %v2143
          %v2153 = vmul.f32 %v2054, %v2143
          %v2154 = vmul.f32 %v2058, %v2147
          %v2155 = vmul.f32 %v2062, %v2147
          %v2156 = vmul.f32 %v2066, %v2147
          %v2157 = vmul.f32 %v2070, %v2147
          %v2158 = vsub.f32 %v2150, %v2074
          %v2159 = vsub.f32 %v2151, %v2078
          %v2160 = vsub.f32 %v2152, %v2082
          %v2161 = vsub.f32 %v2153, %v2086
          %v2162 = vsub.f32 %v2154, %v2090
          %v2163 = vsub.f32 %v2155, %v2094
          %v2164 = vsub.f32 %v2156, %v2098
          %v2165 = vsub.f32 %v2157, %v2102
          %v2166 = vpack.c.bf16 %v2159, %v2158
          %v2167 = vpack.c.bf16 %v2161, %v2160
          %v2168 = vpack.c.bf16 %v2163, %v2162
          %v2169 = vpack.c.bf16 %v2165, %v2164
          %v2171 = vmul.bf16 %v2166, 1069105081
          %v2172 = vpow.bf16.pop %v2171
          %v2174 = vmul.bf16 %v2167, 1069105081
          %v2175 = vpow.bf16.pop %v2174
          %v2177 = vmul.bf16 %v2168, 1069105081
          %v2178 = vpow.bf16.pop %v2177
          %v2180 = vmul.bf16 %v2169, 1069105081
          %v2181 = vpow.bf16.pop %v2180
          %v2182 = vunpack.c.l.bf16 %v2172
          %v2183 = vunpack.c.h.bf16 %v2172
          %v2184 = vunpack.c.l.bf16 %v2175
          %v2185 = vunpack.c.h.bf16 %v2175
          %v2186 = vunpack.c.l.bf16 %v2178
          %v2187 = vunpack.c.h.bf16 %v2178
          %v2188 = vunpack.c.l.bf16 %v2181
          %v2189 = vunpack.c.h.bf16 %v2181
          %v2190 = vmul.f32 %v2182, %v2143
          %v2191 = vmul.f32 %v2183, %v2143
          %v2192 = vmul.f32 %v2184, %v2143
          %v2193 = vmul.f32 %v2185, %v2143
          %v2194 = vmul.f32 %v2186, %v2147
          %v2195 = vmul.f32 %v2187, %v2147
          %v2196 = vmul.f32 %v2188, %v2147
          %v2197 = vmul.f32 %v2189, %v2147
          %v2198 = vadd.f32 %v2109, %v2190
          %v2199 = vadd.f32 %v2110, %v2191
          %v2200 = vadd.f32 %v2111, %v2192
          %v2201 = vadd.f32 %v2112, %v2193
          %v2202 = vadd.f32 %v2113, %v2194
          %v2203 = vadd.f32 %v2114, %v2195
          %v2204 = vadd.f32 %v2115, %v2196
          %v2205 = vadd.f32 %v2116, %v2197
          %v2206 = vadd.f32 %v2117, %v2182
          %v2207 = vadd.f32 %v2118, %v2183
          %v2208 = vadd.f32 %v2119, %v2184
          %v2209 = vadd.f32 %v2120, %v2185
          %v2210 = vadd.f32 %v2121, %v2186
          %v2211 = vadd.f32 %v2122, %v2187
          %v2212 = vadd.f32 %v2123, %v2188
          %v2213 = vadd.f32 %v2124, %v2189
        $region132: #{tpu_custom_call.1} parent=51 // loop_footer
          %s2108 = sadd.s32 1, %s2104
        $region133: #{tpu_custom_call.1} parent=51 // loop_footer_branch
          %2103 = sbr.rel target = $region129
        $region134: #{tpu_custom_call.1} parent=51 // loop_exit
          _
        %v2214 = vmul.f32 %v2042, %v718
        %v2215 = vmul.f32 %v2046, %v718
        %v2216 = vmul.f32 %v2050, %v718
        %v2217 = vmul.f32 %v2054, %v718
        %v2218 = vmul.f32 %v2058, %v722
        %v2219 = vmul.f32 %v2062, %v722
        %v2220 = vmul.f32 %v2066, %v722
        %v2221 = vmul.f32 %v2070, %v722
        %v2222 = vsub.f32 %v2214, %v2074
        %v2223 = vsub.f32 %v2215, %v2078
        %v2224 = vsub.f32 %v2216, %v2082
        %v2225 = vsub.f32 %v2217, %v2086
        %v2226 = vsub.f32 %v2218, %v2090
        %v2227 = vsub.f32 %v2219, %v2094
        %v2228 = vsub.f32 %v2220, %v2098
        %v2229 = vsub.f32 %v2221, %v2102
        %v2230 = vpack.c.bf16 %v2223, %v2222
        %v2231 = vpack.c.bf16 %v2225, %v2224
        %v2232 = vpack.c.bf16 %v2227, %v2226
        %v2233 = vpack.c.bf16 %v2229, %v2228
        %v2235 = vmul.bf16 %v2230, 1069105081
        %v2236 = vpow.bf16.pop %v2235
        %v2238 = vmul.bf16 %v2231, 1069105081
        %v2239 = vpow.bf16.pop %v2238
        %v2241 = vmul.bf16 %v2232, 1069105081
        %v2242 = vpow.bf16.pop %v2241
        %v2244 = vmul.bf16 %v2233, 1069105081
        %v2245 = vpow.bf16.pop %v2244
        %v2246 = vunpack.c.l.bf16 %v2236
        %v2247 = vunpack.c.h.bf16 %v2236
        %v2248 = vunpack.c.l.bf16 %v2239
        %v2249 = vunpack.c.h.bf16 %v2239
        %v2250 = vunpack.c.l.bf16 %v2242
        %v2251 = vunpack.c.h.bf16 %v2242
        %v2252 = vunpack.c.l.bf16 %v2245
        %v2253 = vunpack.c.h.bf16 %v2245
        %v2254 = vsel %vm766, %v2246, 0.0
        %v2255 = vsel %vm766, %v2247, 0.0
        %v2256 = vsel %vm766, %v2248, 0.0
        %v2257 = vsel %vm766, %v2249, 0.0
        %v2258 = vsel %vm766, %v2250, 0.0
        %v2259 = vsel %vm766, %v2251, 0.0
        %v2260 = vsel %vm766, %v2252, 0.0
        %v2261 = vsel %vm766, %v2253, 0.0
        %v2262 = vmul.f32 %v2254, %v718
        %v2263 = vmul.f32 %v2255, %v718
        %v2264 = vmul.f32 %v2256, %v718
        %v2265 = vmul.f32 %v2257, %v718
        %v2266 = vmul.f32 %v2258, %v722
        %v2267 = vmul.f32 %v2259, %v722
        %v2268 = vmul.f32 %v2260, %v722
        %v2269 = vmul.f32 %v2261, %v722
        %v2270 = vadd.f32 %v2109, %v2262
        %v2271 = vadd.f32 %v2110, %v2263
        %v2272 = vadd.f32 %v2111, %v2264
        %v2273 = vadd.f32 %v2112, %v2265
        %v2274 = vadd.f32 %v2113, %v2266
        %v2275 = vadd.f32 %v2114, %v2267
        %v2276 = vadd.f32 %v2115, %v2268
        %v2277 = vadd.f32 %v2116, %v2269
        %v2278 = vadd.f32 %v2117, %v2254
        %v2279 = vadd.f32 %v2118, %v2255
        %v2280 = vadd.f32 %v2119, %v2256
        %v2281 = vadd.f32 %v2120, %v2257
        %v2282 = vadd.f32 %v2121, %v2258
        %v2283 = vadd.f32 %v2122, %v2259
        %v2284 = vadd.f32 %v2123, %v2260
        %v2285 = vadd.f32 %v2124, %v2261
        %2286 = vadd.xlane.f32.xlu0 %v2270
        %v2287 = vpop.xlane.xlu0 %2286
        %2288 = vadd.xlane.f32.xlu0 %v2271
        %v2289 = vpop.xlane.xlu0 %2288
        %2290 = vadd.xlane.f32.xlu0 %v2272
        %v2291 = vpop.xlane.xlu0 %2290
        %2292 = vadd.xlane.f32.xlu0 %v2273
        %v2293 = vpop.xlane.xlu0 %2292
        %2294 = vadd.xlane.f32.xlu0 %v2274
        %v2295 = vpop.xlane.xlu0 %2294
        %2296 = vadd.xlane.f32.xlu0 %v2275
        %v2297 = vpop.xlane.xlu0 %2296
        %2298 = vadd.xlane.f32.xlu0 %v2276
        %v2299 = vpop.xlane.xlu0 %2298
        %2300 = vadd.xlane.f32.xlu0 %v2277
        %v2301 = vpop.xlane.xlu0 %2300
        %2302 = vadd.xlane.f32.xlu0 %v2278
        %v2303 = vpop.xlane.xlu0 %2302
        %2304 = vadd.xlane.f32.xlu0 %v2279
        %v2305 = vpop.xlane.xlu0 %2304
        %2306 = vadd.xlane.f32.xlu0 %v2280
        %v2307 = vpop.xlane.xlu0 %2306
        %2308 = vadd.xlane.f32.xlu0 %v2281
        %v2309 = vpop.xlane.xlu0 %2308
        %2310 = vadd.xlane.f32.xlu0 %v2282
        %v2311 = vpop.xlane.xlu0 %2310
        %2312 = vadd.xlane.f32.xlu0 %v2283
        %v2313 = vpop.xlane.xlu0 %2312
        %2314 = vadd.xlane.f32.xlu0 %v2284
        %v2315 = vpop.xlane.xlu0 %2314
        %2316 = vadd.xlane.f32.xlu0 %v2285
        %v2317 = vpop.xlane.xlu0 %2316
        %v2318 = vrcp.pop %v2303
        %v2319 = vmul.f32 %v2287, %v2318
        %v2320 = vrcp.pop %v2305
        %v2321 = vmul.f32 %v2289, %v2320
        %v2322 = vrcp.pop %v2307
        %v2323 = vmul.f32 %v2291, %v2322
        %v2324 = vrcp.pop %v2309
        %v2325 = vmul.f32 %v2293, %v2324
        %v2326 = vrcp.pop %v2311
        %v2327 = vmul.f32 %v2295, %v2326
        %v2328 = vrcp.pop %v2313
        %v2329 = vmul.f32 %v2297, %v2328
        %v2330 = vrcp.pop %v2315
        %v2331 = vmul.f32 %v2299, %v2330
        %v2332 = vrcp.pop %v2317
        %v2333 = vmul.f32 %v2301, %v2332
        %s2335 = sor.u32 256, 64
        %2336 = vbcast.lane.b32.xlu0 %v1735, %s2335
        %v2337 = vpop.permute.xlu0 %2336
        %s2339 = sor.u32 256, 72
        %2340 = vbcast.lane.b32.xlu0 %v1735, %s2339
        %v2341 = vpop.permute.xlu0 %2340
        %s2343 = sor.u32 256, 80
        %2344 = vbcast.lane.b32.xlu0 %v1735, %s2343
        %v2345 = vpop.permute.xlu0 %2344
        %s2347 = sor.u32 256, 88
        %2348 = vbcast.lane.b32.xlu0 %v1735, %s2347
        %v2349 = vpop.permute.xlu0 %2348
        %s2351 = sor.u32 256, 64
        %2352 = vbcast.lane.b32.xlu0 %v1754, %s2351
        %v2353 = vpop.permute.xlu0 %2352
        %s2355 = sor.u32 256, 72
        %2356 = vbcast.lane.b32.xlu0 %v1754, %s2355
        %v2357 = vpop.permute.xlu0 %2356
        %s2359 = sor.u32 256, 80
        %2360 = vbcast.lane.b32.xlu0 %v1754, %s2359
        %v2361 = vpop.permute.xlu0 %2360
        %s2363 = sor.u32 256, 88
        %2364 = vbcast.lane.b32.xlu0 %v1754, %s2363
        %v2365 = vpop.permute.xlu0 %2364
        %s2367 = sor.u32 256, 64
        %2368 = vbcast.lane.b32.xlu0 %v1773, %s2367
        %v2369 = vpop.permute.xlu0 %2368
        %s2371 = sor.u32 256, 72
        %2372 = vbcast.lane.b32.xlu0 %v1773, %s2371
        %v2373 = vpop.permute.xlu0 %2372
        %s2375 = sor.u32 256, 80
        %2376 = vbcast.lane.b32.xlu0 %v1773, %s2375
        %v2377 = vpop.permute.xlu0 %2376
        %s2379 = sor.u32 256, 88
        %2380 = vbcast.lane.b32.xlu0 %v1773, %s2379
        %v2381 = vpop.permute.xlu0 %2380
        %s2383 = sor.u32 256, 64
        %2384 = vbcast.lane.b32.xlu0 %v1792, %s2383
        %v2385 = vpop.permute.xlu0 %2384
        %s2387 = sor.u32 256, 72
        %2388 = vbcast.lane.b32.xlu0 %v1792, %s2387
        %v2389 = vpop.permute.xlu0 %2388
        %s2391 = sor.u32 256, 80
        %2392 = vbcast.lane.b32.xlu0 %v1792, %s2391
        %v2393 = vpop.permute.xlu0 %2392
        %s2395 = sor.u32 256, 88
        %2396 = vbcast.lane.b32.xlu0 %v1792, %s2395
        %v2397 = vpop.permute.xlu0 %2396
        loop: start=0, step=1, limit=7
        $region135: #{tpu_custom_call.1} parent=51 // loop_pre_header
          _
        $region136: #{tpu_custom_call.1} parent=51 // loop_header
          %s2399 = sphi 0, %s2403
          %p2400 = scmp.ge.s32.totalorder %s2399, 7
          %v2404 = vphi 0.0, %v2493
          %v2405 = vphi 0.0, %v2494
          %v2406 = vphi 0.0, %v2495
          %v2407 = vphi 0.0, %v2496
          %v2408 = vphi 0.0, %v2497
          %v2409 = vphi 0.0, %v2498
          %v2410 = vphi 0.0, %v2499
          %v2411 = vphi 0.0, %v2500
          %v2412 = vphi 0.0, %v2501
          %v2413 = vphi 0.0, %v2502
          %v2414 = vphi 0.0, %v2503
          %v2415 = vphi 0.0, %v2504
          %v2416 = vphi 0.0, %v2505
          %v2417 = vphi 0.0, %v2506
          %v2418 = vphi 0.0, %v2507
          %v2419 = vphi 0.0, %v2508
        $region137: #{tpu_custom_call.1} parent=51 // loop_header_branch
          %2402 = sbr.rel (%p2400) target = $region141
        $region138: #{tpu_custom_call.1} parent=51 // loop_body
          %s2420 = smul.u32 %s2399, 128
          %s2421 = sshra.s32 %s2420, 7
          %s2422 = sand.u32 %s2420, 127
          %s2423 = smul.addr %s2421, 2
          %s2424 = scalar_lea.vmem [#allocation2], %s2423
          %v2425 = vld [vmem:[%s2424] sm:$0x3]
          %v2428 = vunpack.c.l.s4 1966171168
          %v2429 = vunpack.c.0.s8 %v2428
          %v2430 = vlaneseq
          %v2431 = vshrl.u32 %v2430, 7
          %v2432 = vsub.s32 %v2429, %v2431
          %v2433 = vrot.slane %v2425, %v2432
          %v2434 = vcombine.high %v2433, %v2433
          %v2435 = vlaneseq
          %v2436 = vshrl.u32 %v2435, 7
          %v2437 = vsub.s32 0, %v2436
          %v2438 = vrot.slane %v2433, %v2437
          %v2439 = vlaneseq
          %v2440 = vshrl.u32 %v2439, 7
          %v2441 = vsub.s32 0, %v2440
          %v2442 = vrot.slane %v2434, %v2441
          %v2445 = vmul.f32 %v2337, %v2438
          %v2446 = vmul.f32 %v2341, %v2438
          %v2447 = vmul.f32 %v2345, %v2438
          %v2448 = vmul.f32 %v2349, %v2438
          %v2449 = vmul.f32 %v2353, %v2442
          %v2450 = vmul.f32 %v2357, %v2442
          %v2451 = vmul.f32 %v2361, %v2442
          %v2452 = vmul.f32 %v2365, %v2442
          %v2453 = vsub.f32 %v2445, %v2369
          %v2454 = vsub.f32 %v2446, %v2373
          %v2455 = vsub.f32 %v2447, %v2377
          %v2456 = vsub.f32 %v2448, %v2381
          %v2457 = vsub.f32 %v2449, %v2385
          %v2458 = vsub.f32 %v2450, %v2389
          %v2459 = vsub.f32 %v2451, %v2393
          %v2460 = vsub.f32 %v2452, %v2397
          %v2461 = vpack.c.bf16 %v2454, %v2453
          %v2462 = vpack.c.bf16 %v2456, %v2455
          %v2463 = vpack.c.bf16 %v2458, %v2457
          %v2464 = vpack.c.bf16 %v2460, %v2459
          %v2466 = vmul.bf16 %v2461, 1069105081
          %v2467 = vpow.bf16.pop %v2466
          %v2469 = vmul.bf16 %v2462, 1069105081
          %v2470 = vpow.bf16.pop %v2469
          %v2472 = vmul.bf16 %v2463, 1069105081
          %v2473 = vpow.bf16.pop %v2472
          %v2475 = vmul.bf16 %v2464, 1069105081
          %v2476 = vpow.bf16.pop %v2475
          %v2477 = vunpack.c.l.bf16 %v2467
          %v2478 = vunpack.c.h.bf16 %v2467
          %v2479 = vunpack.c.l.bf16 %v2470
          %v2480 = vunpack.c.h.bf16 %v2470
          %v2481 = vunpack.c.l.bf16 %v2473
          %v2482 = vunpack.c.h.bf16 %v2473
          %v2483 = vunpack.c.l.bf16 %v2476
          %v2484 = vunpack.c.h.bf16 %v2476
          %v2485 = vmul.f32 %v2477, %v2438
          %v2486 = vmul.f32 %v2478, %v2438
          %v2487 = vmul.f32 %v2479, %v2438
          %v2488 = vmul.f32 %v2480, %v2438
          %v2489 = vmul.f32 %v2481, %v2442
          %v2490 = vmul.f32 %v2482, %v2442
          %v2491 = vmul.f32 %v2483, %v2442
          %v2492 = vmul.f32 %v2484, %v2442
          %v2493 = vadd.f32 %v2404, %v2485
          %v2494 = vadd.f32 %v2405, %v2486
          %v2495 = vadd.f32 %v2406, %v2487
          %v2496 = vadd.f32 %v2407, %v2488
          %v2497 = vadd.f32 %v2408, %v2489
          %v2498 = vadd.f32 %v2409, %v2490
          %v2499 = vadd.f32 %v2410, %v2491
          %v2500 = vadd.f32 %v2411, %v2492
          %v2501 = vadd.f32 %v2412, %v2477
          %v2502 = vadd.f32 %v2413, %v2478
          %v2503 = vadd.f32 %v2414, %v2479
          %v2504 = vadd.f32 %v2415, %v2480
          %v2505 = vadd.f32 %v2416, %v2481
          %v2506 = vadd.f32 %v2417, %v2482
          %v2507 = vadd.f32 %v2418, %v2483
          %v2508 = vadd.f32 %v2419, %v2484
        $region139: #{tpu_custom_call.1} parent=51 // loop_footer
          %s2403 = sadd.s32 1, %s2399
        $region140: #{tpu_custom_call.1} parent=51 // loop_footer_branch
          %2398 = sbr.rel target = $region136
        $region141: #{tpu_custom_call.1} parent=51 // loop_exit
          _
        %v2509 = vmul.f32 %v2337, %v718
        %v2510 = vmul.f32 %v2341, %v718
        %v2511 = vmul.f32 %v2345, %v718
        %v2512 = vmul.f32 %v2349, %v718
        %v2513 = vmul.f32 %v2353, %v722
        %v2514 = vmul.f32 %v2357, %v722
        %v2515 = vmul.f32 %v2361, %v722
        %v2516 = vmul.f32 %v2365, %v722
        %v2517 = vsub.f32 %v2509, %v2369
        %v2518 = vsub.f32 %v2510, %v2373
        %v2519 = vsub.f32 %v2511, %v2377
        %v2520 = vsub.f32 %v2512, %v2381
        %v2521 = vsub.f32 %v2513, %v2385
        %v2522 = vsub.f32 %v2514, %v2389
        %v2523 = vsub.f32 %v2515, %v2393
        %v2524 = vsub.f32 %v2516, %v2397
        %v2525 = vpack.c.bf16 %v2518, %v2517
        %v2526 = vpack.c.bf16 %v2520, %v2519
        %v2527 = vpack.c.bf16 %v2522, %v2521
        %v2528 = vpack.c.bf16 %v2524, %v2523
        %v2530 = vmul.bf16 %v2525, 1069105081
        %v2531 = vpow.bf16.pop %v2530
        %v2533 = vmul.bf16 %v2526, 1069105081
        %v2534 = vpow.bf16.pop %v2533
        %v2536 = vmul.bf16 %v2527, 1069105081
        %v2537 = vpow.bf16.pop %v2536
        %v2539 = vmul.bf16 %v2528, 1069105081
        %v2540 = vpow.bf16.pop %v2539
        %v2541 = vunpack.c.l.bf16 %v2531
        %v2542 = vunpack.c.h.bf16 %v2531
        %v2543 = vunpack.c.l.bf16 %v2534
        %v2544 = vunpack.c.h.bf16 %v2534
        %v2545 = vunpack.c.l.bf16 %v2537
        %v2546 = vunpack.c.h.bf16 %v2537
        %v2547 = vunpack.c.l.bf16 %v2540
        %v2548 = vunpack.c.h.bf16 %v2540
        %v2549 = vsel %vm766, %v2541, 0.0
        %v2550 = vsel %vm766, %v2542, 0.0
        %v2551 = vsel %vm766, %v2543, 0.0
        %v2552 = vsel %vm766, %v2544, 0.0
        %v2553 = vsel %vm766, %v2545, 0.0
        %v2554 = vsel %vm766, %v2546, 0.0
        %v2555 = vsel %vm766, %v2547, 0.0
        %v2556 = vsel %vm766, %v2548, 0.0
        %v2557 = vmul.f32 %v2549, %v718
        %v2558 = vmul.f32 %v2550, %v718
        %v2559 = vmul.f32 %v2551, %v718
        %v2560 = vmul.f32 %v2552, %v718
        %v2561 = vmul.f32 %v2553, %v722
        %v2562 = vmul.f32 %v2554, %v722
        %v2563 = vmul.f32 %v2555, %v722
        %v2564 = vmul.f32 %v2556, %v722
        %v2565 = vadd.f32 %v2404, %v2557
        %v2566 = vadd.f32 %v2405, %v2558
        %v2567 = vadd.f32 %v2406, %v2559
        %v2568 = vadd.f32 %v2407, %v2560
        %v2569 = vadd.f32 %v2408, %v2561
        %v2570 = vadd.f32 %v2409, %v2562
        %v2571 = vadd.f32 %v2410, %v2563
        %v2572 = vadd.f32 %v2411, %v2564
        %v2573 = vadd.f32 %v2412, %v2549
        %v2574 = vadd.f32 %v2413, %v2550
        %v2575 = vadd.f32 %v2414, %v2551
        %v2576 = vadd.f32 %v2415, %v2552
        %v2577 = vadd.f32 %v2416, %v2553
        %v2578 = vadd.f32 %v2417, %v2554
        %v2579 = vadd.f32 %v2418, %v2555
        %v2580 = vadd.f32 %v2419, %v2556
        %2581 = vadd.xlane.f32.xlu0 %v2565
        %v2582 = vpop.xlane.xlu0 %2581
        %2583 = vadd.xlane.f32.xlu0 %v2566
        %v2584 = vpop.xlane.xlu0 %2583
        %2585 = vadd.xlane.f32.xlu0 %v2567
        %v2586 = vpop.xlane.xlu0 %2585
        %2587 = vadd.xlane.f32.xlu0 %v2568
        %v2588 = vpop.xlane.xlu0 %2587
        %2589 = vadd.xlane.f32.xlu0 %v2569
        %v2590 = vpop.xlane.xlu0 %2589
        %2591 = vadd.xlane.f32.xlu0 %v2570
        %v2592 = vpop.xlane.xlu0 %2591
        %2593 = vadd.xlane.f32.xlu0 %v2571
        %v2594 = vpop.xlane.xlu0 %2593
        %2595 = vadd.xlane.f32.xlu0 %v2572
        %v2596 = vpop.xlane.xlu0 %2595
        %2597 = vadd.xlane.f32.xlu0 %v2573
        %v2598 = vpop.xlane.xlu0 %2597
        %2599 = vadd.xlane.f32.xlu0 %v2574
        %v2600 = vpop.xlane.xlu0 %2599
        %2601 = vadd.xlane.f32.xlu0 %v2575
        %v2602 = vpop.xlane.xlu0 %2601
        %2603 = vadd.xlane.f32.xlu0 %v2576
        %v2604 = vpop.xlane.xlu0 %2603
        %2605 = vadd.xlane.f32.xlu0 %v2577
        %v2606 = vpop.xlane.xlu0 %2605
        %2607 = vadd.xlane.f32.xlu0 %v2578
        %v2608 = vpop.xlane.xlu0 %2607
        %2609 = vadd.xlane.f32.xlu0 %v2579
        %v2610 = vpop.xlane.xlu0 %2609
        %2611 = vadd.xlane.f32.xlu0 %v2580
        %v2612 = vpop.xlane.xlu0 %2611
        %v2613 = vrcp.pop %v2598
        %v2614 = vmul.f32 %v2582, %v2613
        %v2615 = vrcp.pop %v2600
        %v2616 = vmul.f32 %v2584, %v2615
        %v2617 = vrcp.pop %v2602
        %v2618 = vmul.f32 %v2586, %v2617
        %v2619 = vrcp.pop %v2604
        %v2620 = vmul.f32 %v2588, %v2619
        %v2621 = vrcp.pop %v2606
        %v2622 = vmul.f32 %v2590, %v2621
        %v2623 = vrcp.pop %v2608
        %v2624 = vmul.f32 %v2592, %v2623
        %v2625 = vrcp.pop %v2610
        %v2626 = vmul.f32 %v2594, %v2625
        %v2627 = vrcp.pop %v2612
        %v2628 = vmul.f32 %v2596, %v2627
        %s2630 = sor.u32 256, 96
        %2631 = vbcast.lane.b32.xlu0 %v1735, %s2630
        %v2632 = vpop.permute.xlu0 %2631
        %s2634 = sor.u32 256, 104
        %2635 = vbcast.lane.b32.xlu0 %v1735, %s2634
        %v2636 = vpop.permute.xlu0 %2635
        %s2638 = sor.u32 256, 112
        %2639 = vbcast.lane.b32.xlu0 %v1735, %s2638
        %v2640 = vpop.permute.xlu0 %2639
        %s2642 = sor.u32 256, 120
        %2643 = vbcast.lane.b32.xlu0 %v1735, %s2642
        %v2644 = vpop.permute.xlu0 %2643
        %s2646 = sor.u32 256, 96
        %2647 = vbcast.lane.b32.xlu0 %v1754, %s2646
        %v2648 = vpop.permute.xlu0 %2647
        %s2650 = sor.u32 256, 104
        %2651 = vbcast.lane.b32.xlu0 %v1754, %s2650
        %v2652 = vpop.permute.xlu0 %2651
        %s2654 = sor.u32 256, 112
        %2655 = vbcast.lane.b32.xlu0 %v1754, %s2654
        %v2656 = vpop.permute.xlu0 %2655
        %s2658 = sor.u32 256, 120
        %2659 = vbcast.lane.b32.xlu0 %v1754, %s2658
        %v2660 = vpop.permute.xlu0 %2659
        %s2662 = sor.u32 256, 96
        %2663 = vbcast.lane.b32.xlu0 %v1773, %s2662
        %v2664 = vpop.permute.xlu0 %2663
        %s2666 = sor.u32 256, 104
        %2667 = vbcast.lane.b32.xlu0 %v1773, %s2666
        %v2668 = vpop.permute.xlu0 %2667
        %s2670 = sor.u32 256, 112
        %2671 = vbcast.lane.b32.xlu0 %v1773, %s2670
        %v2672 = vpop.permute.xlu0 %2671
        %s2674 = sor.u32 256, 120
        %2675 = vbcast.lane.b32.xlu0 %v1773, %s2674
        %v2676 = vpop.permute.xlu0 %2675
        %s2678 = sor.u32 256, 96
        %2679 = vbcast.lane.b32.xlu0 %v1792, %s2678
        %v2680 = vpop.permute.xlu0 %2679
        %s2682 = sor.u32 256, 104
        %2683 = vbcast.lane.b32.xlu0 %v1792, %s2682
        %v2684 = vpop.permute.xlu0 %2683
        %s2686 = sor.u32 256, 112
        %2687 = vbcast.lane.b32.xlu0 %v1792, %s2686
        %v2688 = vpop.permute.xlu0 %2687
        %s2690 = sor.u32 256, 120
        %2691 = vbcast.lane.b32.xlu0 %v1792, %s2690
        %v2692 = vpop.permute.xlu0 %2691
        loop: start=0, step=1, limit=7
        $region142: #{tpu_custom_call.1} parent=51 // loop_pre_header
          _
        $region143: #{tpu_custom_call.1} parent=51 // loop_header
          %s2694 = sphi 0, %s2698
          %p2695 = scmp.ge.s32.totalorder %s2694, 7
          %v2699 = vphi 0.0, %v2788
          %v2700 = vphi 0.0, %v2789
          %v2701 = vphi 0.0, %v2790
          %v2702 = vphi 0.0, %v2791
          %v2703 = vphi 0.0, %v2792
          %v2704 = vphi 0.0, %v2793
          %v2705 = vphi 0.0, %v2794
          %v2706 = vphi 0.0, %v2795
          %v2707 = vphi 0.0, %v2796
          %v2708 = vphi 0.0, %v2797
          %v2709 = vphi 0.0, %v2798
          %v2710 = vphi 0.0, %v2799
          %v2711 = vphi 0.0, %v2800
          %v2712 = vphi 0.0, %v2801
          %v2713 = vphi 0.0, %v2802
          %v2714 = vphi 0.0, %v2803
        $region144: #{tpu_custom_call.1} parent=51 // loop_header_branch
          %2697 = sbr.rel (%p2695) target = $region148
        $region145: #{tpu_custom_call.1} parent=51 // loop_body
          %s2715 = smul.u32 %s2694, 128
          %s2716 = sshra.s32 %s2715, 7
          %s2717 = sand.u32 %s2715, 127
          %s2718 = smul.addr %s2716, 2
          %s2719 = scalar_lea.vmem [#allocation2], %s2718
          %v2720 = vld [vmem:[%s2719] sm:$0x3]
          %v2723 = vunpack.c.l.s4 1966171168
          %v2724 = vunpack.c.0.s8 %v2723
          %v2725 = vlaneseq
          %v2726 = vshrl.u32 %v2725, 7
          %v2727 = vsub.s32 %v2724, %v2726
          %v2728 = vrot.slane %v2720, %v2727
          %v2729 = vcombine.high %v2728, %v2728
          %v2730 = vlaneseq
          %v2731 = vshrl.u32 %v2730, 7
          %v2732 = vsub.s32 0, %v2731
          %v2733 = vrot.slane %v2728, %v2732
          %v2734 = vlaneseq
          %v2735 = vshrl.u32 %v2734, 7
          %v2736 = vsub.s32 0, %v2735
          %v2737 = vrot.slane %v2729, %v2736
          %v2740 = vmul.f32 %v2632, %v2733
          %v2741 = vmul.f32 %v2636, %v2733
          %v2742 = vmul.f32 %v2640, %v2733
          %v2743 = vmul.f32 %v2644, %v2733
          %v2744 = vmul.f32 %v2648, %v2737
          %v2745 = vmul.f32 %v2652, %v2737
          %v2746 = vmul.f32 %v2656, %v2737
          %v2747 = vmul.f32 %v2660, %v2737
          %v2748 = vsub.f32 %v2740, %v2664
          %v2749 = vsub.f32 %v2741, %v2668
          %v2750 = vsub.f32 %v2742, %v2672
          %v2751 = vsub.f32 %v2743, %v2676
          %v2752 = vsub.f32 %v2744, %v2680
          %v2753 = vsub.f32 %v2745, %v2684
          %v2754 = vsub.f32 %v2746, %v2688
          %v2755 = vsub.f32 %v2747, %v2692
          %v2756 = vpack.c.bf16 %v2749, %v2748
          %v2757 = vpack.c.bf16 %v2751, %v2750
          %v2758 = vpack.c.bf16 %v2753, %v2752
          %v2759 = vpack.c.bf16 %v2755, %v2754
          %v2761 = vmul.bf16 %v2756, 1069105081
          %v2762 = vpow.bf16.pop %v2761
          %v2764 = vmul.bf16 %v2757, 1069105081
          %v2765 = vpow.bf16.pop %v2764
          %v2767 = vmul.bf16 %v2758, 1069105081
          %v2768 = vpow.bf16.pop %v2767
          %v2770 = vmul.bf16 %v2759, 1069105081
          %v2771 = vpow.bf16.pop %v2770
          %v2772 = vunpack.c.l.bf16 %v2762
          %v2773 = vunpack.c.h.bf16 %v2762
          %v2774 = vunpack.c.l.bf16 %v2765
          %v2775 = vunpack.c.h.bf16 %v2765
          %v2776 = vunpack.c.l.bf16 %v2768
          %v2777 = vunpack.c.h.bf16 %v2768
          %v2778 = vunpack.c.l.bf16 %v2771
          %v2779 = vunpack.c.h.bf16 %v2771
          %v2780 = vmul.f32 %v2772, %v2733
          %v2781 = vmul.f32 %v2773, %v2733
          %v2782 = vmul.f32 %v2774, %v2733
          %v2783 = vmul.f32 %v2775, %v2733
          %v2784 = vmul.f32 %v2776, %v2737
          %v2785 = vmul.f32 %v2777, %v2737
          %v2786 = vmul.f32 %v2778, %v2737
          %v2787 = vmul.f32 %v2779, %v2737
          %v2788 = vadd.f32 %v2699, %v2780
          %v2789 = vadd.f32 %v2700, %v2781
          %v2790 = vadd.f32 %v2701, %v2782
          %v2791 = vadd.f32 %v2702, %v2783
          %v2792 = vadd.f32 %v2703, %v2784
          %v2793 = vadd.f32 %v2704, %v2785
          %v2794 = vadd.f32 %v2705, %v2786
          %v2795 = vadd.f32 %v2706, %v2787
          %v2796 = vadd.f32 %v2707, %v2772
          %v2797 = vadd.f32 %v2708, %v2773
          %v2798 = vadd.f32 %v2709, %v2774
          %v2799 = vadd.f32 %v2710, %v2775
          %v2800 = vadd.f32 %v2711, %v2776
          %v2801 = vadd.f32 %v2712, %v2777
          %v2802 = vadd.f32 %v2713, %v2778
          %v2803 = vadd.f32 %v2714, %v2779
        $region146: #{tpu_custom_call.1} parent=51 // loop_footer
          %s2698 = sadd.s32 1, %s2694
        $region147: #{tpu_custom_call.1} parent=51 // loop_footer_branch
          %2693 = sbr.rel target = $region143
        $region148: #{tpu_custom_call.1} parent=51 // loop_exit
          _
        %v2804 = vmul.f32 %v2632, %v718
        %v2805 = vmul.f32 %v2636, %v718
        %v2806 = vmul.f32 %v2640, %v718
        %v2807 = vmul.f32 %v2644, %v718
        %v2808 = vmul.f32 %v2648, %v722
        %v2809 = vmul.f32 %v2652, %v722
        %v2810 = vmul.f32 %v2656, %v722
        %v2811 = vmul.f32 %v2660, %v722
        %v2812 = vsub.f32 %v2804, %v2664
        %v2813 = vsub.f32 %v2805, %v2668
        %v2814 = vsub.f32 %v2806, %v2672
        %v2815 = vsub.f32 %v2807, %v2676
        %v2816 = vsub.f32 %v2808, %v2680
        %v2817 = vsub.f32 %v2809, %v2684
        %v2818 = vsub.f32 %v2810, %v2688
        %v2819 = vsub.f32 %v2811, %v2692
        %v2820 = vpack.c.bf16 %v2813, %v2812
        %v2821 = vpack.c.bf16 %v2815, %v2814
        %v2822 = vpack.c.bf16 %v2817, %v2816
        %v2823 = vpack.c.bf16 %v2819, %v2818
        %v2825 = vmul.bf16 %v2820, 1069105081
        %v2826 = vpow.bf16.pop %v2825
        %v2828 = vmul.bf16 %v2821, 1069105081
        %v2829 = vpow.bf16.pop %v2828
        %v2831 = vmul.bf16 %v2822, 1069105081
        %v2832 = vpow.bf16.pop %v2831
        %v2834 = vmul.bf16 %v2823, 1069105081
        %v2835 = vpow.bf16.pop %v2834
        %v2836 = vunpack.c.l.bf16 %v2826
        %v2837 = vunpack.c.h.bf16 %v2826
        %v2838 = vunpack.c.l.bf16 %v2829
        %v2839 = vunpack.c.h.bf16 %v2829
        %v2840 = vunpack.c.l.bf16 %v2832
        %v2841 = vunpack.c.h.bf16 %v2832
        %v2842 = vunpack.c.l.bf16 %v2835
        %v2843 = vunpack.c.h.bf16 %v2835
        %v2844 = vsel %vm766, %v2836, 0.0
        %v2845 = vsel %vm766, %v2837, 0.0
        %v2846 = vsel %vm766, %v2838, 0.0
        %v2847 = vsel %vm766, %v2839, 0.0
        %v2848 = vsel %vm766, %v2840, 0.0
        %v2849 = vsel %vm766, %v2841, 0.0
        %v2850 = vsel %vm766, %v2842, 0.0
        %v2851 = vsel %vm766, %v2843, 0.0
        %v2852 = vmul.f32 %v2844, %v718
        %v2853 = vmul.f32 %v2845, %v718
        %v2854 = vmul.f32 %v2846, %v718
        %v2855 = vmul.f32 %v2847, %v718
        %v2856 = vmul.f32 %v2848, %v722
        %v2857 = vmul.f32 %v2849, %v722
        %v2858 = vmul.f32 %v2850, %v722
        %v2859 = vmul.f32 %v2851, %v722
        %v2860 = vadd.f32 %v2699, %v2852
        %v2861 = vadd.f32 %v2700, %v2853
        %v2862 = vadd.f32 %v2701, %v2854
        %v2863 = vadd.f32 %v2702, %v2855
        %v2864 = vadd.f32 %v2703, %v2856
        %v2865 = vadd.f32 %v2704, %v2857
        %v2866 = vadd.f32 %v2705, %v2858
        %v2867 = vadd.f32 %v2706, %v2859
        %v2868 = vadd.f32 %v2707, %v2844
        %v2869 = vadd.f32 %v2708, %v2845
        %v2870 = vadd.f32 %v2709, %v2846
        %v2871 = vadd.f32 %v2710, %v2847
        %v2872 = vadd.f32 %v2711, %v2848
        %v2873 = vadd.f32 %v2712, %v2849
        %v2874 = vadd.f32 %v2713, %v2850
        %v2875 = vadd.f32 %v2714, %v2851
        %2876 = vadd.xlane.f32.xlu0 %v2860
        %v2877 = vpop.xlane.xlu0 %2876
        %2878 = vadd.xlane.f32.xlu0 %v2861
        %v2879 = vpop.xlane.xlu0 %2878
        %2880 = vadd.xlane.f32.xlu0 %v2862
        %v2881 = vpop.xlane.xlu0 %2880
        %2882 = vadd.xlane.f32.xlu0 %v2863
        %v2883 = vpop.xlane.xlu0 %2882
        %2884 = vadd.xlane.f32.xlu0 %v2864
        %v2885 = vpop.xlane.xlu0 %2884
        %2886 = vadd.xlane.f32.xlu0 %v2865
        %v2887 = vpop.xlane.xlu0 %2886
        %2888 = vadd.xlane.f32.xlu0 %v2866
        %v2889 = vpop.xlane.xlu0 %2888
        %2890 = vadd.xlane.f32.xlu0 %v2867
        %v2891 = vpop.xlane.xlu0 %2890
        %2892 = vadd.xlane.f32.xlu0 %v2868
        %v2893 = vpop.xlane.xlu0 %2892
        %2894 = vadd.xlane.f32.xlu0 %v2869
        %v2895 = vpop.xlane.xlu0 %2894
        %2896 = vadd.xlane.f32.xlu0 %v2870
        %v2897 = vpop.xlane.xlu0 %2896
        %2898 = vadd.xlane.f32.xlu0 %v2871
        %v2899 = vpop.xlane.xlu0 %2898
        %2900 = vadd.xlane.f32.xlu0 %v2872
        %v2901 = vpop.xlane.xlu0 %2900
        %2902 = vadd.xlane.f32.xlu0 %v2873
        %v2903 = vpop.xlane.xlu0 %2902
        %2904 = vadd.xlane.f32.xlu0 %v2874
        %v2905 = vpop.xlane.xlu0 %2904
        %2906 = vadd.xlane.f32.xlu0 %v2875
        %v2907 = vpop.xlane.xlu0 %2906
        %v2908 = vrcp.pop %v2893
        %v2909 = vmul.f32 %v2877, %v2908
        %v2910 = vrcp.pop %v2895
        %v2911 = vmul.f32 %v2879, %v2910
        %v2912 = vrcp.pop %v2897
        %v2913 = vmul.f32 %v2881, %v2912
        %v2914 = vrcp.pop %v2899
        %v2915 = vmul.f32 %v2883, %v2914
        %v2916 = vrcp.pop %v2901
        %v2917 = vmul.f32 %v2885, %v2916
        %v2918 = vrcp.pop %v2903
        %v2919 = vmul.f32 %v2887, %v2918
        %v2920 = vrcp.pop %v2905
        %v2921 = vmul.f32 %v2889, %v2920
        %v2922 = vrcp.pop %v2907
        %v2923 = vmul.f32 %v2891, %v2922
        %v2932 = vlaneseq
        %v2933 = vshrl.u32 %v2932, 7
        %v2934 = vsub.s32 %v703, %v2933
        %v2935 = vrot.slane %v832, %v2934
        %v2936 = vadd.s32 %v703, 4294967288
        %v2937 = vlaneseq
        %v2938 = vshrl.u32 %v2937, 7
        %v2939 = vsub.s32 %v2936, %v2938
        %v2940 = vrot.slane %v834, %v2939
        %vm2941 = vcmask 130112
        %v2942 = vsel %vm2941, %v2940, %v2935
        %v2943 = vadd.s32 %v703, 4294967280
        %v2944 = vlaneseq
        %v2945 = vshrl.u32 %v2944, 7
        %v2946 = vsub.s32 %v2943, %v2945
        %v2947 = vrot.slane %v836, %v2946
        %vm2948 = vcmask 195712
        %v2949 = vsel %vm2948, %v2947, %v2942
        %v2950 = vadd.s32 %v703, 4294967272
        %v2951 = vlaneseq
        %v2952 = vshrl.u32 %v2951, 7
        %v2953 = vsub.s32 %v2950, %v2952
        %v2954 = vrot.slane %v838, %v2953
        %vm2955 = vcmask 261312
        %v2956 = vsel %vm2955, %v2954, %v2949
        %v2957 = vlaneseq
        %v2958 = vshrl.u32 %v2957, 7
        %v2959 = vsub.s32 %v703, %v2958
        %v2960 = vrot.slane %v840, %v2959
        %v2961 = vlaneseq
        %v2962 = vshrl.u32 %v2961, 7
        %v2963 = vsub.s32 %v2936, %v2962
        %v2964 = vrot.slane %v842, %v2963
        %v2965 = vsel %vm2941, %v2964, %v2960
        %v2966 = vlaneseq
        %v2967 = vshrl.u32 %v2966, 7
        %v2968 = vsub.s32 %v2943, %v2967
        %v2969 = vrot.slane %v844, %v2968
        %v2970 = vsel %vm2948, %v2969, %v2965
        %v2971 = vlaneseq
        %v2972 = vshrl.u32 %v2971, 7
        %v2973 = vsub.s32 %v2950, %v2972
        %v2974 = vrot.slane %v846, %v2973
        %v2975 = vsel %vm2955, %v2974, %v2970
        %vm2976 = vcmask 1041409
        %v2977 = vsel %vm2976, %v2975, %v2956
        %v2987 = vadd.s32 %v703, 4294967264
        %v2988 = vlaneseq
        %v2989 = vshrl.u32 %v2988, 7
        %v2990 = vsub.s32 %v2987, %v2989
        %v2991 = vrot.slane %v1127, %v2990
        %v2992 = vadd.s32 %v703, 4294967256
        %v2993 = vlaneseq
        %v2994 = vshrl.u32 %v2993, 7
        %v2995 = vsub.s32 %v2992, %v2994
        %v2996 = vrot.slane %v1129, %v2995
        %vm2997 = vcmask 392512
        %v2998 = vsel %vm2997, %v2996, %v2991
        %v2999 = vadd.s32 %v703, 4294967248
        %v3000 = vlaneseq
        %v3001 = vshrl.u32 %v3000, 7
        %v3002 = vsub.s32 %v2999, %v3001
        %v3003 = vrot.slane %v1131, %v3002
        %vm3004 = vcmask 458112
        %v3005 = vsel %vm3004, %v3003, %v2998
        %v3006 = vadd.s32 %v703, 4294967240
        %v3007 = vlaneseq
        %v3008 = vshrl.u32 %v3007, 7
        %v3009 = vsub.s32 %v3006, %v3008
        %v3010 = vrot.slane %v1133, %v3009
        %vm3011 = vcmask 523712
        %v3012 = vsel %vm3011, %v3010, %v3005
        %v3013 = vlaneseq
        %v3014 = vshrl.u32 %v3013, 7
        %v3015 = vsub.s32 %v2987, %v3014
        %v3016 = vrot.slane %v1135, %v3015
        %v3017 = vlaneseq
        %v3018 = vshrl.u32 %v3017, 7
        %v3019 = vsub.s32 %v2992, %v3018
        %v3020 = vrot.slane %v1137, %v3019
        %v3021 = vsel %vm2997, %v3020, %v3016
        %v3022 = vlaneseq
        %v3023 = vshrl.u32 %v3022, 7
        %v3024 = vsub.s32 %v2999, %v3023
        %v3025 = vrot.slane %v1139, %v3024
        %v3026 = vsel %vm3004, %v3025, %v3021
        %v3027 = vlaneseq
        %v3028 = vshrl.u32 %v3027, 7
        %v3029 = vsub.s32 %v3006, %v3028
        %v3030 = vrot.slane %v1141, %v3029
        %v3031 = vsel %vm3011, %v3030, %v3026
        %v3032 = vsel %vm2976, %v3031, %v3012
        %v3042 = vadd.s32 %v703, 4294967232
        %v3043 = vlaneseq
        %v3044 = vshrl.u32 %v3043, 7
        %v3045 = vsub.s32 %v3042, %v3044
        %v3046 = vrot.slane %v1422, %v3045
        %v3047 = vadd.s32 %v703, 4294967224
        %v3048 = vlaneseq
        %v3049 = vshrl.u32 %v3048, 7
        %v3050 = vsub.s32 %v3047, %v3049
        %v3051 = vrot.slane %v1424, %v3050
        %vm3052 = vcmask 654912
        %v3053 = vsel %vm3052, %v3051, %v3046
        %v3054 = vadd.s32 %v703, 4294967216
        %v3055 = vlaneseq
        %v3056 = vshrl.u32 %v3055, 7
        %v3057 = vsub.s32 %v3054, %v3056
        %v3058 = vrot.slane %v1426, %v3057
        %vm3059 = vcmask 720512
        %v3060 = vsel %vm3059, %v3058, %v3053
        %v3061 = vadd.s32 %v703, 4294967208
        %v3062 = vlaneseq
        %v3063 = vshrl.u32 %v3062, 7
        %v3064 = vsub.s32 %v3061, %v3063
        %v3065 = vrot.slane %v1428, %v3064
        %vm3066 = vcmask 786112
        %v3067 = vsel %vm3066, %v3065, %v3060
        %v3068 = vlaneseq
        %v3069 = vshrl.u32 %v3068, 7
        %v3070 = vsub.s32 %v3042, %v3069
        %v3071 = vrot.slane %v1430, %v3070
        %v3072 = vlaneseq
        %v3073 = vshrl.u32 %v3072, 7
        %v3074 = vsub.s32 %v3047, %v3073
        %v3075 = vrot.slane %v1432, %v3074
        %v3076 = vsel %vm3052, %v3075, %v3071
        %v3077 = vlaneseq
        %v3078 = vshrl.u32 %v3077, 7
        %v3079 = vsub.s32 %v3054, %v3078
        %v3080 = vrot.slane %v1434, %v3079
        %v3081 = vsel %vm3059, %v3080, %v3076
        %v3082 = vlaneseq
        %v3083 = vshrl.u32 %v3082, 7
        %v3084 = vsub.s32 %v3061, %v3083
        %v3085 = vrot.slane %v1436, %v3084
        %v3086 = vsel %vm3066, %v3085, %v3081
        %v3087 = vsel %vm2976, %v3086, %v3067
        %v3097 = vadd.s32 %v703, 4294967200
        %v3098 = vlaneseq
        %v3099 = vshrl.u32 %v3098, 7
        %v3100 = vsub.s32 %v3097, %v3099
        %v3101 = vrot.slane %v1717, %v3100
        %v3102 = vadd.s32 %v703, 4294967192
        %v3103 = vlaneseq
        %v3104 = vshrl.u32 %v3103, 7
        %v3105 = vsub.s32 %v3102, %v3104
        %v3106 = vrot.slane %v1719, %v3105
        %vm3107 = vcmask 917312
        %v3108 = vsel %vm3107, %v3106, %v3101
        %v3109 = vadd.s32 %v703, 4294967184
        %v3110 = vlaneseq
        %v3111 = vshrl.u32 %v3110, 7
        %v3112 = vsub.s32 %v3109, %v3111
        %v3113 = vrot.slane %v1721, %v3112
        %vm3114 = vcmask 982912
        %v3115 = vsel %vm3114, %v3113, %v3108
        %v3116 = vadd.s32 %v703, 4294967176
        %v3117 = vlaneseq
        %v3118 = vshrl.u32 %v3117, 7
        %v3119 = vsub.s32 %v3116, %v3118
        %v3120 = vrot.slane %v1723, %v3119
        %vm3121 = vcmask 1048512
        %v3122 = vsel %vm3121, %v3120, %v3115
        %v3123 = vlaneseq
        %v3124 = vshrl.u32 %v3123, 7
        %v3125 = vsub.s32 %v3097, %v3124
        %v3126 = vrot.slane %v1725, %v3125
        %v3127 = vlaneseq
        %v3128 = vshrl.u32 %v3127, 7
        %v3129 = vsub.s32 %v3102, %v3128
        %v3130 = vrot.slane %v1727, %v3129
        %v3131 = vsel %vm3107, %v3130, %v3126
        %v3132 = vlaneseq
        %v3133 = vshrl.u32 %v3132, 7
        %v3134 = vsub.s32 %v3109, %v3133
        %v3135 = vrot.slane %v1729, %v3134
        %v3136 = vsel %vm3114, %v3135, %v3131
        %v3137 = vlaneseq
        %v3138 = vshrl.u32 %v3137, 7
        %v3139 = vsub.s32 %v3116, %v3138
        %v3140 = vrot.slane %v1731, %v3139
        %v3141 = vsel %vm3121, %v3140, %v3136
        %v3142 = vsel %vm2976, %v3141, %v3122
        %v3152 = vlaneseq
        %v3153 = vshrl.u32 %v3152, 7
        %v3154 = vsub.s32 %v703, %v3153
        %v3155 = vrot.slane %v2024, %v3154
        %v3156 = vlaneseq
        %v3157 = vshrl.u32 %v3156, 7
        %v3158 = vsub.s32 %v2936, %v3157
        %v3159 = vrot.slane %v2026, %v3158
        %v3160 = vsel %vm2941, %v3159, %v3155
        %v3161 = vlaneseq
        %v3162 = vshrl.u32 %v3161, 7
        %v3163 = vsub.s32 %v2943, %v3162
        %v3164 = vrot.slane %v2028, %v3163
        %v3165 = vsel %vm2948, %v3164, %v3160
        %v3166 = vlaneseq
        %v3167 = vshrl.u32 %v3166, 7
        %v3168 = vsub.s32 %v2950, %v3167
        %v3169 = vrot.slane %v2030, %v3168
        %v3170 = vsel %vm2955, %v3169, %v3165
        %v3171 = vlaneseq
        %v3172 = vshrl.u32 %v3171, 7
        %v3173 = vsub.s32 %v703, %v3172
        %v3174 = vrot.slane %v2032, %v3173
        %v3175 = vlaneseq
        %v3176 = vshrl.u32 %v3175, 7
        %v3177 = vsub.s32 %v2936, %v3176
        %v3178 = vrot.slane %v2034, %v3177
        %v3179 = vsel %vm2941, %v3178, %v3174
        %v3180 = vlaneseq
        %v3181 = vshrl.u32 %v3180, 7
        %v3182 = vsub.s32 %v2943, %v3181
        %v3183 = vrot.slane %v2036, %v3182
        %v3184 = vsel %vm2948, %v3183, %v3179
        %v3185 = vlaneseq
        %v3186 = vshrl.u32 %v3185, 7
        %v3187 = vsub.s32 %v2950, %v3186
        %v3188 = vrot.slane %v2038, %v3187
        %v3189 = vsel %vm2955, %v3188, %v3184
        %v3190 = vsel %vm2976, %v3189, %v3170
        %v3200 = vlaneseq
        %v3201 = vshrl.u32 %v3200, 7
        %v3202 = vsub.s32 %v2987, %v3201
        %v3203 = vrot.slane %v2319, %v3202
        %v3204 = vlaneseq
        %v3205 = vshrl.u32 %v3204, 7
        %v3206 = vsub.s32 %v2992, %v3205
        %v3207 = vrot.slane %v2321, %v3206
        %v3208 = vsel %vm2997, %v3207, %v3203
        %v3209 = vlaneseq
        %v3210 = vshrl.u32 %v3209, 7
        %v3211 = vsub.s32 %v2999, %v3210
        %v3212 = vrot.slane %v2323, %v3211
        %v3213 = vsel %vm3004, %v3212, %v3208
        %v3214 = vlaneseq
        %v3215 = vshrl.u32 %v3214, 7
        %v3216 = vsub.s32 %v3006, %v3215
        %v3217 = vrot.slane %v2325, %v3216
        %v3218 = vsel %vm3011, %v3217, %v3213
        %v3219 = vlaneseq
        %v3220 = vshrl.u32 %v3219, 7
        %v3221 = vsub.s32 %v2987, %v3220
        %v3222 = vrot.slane %v2327, %v3221
        %v3223 = vlaneseq
        %v3224 = vshrl.u32 %v3223, 7
        %v3225 = vsub.s32 %v2992, %v3224
        %v3226 = vrot.slane %v2329, %v3225
        %v3227 = vsel %vm2997, %v3226, %v3222
        %v3228 = vlaneseq
        %v3229 = vshrl.u32 %v3228, 7
        %v3230 = vsub.s32 %v2999, %v3229
        %v3231 = vrot.slane %v2331, %v3230
        %v3232 = vsel %vm3004, %v3231, %v3227
        %v3233 = vlaneseq
        %v3234 = vshrl.u32 %v3233, 7
        %v3235 = vsub.s32 %v3006, %v3234
        %v3236 = vrot.slane %v2333, %v3235
        %v3237 = vsel %vm3011, %v3236, %v3232
        %v3238 = vsel %vm2976, %v3237, %v3218
        %v3248 = vlaneseq
        %v3249 = vshrl.u32 %v3248, 7
        %v3250 = vsub.s32 %v3042, %v3249
        %v3251 = vrot.slane %v2614, %v3250
        %v3252 = vlaneseq
        %v3253 = vshrl.u32 %v3252, 7
        %v3254 = vsub.s32 %v3047, %v3253
        %v3255 = vrot.slane %v2616, %v3254
        %v3256 = vsel %vm3052, %v3255, %v3251
        %v3257 = vlaneseq
        %v3258 = vshrl.u32 %v3257, 7
        %v3259 = vsub.s32 %v3054, %v3258
        %v3260 = vrot.slane %v2618, %v3259
        %v3261 = vsel %vm3059, %v3260, %v3256
        %v3262 = vlaneseq
        %v3263 = vshrl.u32 %v3262, 7
        %v3264 = vsub.s32 %v3061, %v3263
        %v3265 = vrot.slane %v2620, %v3264
        %v3266 = vsel %vm3066, %v3265, %v3261
        %v3267 = vlaneseq
        %v3268 = vshrl.u32 %v3267, 7
        %v3269 = vsub.s32 %v3042, %v3268
        %v3270 = vrot.slane %v2622, %v3269
        %v3271 = vlaneseq
        %v3272 = vshrl.u32 %v3271, 7
        %v3273 = vsub.s32 %v3047, %v3272
        %v3274 = vrot.slane %v2624, %v3273
        %v3275 = vsel %vm3052, %v3274, %v3270
        %v3276 = vlaneseq
        %v3277 = vshrl.u32 %v3276, 7
        %v3278 = vsub.s32 %v3054, %v3277
        %v3279 = vrot.slane %v2626, %v3278
        %v3280 = vsel %vm3059, %v3279, %v3275
        %v3281 = vlaneseq
        %v3282 = vshrl.u32 %v3281, 7
        %v3283 = vsub.s32 %v3061, %v3282
        %v3284 = vrot.slane %v2628, %v3283
        %v3285 = vsel %vm3066, %v3284, %v3280
        %v3286 = vsel %vm2976, %v3285, %v3266
        %v3296 = vlaneseq
        %v3297 = vshrl.u32 %v3296, 7
        %v3298 = vsub.s32 %v3097, %v3297
        %v3299 = vrot.slane %v2909, %v3298
        %v3300 = vlaneseq
        %v3301 = vshrl.u32 %v3300, 7
        %v3302 = vsub.s32 %v3102, %v3301
        %v3303 = vrot.slane %v2911, %v3302
        %v3304 = vsel %vm3107, %v3303, %v3299
        %v3305 = vlaneseq
        %v3306 = vshrl.u32 %v3305, 7
        %v3307 = vsub.s32 %v3109, %v3306
        %v3308 = vrot.slane %v2913, %v3307
        %v3309 = vsel %vm3114, %v3308, %v3304
        %v3310 = vlaneseq
        %v3311 = vshrl.u32 %v3310, 7
        %v3312 = vsub.s32 %v3116, %v3311
        %v3313 = vrot.slane %v2915, %v3312
        %v3314 = vsel %vm3121, %v3313, %v3309
        %v3315 = vlaneseq
        %v3316 = vshrl.u32 %v3315, 7
        %v3317 = vsub.s32 %v3097, %v3316
        %v3318 = vrot.slane %v2917, %v3317
        %v3319 = vlaneseq
        %v3320 = vshrl.u32 %v3319, 7
        %v3321 = vsub.s32 %v3102, %v3320
        %v3322 = vrot.slane %v2919, %v3321
        %v3323 = vsel %vm3107, %v3322, %v3318
        %v3324 = vlaneseq
        %v3325 = vshrl.u32 %v3324, 7
        %v3326 = vsub.s32 %v3109, %v3325
        %v3327 = vrot.slane %v2921, %v3326
        %v3328 = vsel %vm3114, %v3327, %v3323
        %v3329 = vlaneseq
        %v3330 = vshrl.u32 %v3329, 7
        %v3331 = vsub.s32 %v3116, %v3330
        %v3332 = vrot.slane %v2923, %v3331
        %v3333 = vsel %vm3121, %v3332, %v3328
        %v3334 = vsel %vm2976, %v3333, %v3314
        %vm3336 = vcmask 261120
        %v3337 = vsel %vm3336, %v2977, %v3032
        %vm3338 = vcmask 523264
        %v3339 = vsel %vm3338, %v3337, %v3087
        %vm3340 = vcmask 785408
        %v3341 = vsel %vm3340, %v3339, %v3142
        %v3342 = vsel %vm3336, %v3190, %v3238
        %v3343 = vsel %vm3338, %v3342, %v3286
        %v3344 = vsel %vm3340, %v3343, %v3334
        %v3345 = vld [vmem:[#allocation3] sm:$0xff]
        %v3346 = vld [vmem:[#allocation3 + $0x8] sm:$0xff]
        %v3347 = vpack.c.bf16 %v3341, %v3341
        %v3348 = vpack.c.bf16 %v3344, %v3344
        %v3349 = vld [vmem:[%s398] sm:$0xff]
        %v3350 = vld [vmem:[%s398 + $0x8] sm:$0xff]
        %v3351 = vld [vmem:[%s398 + $0x10] sm:$0xff]
        %v3352 = vld [vmem:[%s398 + $0x18] sm:$0xff]
        %v3353 = vld [vmem:[%s398 + $0x20] sm:$0xff]
        %v3354 = vld [vmem:[%s398 + $0x28] sm:$0xff]
        %v3355 = vld [vmem:[%s398 + $0x30] sm:$0xff]
        %v3356 = vld [vmem:[%s398 + $0x38] sm:$0xff]
        %v3357 = vld [vmem:[%s398 + $0x40] sm:$0xff]
        %v3358 = vld [vmem:[%s398 + $0x48] sm:$0xff]
        %v3359 = vld [vmem:[%s398 + $0x50] sm:$0xff]
        %v3360 = vld [vmem:[%s398 + $0x58] sm:$0xff]
        %v3361 = vld [vmem:[%s398 + $0x60] sm:$0xff]
        %v3362 = vld [vmem:[%s398 + $0x68] sm:$0xff]
        %v3363 = vld [vmem:[%s398 + $0x70] sm:$0xff]
        %v3364 = vld [vmem:[%s398 + $0x78] sm:$0xff]
        %v3365 = vld [vmem:[%s398 + $0x80] sm:$0xff]
        %v3366 = vld [vmem:[%s398 + $0x88] sm:$0xff]
        %v3367 = vld [vmem:[%s398 + $0x90] sm:$0xff]
        %v3368 = vld [vmem:[%s398 + $0x98] sm:$0xff]
        %v3369 = vld [vmem:[%s398 + $0xa0] sm:$0xff]
        %v3370 = vld [vmem:[%s398 + $0xa8] sm:$0xff]
        %v3371 = vld [vmem:[%s398 + $0xb0] sm:$0xff]
        %v3372 = vld [vmem:[%s398 + $0xb8] sm:$0xff]
        %v3373 = vld [vmem:[%s398 + $0xc0] sm:$0xff]
        %v3374 = vld [vmem:[%s398 + $0xc8] sm:$0xff]
        %v3375 = vld [vmem:[%s398 + $0xd0] sm:$0xff]
        %v3376 = vld [vmem:[%s398 + $0xd8] sm:$0xff]
        %v3377 = vld [vmem:[%s398 + $0xe0] sm:$0xff]
        %v3378 = vld [vmem:[%s398 + $0xe8] sm:$0xff]
        %v3379 = vld [vmem:[%s398 + $0xf0] sm:$0xff]
        %v3380 = vld [vmem:[%s398 + $0xf8] sm:$0xff]
        %v3381 = vld [vmem:[%s398 + $0x100] sm:$0xff]
        %v3382 = vld [vmem:[%s398 + $0x108] sm:$0xff]
        %v3383 = vld [vmem:[%s398 + $0x110] sm:$0xff]
        %v3384 = vld [vmem:[%s398 + $0x118] sm:$0xff]
        %v3385 = vld [vmem:[%s398 + $0x120] sm:$0xff]
        %v3386 = vld [vmem:[%s398 + $0x128] sm:$0xff]
        %v3387 = vld [vmem:[%s398 + $0x130] sm:$0xff]
        %v3388 = vld [vmem:[%s398 + $0x138] sm:$0xff]
        %v3389 = vld [vmem:[%s398 + $0x140] sm:$0xff]
        %v3390 = vld [vmem:[%s398 + $0x148] sm:$0xff]
        %v3391 = vld [vmem:[%s398 + $0x150] sm:$0xff]
        %v3392 = vld [vmem:[%s398 + $0x158] sm:$0xff]
        %v3393 = vld [vmem:[%s398 + $0x160] sm:$0xff]
        %v3394 = vld [vmem:[%s398 + $0x168] sm:$0xff]
        %v3395 = vld [vmem:[%s398 + $0x170] sm:$0xff]
        %v3396 = vld [vmem:[%s398 + $0x178] sm:$0xff]
        %v3397 = vld [vmem:[%s398 + $0x180] sm:$0xff]
        %v3398 = vld [vmem:[%s398 + $0x188] sm:$0xff]
        %v3399 = vld [vmem:[%s398 + $0x190] sm:$0xff]
        %v3400 = vld [vmem:[%s398 + $0x198] sm:$0xff]
        %v3401 = vld [vmem:[%s398 + $0x1a0] sm:$0xff]
        %v3402 = vld [vmem:[%s398 + $0x1a8] sm:$0xff]
        %v3403 = vld [vmem:[%s398 + $0x1b0] sm:$0xff]
        %v3404 = vld [vmem:[%s398 + $0x1b8] sm:$0xff]
        %v3405 = vld [vmem:[%s398 + $0x1c0] sm:$0xff]
        %v3406 = vld [vmem:[%s398 + $0x1c8] sm:$0xff]
        %v3407 = vld [vmem:[%s398 + $0x1d0] sm:$0xff]
        %v3408 = vld [vmem:[%s398 + $0x1d8] sm:$0xff]
        %v3409 = vld [vmem:[%s398 + $0x1e0] sm:$0xff]
        %v3410 = vld [vmem:[%s398 + $0x1e8] sm:$0xff]
        %v3411 = vld [vmem:[%s398 + $0x1f0] sm:$0xff]
        %v3412 = vld [vmem:[%s398 + $0x1f8] sm:$0xff]
        %v3413 = vld [vmem:[%s398 + $0x200] sm:$0xff]
        %v3414 = vld [vmem:[%s398 + $0x208] sm:$0xff]
        %v3415 = vld [vmem:[%s398 + $0x210] sm:$0xff]
        %v3416 = vld [vmem:[%s398 + $0x218] sm:$0xff]
        %v3417 = vld [vmem:[%s398 + $0x220] sm:$0xff]
        %v3418 = vld [vmem:[%s398 + $0x228] sm:$0xff]
        %v3419 = vld [vmem:[%s398 + $0x230] sm:$0xff]
        %v3420 = vld [vmem:[%s398 + $0x238] sm:$0xff]
        %v3421 = vld [vmem:[%s398 + $0x240] sm:$0xff]
        %v3422 = vld [vmem:[%s398 + $0x248] sm:$0xff]
        %v3423 = vld [vmem:[%s398 + $0x250] sm:$0xff]
        %v3424 = vld [vmem:[%s398 + $0x258] sm:$0xff]
        %v3425 = vld [vmem:[%s398 + $0x260] sm:$0xff]
        %v3426 = vld [vmem:[%s398 + $0x268] sm:$0xff]
        %v3427 = vld [vmem:[%s398 + $0x270] sm:$0xff]
        %v3428 = vld [vmem:[%s398 + $0x278] sm:$0xff]
        %v3429 = vld [vmem:[%s398 + $0x280] sm:$0xff]
        %v3430 = vld [vmem:[%s398 + $0x288] sm:$0xff]
        %v3431 = vld [vmem:[%s398 + $0x290] sm:$0xff]
        %v3432 = vld [vmem:[%s398 + $0x298] sm:$0xff]
        %v3433 = vld [vmem:[%s398 + $0x2a0] sm:$0xff]
        %v3434 = vld [vmem:[%s398 + $0x2a8] sm:$0xff]
        %v3435 = vld [vmem:[%s398 + $0x2b0] sm:$0xff]
        %v3436 = vld [vmem:[%s398 + $0x2b8] sm:$0xff]
        %v3437 = vld [vmem:[%s398 + $0x2c0] sm:$0xff]
        %v3438 = vld [vmem:[%s398 + $0x2c8] sm:$0xff]
        %v3439 = vld [vmem:[%s398 + $0x2d0] sm:$0xff]
        %v3440 = vld [vmem:[%s398 + $0x2d8] sm:$0xff]
        %v3441 = vld [vmem:[%s398 + $0x2e0] sm:$0xff]
        %v3442 = vld [vmem:[%s398 + $0x2e8] sm:$0xff]
        %v3443 = vld [vmem:[%s398 + $0x2f0] sm:$0xff]
        %v3444 = vld [vmem:[%s398 + $0x2f8] sm:$0xff]
        %v3445 = vld [vmem:[%s398 + $0x300] sm:$0xff]
        %v3446 = vld [vmem:[%s398 + $0x308] sm:$0xff]
        %v3447 = vld [vmem:[%s398 + $0x310] sm:$0xff]
        %v3448 = vld [vmem:[%s398 + $0x318] sm:$0xff]
        %v3449 = vld [vmem:[%s398 + $0x320] sm:$0xff]
        %v3450 = vld [vmem:[%s398 + $0x328] sm:$0xff]
        %v3451 = vld [vmem:[%s398 + $0x330] sm:$0xff]
        %v3452 = vld [vmem:[%s398 + $0x338] sm:$0xff]
        %v3453 = vld [vmem:[%s398 + $0x340] sm:$0xff]
        %v3454 = vld [vmem:[%s398 + $0x348] sm:$0xff]
        %v3455 = vld [vmem:[%s398 + $0x350] sm:$0xff]
        %v3456 = vld [vmem:[%s398 + $0x358] sm:$0xff]
        %v3457 = vld [vmem:[%s398 + $0x360] sm:$0xff]
        %v3458 = vld [vmem:[%s398 + $0x368] sm:$0xff]
        %v3459 = vld [vmem:[%s398 + $0x370] sm:$0xff]
        %v3460 = vld [vmem:[%s398 + $0x378] sm:$0xff]
        %v3461 = vld [vmem:[%s398 + $0x380] sm:$0xff]
        %v3462 = vld [vmem:[%s398 + $0x388] sm:$0xff]
        %v3463 = vld [vmem:[%s398 + $0x390] sm:$0xff]
        %v3464 = vld [vmem:[%s398 + $0x398] sm:$0xff]
        %v3465 = vld [vmem:[%s398 + $0x3a0] sm:$0xff]
        %v3466 = vld [vmem:[%s398 + $0x3a8] sm:$0xff]
        %v3467 = vld [vmem:[%s398 + $0x3b0] sm:$0xff]
        %v3468 = vld [vmem:[%s398 + $0x3b8] sm:$0xff]
        %v3469 = vld [vmem:[%s398 + $0x3c0] sm:$0xff]
        %v3470 = vld [vmem:[%s398 + $0x3c8] sm:$0xff]
        %v3471 = vld [vmem:[%s398 + $0x3d0] sm:$0xff]
        %v3472 = vld [vmem:[%s398 + $0x3d8] sm:$0xff]
        %v3473 = vld [vmem:[%s398 + $0x3e0] sm:$0xff]
        %v3474 = vld [vmem:[%s398 + $0x3e8] sm:$0xff]
        %v3475 = vld [vmem:[%s398 + $0x3f0] sm:$0xff]
        %v3476 = vld [vmem:[%s398 + $0x3f8] sm:$0xff]
        %v3605 = vunpack.c.l.b16 %v3349
        %v3606 = vunpack.c.h.b16 %v3349
        %v3607 = vunpack.c.l.b16 %v3350
        %v3608 = vunpack.c.h.b16 %v3350
        %v3609 = vunpack.c.l.b16 %v3351
        %v3610 = vunpack.c.h.b16 %v3351
        %v3611 = vunpack.c.l.b16 %v3352
        %v3612 = vunpack.c.h.b16 %v3352
        %v3613 = vunpack.c.l.b16 %v3353
        %v3614 = vunpack.c.h.b16 %v3353
        %v3615 = vunpack.c.l.b16 %v3354
        %v3616 = vunpack.c.h.b16 %v3354
        %v3617 = vunpack.c.l.b16 %v3355
        %v3618 = vunpack.c.h.b16 %v3355
        %v3619 = vunpack.c.l.b16 %v3356
        %v3620 = vunpack.c.h.b16 %v3356
        %v3621 = vunpack.c.l.b16 %v3357
        %v3622 = vunpack.c.h.b16 %v3357
        %v3623 = vunpack.c.l.b16 %v3358
        %v3624 = vunpack.c.h.b16 %v3358
        %v3625 = vunpack.c.l.b16 %v3359
        %v3626 = vunpack.c.h.b16 %v3359
        %v3627 = vunpack.c.l.b16 %v3360
        %v3628 = vunpack.c.h.b16 %v3360
        %v3629 = vunpack.c.l.b16 %v3361
        %v3630 = vunpack.c.h.b16 %v3361
        %v3631 = vunpack.c.l.b16 %v3362
        %v3632 = vunpack.c.h.b16 %v3362
        %v3633 = vunpack.c.l.b16 %v3363
        %v3634 = vunpack.c.h.b16 %v3363
        %v3635 = vunpack.c.l.b16 %v3364
        %v3636 = vunpack.c.h.b16 %v3364
        %v3637 = vunpack.c.l.b16 %v3365
        %v3638 = vunpack.c.h.b16 %v3365
        %v3639 = vunpack.c.l.b16 %v3366
        %v3640 = vunpack.c.h.b16 %v3366
        %v3641 = vunpack.c.l.b16 %v3367
        %v3642 = vunpack.c.h.b16 %v3367
        %v3643 = vunpack.c.l.b16 %v3368
        %v3644 = vunpack.c.h.b16 %v3368
        %v3645 = vunpack.c.l.b16 %v3369
        %v3646 = vunpack.c.h.b16 %v3369
        %v3647 = vunpack.c.l.b16 %v3370
        %v3648 = vunpack.c.h.b16 %v3370
        %v3649 = vunpack.c.l.b16 %v3371
        %v3650 = vunpack.c.h.b16 %v3371
        %v3651 = vunpack.c.l.b16 %v3372
        %v3652 = vunpack.c.h.b16 %v3372
        %v3653 = vunpack.c.l.b16 %v3373
        %v3654 = vunpack.c.h.b16 %v3373
        %v3655 = vunpack.c.l.b16 %v3374
        %v3656 = vunpack.c.h.b16 %v3374
        %v3657 = vunpack.c.l.b16 %v3375
        %v3658 = vunpack.c.h.b16 %v3375
        %v3659 = vunpack.c.l.b16 %v3376
        %v3660 = vunpack.c.h.b16 %v3376
        %v3661 = vunpack.c.l.b16 %v3377
        %v3662 = vunpack.c.h.b16 %v3377
        %v3663 = vunpack.c.l.b16 %v3378
        %v3664 = vunpack.c.h.b16 %v3378
        %v3665 = vunpack.c.l.b16 %v3379
        %v3666 = vunpack.c.h.b16 %v3379
        %v3667 = vunpack.c.l.b16 %v3380
        %v3668 = vunpack.c.h.b16 %v3380
        %v3669 = vunpack.c.l.b16 %v3381
        %v3670 = vunpack.c.h.b16 %v3381
        %v3671 = vunpack.c.l.b16 %v3382
        %v3672 = vunpack.c.h.b16 %v3382
        %v3673 = vunpack.c.l.b16 %v3383
        %v3674 = vunpack.c.h.b16 %v3383
        %v3675 = vunpack.c.l.b16 %v3384
        %v3676 = vunpack.c.h.b16 %v3384
        %v3677 = vunpack.c.l.b16 %v3385
        %v3678 = vunpack.c.h.b16 %v3385
        %v3679 = vunpack.c.l.b16 %v3386
        %v3680 = vunpack.c.h.b16 %v3386
        %v3681 = vunpack.c.l.b16 %v3387
        %v3682 = vunpack.c.h.b16 %v3387
        %v3683 = vunpack.c.l.b16 %v3388
        %v3684 = vunpack.c.h.b16 %v3388
        %v3685 = vunpack.c.l.b16 %v3389
        %v3686 = vunpack.c.h.b16 %v3389
        %v3687 = vunpack.c.l.b16 %v3390
        %v3688 = vunpack.c.h.b16 %v3390
        %v3689 = vunpack.c.l.b16 %v3391
        %v3690 = vunpack.c.h.b16 %v3391
        %v3691 = vunpack.c.l.b16 %v3392
        %v3692 = vunpack.c.h.b16 %v3392
        %v3693 = vunpack.c.l.b16 %v3393
        %v3694 = vunpack.c.h.b16 %v3393
        %v3695 = vunpack.c.l.b16 %v3394
        %v3696 = vunpack.c.h.b16 %v3394
        %v3697 = vunpack.c.l.b16 %v3395
        %v3698 = vunpack.c.h.b16 %v3395
        %v3699 = vunpack.c.l.b16 %v3396
        %v3700 = vunpack.c.h.b16 %v3396
        %v3701 = vunpack.c.l.b16 %v3397
        %v3702 = vunpack.c.h.b16 %v3397
        %v3703 = vunpack.c.l.b16 %v3398
        %v3704 = vunpack.c.h.b16 %v3398
        %v3705 = vunpack.c.l.b16 %v3399
        %v3706 = vunpack.c.h.b16 %v3399
        %v3707 = vunpack.c.l.b16 %v3400
        %v3708 = vunpack.c.h.b16 %v3400
        %v3709 = vunpack.c.l.b16 %v3401
        %v3710 = vunpack.c.h.b16 %v3401
        %v3711 = vunpack.c.l.b16 %v3402
        %v3712 = vunpack.c.h.b16 %v3402
        %v3713 = vunpack.c.l.b16 %v3403
        %v3714 = vunpack.c.h.b16 %v3403
        %v3715 = vunpack.c.l.b16 %v3404
        %v3716 = vunpack.c.h.b16 %v3404
        %v3717 = vunpack.c.l.b16 %v3405
        %v3718 = vunpack.c.h.b16 %v3405
        %v3719 = vunpack.c.l.b16 %v3406
        %v3720 = vunpack.c.h.b16 %v3406
        %v3721 = vunpack.c.l.b16 %v3407
        %v3722 = vunpack.c.h.b16 %v3407
        %v3723 = vunpack.c.l.b16 %v3408
        %v3724 = vunpack.c.h.b16 %v3408
        %v3725 = vunpack.c.l.b16 %v3409
        %v3726 = vunpack.c.h.b16 %v3409
        %v3727 = vunpack.c.l.b16 %v3410
        %v3728 = vunpack.c.h.b16 %v3410
        %v3729 = vunpack.c.l.b16 %v3411
        %v3730 = vunpack.c.h.b16 %v3411
        %v3731 = vunpack.c.l.b16 %v3412
        %v3732 = vunpack.c.h.b16 %v3412
        %v3733 = vunpack.c.l.b16 %v3413
        %v3734 = vunpack.c.h.b16 %v3413
        %v3735 = vunpack.c.l.b16 %v3414
        %v3736 = vunpack.c.h.b16 %v3414
        %v3737 = vunpack.c.l.b16 %v3415
        %v3738 = vunpack.c.h.b16 %v3415
        %v3739 = vunpack.c.l.b16 %v3416
        %v3740 = vunpack.c.h.b16 %v3416
        %v3741 = vunpack.c.l.b16 %v3417
        %v3742 = vunpack.c.h.b16 %v3417
        %v3743 = vunpack.c.l.b16 %v3418
        %v3744 = vunpack.c.h.b16 %v3418
        %v3745 = vunpack.c.l.b16 %v3419
        %v3746 = vunpack.c.h.b16 %v3419
        %v3747 = vunpack.c.l.b16 %v3420
        %v3748 = vunpack.c.h.b16 %v3420
        %v3749 = vunpack.c.l.b16 %v3421
        %v3750 = vunpack.c.h.b16 %v3421
        %v3751 = vunpack.c.l.b16 %v3422
        %v3752 = vunpack.c.h.b16 %v3422
        %v3753 = vunpack.c.l.b16 %v3423
        %v3754 = vunpack.c.h.b16 %v3423
        %v3755 = vunpack.c.l.b16 %v3424
        %v3756 = vunpack.c.h.b16 %v3424
        %v3757 = vunpack.c.l.b16 %v3425
        %v3758 = vunpack.c.h.b16 %v3425
        %v3759 = vunpack.c.l.b16 %v3426
        %v3760 = vunpack.c.h.b16 %v3426
        %v3761 = vunpack.c.l.b16 %v3427
        %v3762 = vunpack.c.h.b16 %v3427
        %v3763 = vunpack.c.l.b16 %v3428
        %v3764 = vunpack.c.h.b16 %v3428
        %v3765 = vunpack.c.l.b16 %v3429
        %v3766 = vunpack.c.h.b16 %v3429
        %v3767 = vunpack.c.l.b16 %v3430
        %v3768 = vunpack.c.h.b16 %v3430
        %v3769 = vunpack.c.l.b16 %v3431
        %v3770 = vunpack.c.h.b16 %v3431
        %v3771 = vunpack.c.l.b16 %v3432
        %v3772 = vunpack.c.h.b16 %v3432
        %v3773 = vunpack.c.l.b16 %v3433
        %v3774 = vunpack.c.h.b16 %v3433
        %v3775 = vunpack.c.l.b16 %v3434
        %v3776 = vunpack.c.h.b16 %v3434
        %v3777 = vunpack.c.l.b16 %v3435
        %v3778 = vunpack.c.h.b16 %v3435
        %v3779 = vunpack.c.l.b16 %v3436
        %v3780 = vunpack.c.h.b16 %v3436
        %v3781 = vunpack.c.l.b16 %v3437
        %v3782 = vunpack.c.h.b16 %v3437
        %v3783 = vunpack.c.l.b16 %v3438
        %v3784 = vunpack.c.h.b16 %v3438
        %v3785 = vunpack.c.l.b16 %v3439
        %v3786 = vunpack.c.h.b16 %v3439
        %v3787 = vunpack.c.l.b16 %v3440
        %v3788 = vunpack.c.h.b16 %v3440
        %v3789 = vunpack.c.l.b16 %v3441
        %v3790 = vunpack.c.h.b16 %v3441
        %v3791 = vunpack.c.l.b16 %v3442
        %v3792 = vunpack.c.h.b16 %v3442
        %v3793 = vunpack.c.l.b16 %v3443
        %v3794 = vunpack.c.h.b16 %v3443
        %v3795 = vunpack.c.l.b16 %v3444
        %v3796 = vunpack.c.h.b16 %v3444
        %v3797 = vunpack.c.l.b16 %v3445
        %v3798 = vunpack.c.h.b16 %v3445
        %v3799 = vunpack.c.l.b16 %v3446
        %v3800 = vunpack.c.h.b16 %v3446
        %v3801 = vunpack.c.l.b16 %v3447
        %v3802 = vunpack.c.h.b16 %v3447
        %v3803 = vunpack.c.l.b16 %v3448
        %v3804 = vunpack.c.h.b16 %v3448
        %v3805 = vunpack.c.l.b16 %v3449
        %v3806 = vunpack.c.h.b16 %v3449
        %v3807 = vunpack.c.l.b16 %v3450
        %v3808 = vunpack.c.h.b16 %v3450
        %v3809 = vunpack.c.l.b16 %v3451
        %v3810 = vunpack.c.h.b16 %v3451
        %v3811 = vunpack.c.l.b16 %v3452
        %v3812 = vunpack.c.h.b16 %v3452
        %v3813 = vunpack.c.l.b16 %v3453
        %v3814 = vunpack.c.h.b16 %v3453
        %v3815 = vunpack.c.l.b16 %v3454
        %v3816 = vunpack.c.h.b16 %v3454
        %v3817 = vunpack.c.l.b16 %v3455
        %v3818 = vunpack.c.h.b16 %v3455
        %v3819 = vunpack.c.l.b16 %v3456
        %v3820 = vunpack.c.h.b16 %v3456
        %v3821 = vunpack.c.l.b16 %v3457
        %v3822 = vunpack.c.h.b16 %v3457
        %v3823 = vunpack.c.l.b16 %v3458
        %v3824 = vunpack.c.h.b16 %v3458
        %v3825 = vunpack.c.l.b16 %v3459
        %v3826 = vunpack.c.h.b16 %v3459
        %v3827 = vunpack.c.l.b16 %v3460
        %v3828 = vunpack.c.h.b16 %v3460
        %v3829 = vunpack.c.l.b16 %v3461
        %v3830 = vunpack.c.h.b16 %v3461
        %v3831 = vunpack.c.l.b16 %v3462
        %v3832 = vunpack.c.h.b16 %v3462
        %v3833 = vunpack.c.l.b16 %v3463
        %v3834 = vunpack.c.h.b16 %v3463
        %v3835 = vunpack.c.l.b16 %v3464
        %v3836 = vunpack.c.h.b16 %v3464
        %v3837 = vunpack.c.l.b16 %v3465
        %v3838 = vunpack.c.h.b16 %v3465
        %v3839 = vunpack.c.l.b16 %v3466
        %v3840 = vunpack.c.h.b16 %v3466
        %v3841 = vunpack.c.l.b16 %v3467
        %v3842 = vunpack.c.h.b16 %v3467
        %v3843 = vunpack.c.l.b16 %v3468
        %v3844 = vunpack.c.h.b16 %v3468
        %v3845 = vunpack.c.l.b16 %v3469
        %v3846 = vunpack.c.h.b16 %v3469
        %v3847 = vunpack.c.l.b16 %v3470
        %v3848 = vunpack.c.h.b16 %v3470
        %v3849 = vunpack.c.l.b16 %v3471
        %v3850 = vunpack.c.h.b16 %v3471
        %v3851 = vunpack.c.l.b16 %v3472
        %v3852 = vunpack.c.h.b16 %v3472
        %v3853 = vunpack.c.l.b16 %v3473
        %v3854 = vunpack.c.h.b16 %v3473
        %v3855 = vunpack.c.l.b16 %v3474
        %v3856 = vunpack.c.h.b16 %v3474
        %v3857 = vunpack.c.l.b16 %v3475
        %v3858 = vunpack.c.h.b16 %v3475
        %v3859 = vunpack.c.l.b16 %v3476
        %v3860 = vunpack.c.h.b16 %v3476
        %v3861 = vpack.c.b16 %v3613, %v3605
        %v3862 = vpack.c.b16 %v3614, %v3606
        %v3863 = vpack.c.b16 %v3615, %v3607
        %v3864 = vpack.c.b16 %v3616, %v3608
        %v3865 = vpack.c.b16 %v3617, %v3609
        %v3866 = vpack.c.b16 %v3618, %v3610
        %v3867 = vpack.c.b16 %v3619, %v3611
        %v3868 = vpack.c.b16 %v3620, %v3612
        %v3869 = vpack.c.b16 %v3629, %v3621
        %v3870 = vpack.c.b16 %v3630, %v3622
        %v3871 = vpack.c.b16 %v3631, %v3623
        %v3872 = vpack.c.b16 %v3632, %v3624
        %v3873 = vpack.c.b16 %v3633, %v3625
        %v3874 = vpack.c.b16 %v3634, %v3626
        %v3875 = vpack.c.b16 %v3635, %v3627
        %v3876 = vpack.c.b16 %v3636, %v3628
        %v3877 = vpack.c.b16 %v3645, %v3637
        %v3878 = vpack.c.b16 %v3646, %v3638
        %v3879 = vpack.c.b16 %v3647, %v3639
        %v3880 = vpack.c.b16 %v3648, %v3640
        %v3881 = vpack.c.b16 %v3649, %v3641
        %v3882 = vpack.c.b16 %v3650, %v3642
        %v3883 = vpack.c.b16 %v3651, %v3643
        %v3884 = vpack.c.b16 %v3652, %v3644
        %v3885 = vpack.c.b16 %v3661, %v3653
        %v3886 = vpack.c.b16 %v3662, %v3654
        %v3887 = vpack.c.b16 %v3663, %v3655
        %v3888 = vpack.c.b16 %v3664, %v3656
        %v3889 = vpack.c.b16 %v3665, %v3657
        %v3890 = vpack.c.b16 %v3666, %v3658
        %v3891 = vpack.c.b16 %v3667, %v3659
        %v3892 = vpack.c.b16 %v3668, %v3660
        %v3893 = vpack.c.b16 %v3677, %v3669
        %v3894 = vpack.c.b16 %v3678, %v3670
        %v3895 = vpack.c.b16 %v3679, %v3671
        %v3896 = vpack.c.b16 %v3680, %v3672
        %v3897 = vpack.c.b16 %v3681, %v3673
        %v3898 = vpack.c.b16 %v3682, %v3674
        %v3899 = vpack.c.b16 %v3683, %v3675
        %v3900 = vpack.c.b16 %v3684, %v3676
        %v3901 = vpack.c.b16 %v3693, %v3685
        %v3902 = vpack.c.b16 %v3694, %v3686
        %v3903 = vpack.c.b16 %v3695, %v3687
        %v3904 = vpack.c.b16 %v3696, %v3688
        %v3905 = vpack.c.b16 %v3697, %v3689
        %v3906 = vpack.c.b16 %v3698, %v3690
        %v3907 = vpack.c.b16 %v3699, %v3691
        %v3908 = vpack.c.b16 %v3700, %v3692
        %v3909 = vpack.c.b16 %v3709, %v3701
        %v3910 = vpack.c.b16 %v3710, %v3702
        %v3911 = vpack.c.b16 %v3711, %v3703
        %v3912 = vpack.c.b16 %v3712, %v3704
        %v3913 = vpack.c.b16 %v3713, %v3705
        %v3914 = vpack.c.b16 %v3714, %v3706
        %v3915 = vpack.c.b16 %v3715, %v3707
        %v3916 = vpack.c.b16 %v3716, %v3708
        %v3917 = vpack.c.b16 %v3725, %v3717
        %v3918 = vpack.c.b16 %v3726, %v3718
        %v3919 = vpack.c.b16 %v3727, %v3719
        %v3920 = vpack.c.b16 %v3728, %v3720
        %v3921 = vpack.c.b16 %v3729, %v3721
        %v3922 = vpack.c.b16 %v3730, %v3722
        %v3923 = vpack.c.b16 %v3731, %v3723
        %v3924 = vpack.c.b16 %v3732, %v3724
        %v3925 = vpack.c.b16 %v3741, %v3733
        %v3926 = vpack.c.b16 %v3742, %v3734
        %v3927 = vpack.c.b16 %v3743, %v3735
        %v3928 = vpack.c.b16 %v3744, %v3736
        %v3929 = vpack.c.b16 %v3745, %v3737
        %v3930 = vpack.c.b16 %v3746, %v3738
        %v3931 = vpack.c.b16 %v3747, %v3739
        %v3932 = vpack.c.b16 %v3748, %v3740
        %v3933 = vpack.c.b16 %v3757, %v3749
        %v3934 = vpack.c.b16 %v3758, %v3750
        %v3935 = vpack.c.b16 %v3759, %v3751
        %v3936 = vpack.c.b16 %v3760, %v3752
        %v3937 = vpack.c.b16 %v3761, %v3753
        %v3938 = vpack.c.b16 %v3762, %v3754
        %v3939 = vpack.c.b16 %v3763, %v3755
        %v3940 = vpack.c.b16 %v3764, %v3756
        %v3941 = vpack.c.b16 %v3773, %v3765
        %v3942 = vpack.c.b16 %v3774, %v3766
        %v3943 = vpack.c.b16 %v3775, %v3767
        %v3944 = vpack.c.b16 %v3776, %v3768
        %v3945 = vpack.c.b16 %v3777, %v3769
        %v3946 = vpack.c.b16 %v3778, %v3770
        %v3947 = vpack.c.b16 %v3779, %v3771
        %v3948 = vpack.c.b16 %v3780, %v3772
        %v3949 = vpack.c.b16 %v3789, %v3781
        %v3950 = vpack.c.b16 %v3790, %v3782
        %v3951 = vpack.c.b16 %v3791, %v3783
        %v3952 = vpack.c.b16 %v3792, %v3784
        %v3953 = vpack.c.b16 %v3793, %v3785
        %v3954 = vpack.c.b16 %v3794, %v3786
        %v3955 = vpack.c.b16 %v3795, %v3787
        %v3956 = vpack.c.b16 %v3796, %v3788
        %v3957 = vpack.c.b16 %v3805, %v3797
        %v3958 = vpack.c.b16 %v3806, %v3798
        %v3959 = vpack.c.b16 %v3807, %v3799
        %v3960 = vpack.c.b16 %v3808, %v3800
        %v3961 = vpack.c.b16 %v3809, %v3801
        %v3962 = vpack.c.b16 %v3810, %v3802
        %v3963 = vpack.c.b16 %v3811, %v3803
        %v3964 = vpack.c.b16 %v3812, %v3804
        %v3965 = vpack.c.b16 %v3821, %v3813
        %v3966 = vpack.c.b16 %v3822, %v3814
        %v3967 = vpack.c.b16 %v3823, %v3815
        %v3968 = vpack.c.b16 %v3824, %v3816
        %v3969 = vpack.c.b16 %v3825, %v3817
        %v3970 = vpack.c.b16 %v3826, %v3818
        %v3971 = vpack.c.b16 %v3827, %v3819
        %v3972 = vpack.c.b16 %v3828, %v3820
        %v3973 = vpack.c.b16 %v3837, %v3829
        %v3974 = vpack.c.b16 %v3838, %v3830
        %v3975 = vpack.c.b16 %v3839, %v3831
        %v3976 = vpack.c.b16 %v3840, %v3832
        %v3977 = vpack.c.b16 %v3841, %v3833
        %v3978 = vpack.c.b16 %v3842, %v3834
        %v3979 = vpack.c.b16 %v3843, %v3835
        %v3980 = vpack.c.b16 %v3844, %v3836
        %v3981 = vpack.c.b16 %v3853, %v3845
        %v3982 = vpack.c.b16 %v3854, %v3846
        %v3983 = vpack.c.b16 %v3855, %v3847
        %v3984 = vpack.c.b16 %v3856, %v3848
        %v3985 = vpack.c.b16 %v3857, %v3849
        %v3986 = vpack.c.b16 %v3858, %v3850
        %v3987 = vpack.c.b16 %v3859, %v3851
        %v3988 = vpack.c.b16 %v3860, %v3852
        %4117 = vmatprep.subr.bf16.mxu0 %v3918
        %4118 = vmatpush1.bf16.msra.mxu0 %v3917
        %4119 = vmatprep.subr.bf16.mxu0 %v3910
        %4120 = vmatpush1.bf16.msra.mxu0 %v3909
        %4121 = vmatprep.subr.bf16.mxu0 %v3902
        %4122 = vmatpush1.bf16.msra.mxu0 %v3901
        %4123 = vmatprep.subr.bf16.mxu0 %v3894
        %4124 = vmatpush1.bf16.msra.mxu0 %v3893
        %4125 = vmatprep.subr.bf16.mxu0 %v3886
        %4126 = vmatpush1.bf16.msra.mxu0 %v3885
        %4127 = vmatprep.subr.bf16.mxu0 %v3878
        %4128 = vmatpush1.bf16.msra.mxu0 %v3877
        %4129 = vmatprep.subr.bf16.mxu0 %v3870
        %4130 = vmatpush1.bf16.msra.mxu0 %v3869
        %4131 = vmatprep.subr.bf16.mxu0 %v3862
        %4132 = vmatpush1.bf16.msra.mxu0 %v3861
        %4133 = vmatprep.subr.bf16.mxu0 %v3982
        %4134 = vmatpush2.bf16.msra.mxu0 %v3981
        %4135 = vmatprep.subr.bf16.mxu0 %v3974
        %4136 = vmatpush2.bf16.msra.mxu0 %v3973
        %4137 = vmatprep.subr.bf16.mxu0 %v3966
        %4138 = vmatpush2.bf16.msra.mxu0 %v3965
        %4139 = vmatprep.subr.bf16.mxu0 %v3958
        %4140 = vmatpush2.bf16.msra.mxu0 %v3957
        %4141 = vmatprep.subr.bf16.mxu0 %v3950
        %4142 = vmatpush2.bf16.msra.mxu0 %v3949
        %4143 = vmatprep.subr.bf16.mxu0 %v3942
        %4144 = vmatpush2.bf16.msra.mxu0 %v3941
        %4145 = vmatprep.subr.bf16.mxu0 %v3934
        %4146 = vmatpush2.bf16.msra.mxu0 %v3933
        %4147 = vmatprep.subr.bf16.mxu0 %v3926
        %4148 = vmatpush2.bf16.msra.mxu0 %v3925
        %4149 = vmatprep.mubr.bf16.mxu0 %v3348
        %4150 = vmatmul.mubr.bf16.gmra.mxu0 %v3347
        %v4151 = vpop.f32.mrf.mxu0
        %v4152 = vadd.f32 0.0, %v4151
        %v4153 = vpop.f32.mrf.mxu0
        %v4154 = vadd.f32 0.0, %v4153
        %v4155 = vpop.f32.mrf.mxu0
        %v4156 = vpop.f32.mrf.mxu0
        %4157 = vdwg.mxu0
        %4158 = vmatprep.subr.bf16.mxu0 %v3920
        %4159 = vmatpush1.bf16.msra.mxu0 %v3919
        %4160 = vmatprep.subr.bf16.mxu0 %v3912
        %4161 = vmatpush1.bf16.msra.mxu0 %v3911
        %4162 = vmatprep.subr.bf16.mxu0 %v3904
        %4163 = vmatpush1.bf16.msra.mxu0 %v3903
        %4164 = vmatprep.subr.bf16.mxu0 %v3896
        %4165 = vmatpush1.bf16.msra.mxu0 %v3895
        %4166 = vmatprep.subr.bf16.mxu0 %v3888
        %4167 = vmatpush1.bf16.msra.mxu0 %v3887
        %4168 = vmatprep.subr.bf16.mxu0 %v3880
        %4169 = vmatpush1.bf16.msra.mxu0 %v3879
        %4170 = vmatprep.subr.bf16.mxu0 %v3872
        %4171 = vmatpush1.bf16.msra.mxu0 %v3871
        %4172 = vmatprep.subr.bf16.mxu0 %v3864
        %4173 = vmatpush1.bf16.msra.mxu0 %v3863
        %4174 = vmatprep.subr.bf16.mxu0 %v3984
        %4175 = vmatpush2.bf16.msra.mxu0 %v3983
        %4176 = vmatprep.subr.bf16.mxu0 %v3976
        %4177 = vmatpush2.bf16.msra.mxu0 %v3975
        %4178 = vmatprep.subr.bf16.mxu0 %v3968
        %4179 = vmatpush2.bf16.msra.mxu0 %v3967
        %4180 = vmatprep.subr.bf16.mxu0 %v3960
        %4181 = vmatpush2.bf16.msra.mxu0 %v3959
        %4182 = vmatprep.subr.bf16.mxu0 %v3952
        %4183 = vmatpush2.bf16.msra.mxu0 %v3951
        %4184 = vmatprep.subr.bf16.mxu0 %v3944
        %4185 = vmatpush2.bf16.msra.mxu0 %v3943
        %4186 = vmatprep.subr.bf16.mxu0 %v3936
        %4187 = vmatpush2.bf16.msra.mxu0 %v3935
        %4188 = vmatprep.subr.bf16.mxu0 %v3928
        %4189 = vmatpush2.bf16.msra.mxu0 %v3927
        %4190 = vmatprep.mubr.bf16.mxu0 %v3348
        %4191 = vmatmul.mubr.bf16.gmra.mxu0 %v3347
        %v4192 = vpop.f32.mrf.mxu0
        %v4193 = vadd.f32 0.0, %v4192
        %v4194 = vpop.f32.mrf.mxu0
        %v4195 = vadd.f32 0.0, %v4194
        %v4196 = vpop.f32.mrf.mxu0
        %v4197 = vpop.f32.mrf.mxu0
        %4198 = vdwg.mxu0
        %4199 = vmatprep.subr.bf16.mxu0 %v3922
        %4200 = vmatpush1.bf16.msra.mxu0 %v3921
        %4201 = vmatprep.subr.bf16.mxu0 %v3914
        %4202 = vmatpush1.bf16.msra.mxu0 %v3913
        %4203 = vmatprep.subr.bf16.mxu0 %v3906
        %4204 = vmatpush1.bf16.msra.mxu0 %v3905
        %4205 = vmatprep.subr.bf16.mxu0 %v3898
        %4206 = vmatpush1.bf16.msra.mxu0 %v3897
        %4207 = vmatprep.subr.bf16.mxu0 %v3890
        %4208 = vmatpush1.bf16.msra.mxu0 %v3889
        %4209 = vmatprep.subr.bf16.mxu0 %v3882
        %4210 = vmatpush1.bf16.msra.mxu0 %v3881
        %4211 = vmatprep.subr.bf16.mxu0 %v3874
        %4212 = vmatpush1.bf16.msra.mxu0 %v3873
        %4213 = vmatprep.subr.bf16.mxu0 %v3866
        %4214 = vmatpush1.bf16.msra.mxu0 %v3865
        %4215 = vmatprep.subr.bf16.mxu0 %v3986
        %4216 = vmatpush2.bf16.msra.mxu0 %v3985
        %4217 = vmatprep.subr.bf16.mxu0 %v3978
        %4218 = vmatpush2.bf16.msra.mxu0 %v3977
        %4219 = vmatprep.subr.bf16.mxu0 %v3970
        %4220 = vmatpush2.bf16.msra.mxu0 %v3969
        %4221 = vmatprep.subr.bf16.mxu0 %v3962
        %4222 = vmatpush2.bf16.msra.mxu0 %v3961
        %4223 = vmatprep.subr.bf16.mxu0 %v3954
        %4224 = vmatpush2.bf16.msra.mxu0 %v3953
        %4225 = vmatprep.subr.bf16.mxu0 %v3946
        %4226 = vmatpush2.bf16.msra.mxu0 %v3945
        %4227 = vmatprep.subr.bf16.mxu0 %v3938
        %4228 = vmatpush2.bf16.msra.mxu0 %v3937
        %4229 = vmatprep.subr.bf16.mxu0 %v3930
        %4230 = vmatpush2.bf16.msra.mxu0 %v3929
        %4231 = vmatprep.mubr.bf16.mxu0 %v3348
        %4232 = vmatmul.mubr.bf16.gmra.mxu0 %v3347
        %v4233 = vpop.f32.mrf.mxu0
        %v4234 = vadd.f32 0.0, %v4233
        %v4235 = vpop.f32.mrf.mxu0
        %v4236 = vadd.f32 0.0, %v4235
        %v4237 = vpop.f32.mrf.mxu0
        %v4238 = vpop.f32.mrf.mxu0
        %4239 = vdwg.mxu0
        %4240 = vmatprep.subr.bf16.mxu0 %v3924
        %4241 = vmatpush1.bf16.msra.mxu0 %v3923
        %4242 = vmatprep.subr.bf16.mxu0 %v3916
        %4243 = vmatpush1.bf16.msra.mxu0 %v3915
        %4244 = vmatprep.subr.bf16.mxu0 %v3908
        %4245 = vmatpush1.bf16.msra.mxu0 %v3907
        %4246 = vmatprep.subr.bf16.mxu0 %v3900
        %4247 = vmatpush1.bf16.msra.mxu0 %v3899
        %4248 = vmatprep.subr.bf16.mxu0 %v3892
        %4249 = vmatpush1.bf16.msra.mxu0 %v3891
        %4250 = vmatprep.subr.bf16.mxu0 %v3884
        %4251 = vmatpush1.bf16.msra.mxu0 %v3883
        %4252 = vmatprep.subr.bf16.mxu0 %v3876
        %4253 = vmatpush1.bf16.msra.mxu0 %v3875
        %4254 = vmatprep.subr.bf16.mxu0 %v3868
        %4255 = vmatpush1.bf16.msra.mxu0 %v3867
        %4256 = vmatprep.subr.bf16.mxu0 %v3988
        %4257 = vmatpush2.bf16.msra.mxu0 %v3987
        %4258 = vmatprep.subr.bf16.mxu0 %v3980
        %4259 = vmatpush2.bf16.msra.mxu0 %v3979
        %4260 = vmatprep.subr.bf16.mxu0 %v3972
        %4261 = vmatpush2.bf16.msra.mxu0 %v3971
        %4262 = vmatprep.subr.bf16.mxu0 %v3964
        %4263 = vmatpush2.bf16.msra.mxu0 %v3963
        %4264 = vmatprep.subr.bf16.mxu0 %v3956
        %4265 = vmatpush2.bf16.msra.mxu0 %v3955
        %4266 = vmatprep.subr.bf16.mxu0 %v3948
        %4267 = vmatpush2.bf16.msra.mxu0 %v3947
        %4268 = vmatprep.subr.bf16.mxu0 %v3940
        %4269 = vmatpush2.bf16.msra.mxu0 %v3939
        %4270 = vmatprep.subr.bf16.mxu0 %v3932
        %4271 = vmatpush2.bf16.msra.mxu0 %v3931
        %4272 = vmatprep.mubr.bf16.mxu0 %v3348
        %4273 = vmatmul.mubr.bf16.gmra.mxu0 %v3347
        %v4274 = vpop.f32.mrf.mxu0
        %v4275 = vadd.f32 0.0, %v4274
        %v4276 = vpop.f32.mrf.mxu0
        %v4277 = vadd.f32 0.0, %v4276
        %v4278 = vpop.f32.mrf.mxu0
        %v4279 = vpop.f32.mrf.mxu0
        %4280 = vdwg.mxu0
        %v4289 = vcombine.low %v4152, %v4154
        %v4290 = vcombine.low %v4193, %v4195
        %v4292 = vunpack.c.l.s4 1983009808
        %v4293 = vunpack.c.0.s8 %v4292
        %v4294 = vlaneseq
        %v4295 = vshrl.u32 %v4294, 7
        %v4296 = vsub.s32 %v4293, %v4295
        %v4297 = vrot.slane %v4289, %v4296
        %v4299 = vunpack.c.l.s4 1983009808
        %v4300 = vunpack.c.0.s8 %v4299
        %v4301 = vlaneseq
        %v4302 = vshrl.u32 %v4301, 7
        %v4303 = vsub.s32 %v4300, %v4302
        %v4304 = vrot.slane %v4290, %v4303
        %v4305 = vcombine.low %v4297, %v4304
        %v4306 = vcombine.low %v4234, %v4236
        %v4307 = vcombine.low %v4275, %v4277
        %v4309 = vunpack.c.l.s4 1983009808
        %v4310 = vunpack.c.0.s8 %v4309
        %v4311 = vlaneseq
        %v4312 = vshrl.u32 %v4311, 7
        %v4313 = vsub.s32 %v4310, %v4312
        %v4314 = vrot.slane %v4306, %v4313
        %v4316 = vunpack.c.l.s4 1983009808
        %v4317 = vunpack.c.0.s8 %v4316
        %v4318 = vlaneseq
        %v4319 = vshrl.u32 %v4318, 7
        %v4320 = vsub.s32 %v4317, %v4319
        %v4321 = vrot.slane %v4307, %v4320
        %v4322 = vcombine.low %v4314, %v4321
        %v4325 = vadd.f32 %v3345, %v4305
        %v4326 = vadd.f32 %v3346, %v4322
        %4327 = vst [vmem:[#allocation3] sm:$0xff] %v4325
        %4328 = vst [vmem:[#allocation3 + $0x8] sm:$0xff] %v4326
        %p4329 = scmp.eq.s32.totalorder %s32, 3
        // Predicated region
        $region149: #{tpu_custom_call.1} parent=51 // pred_check
          %p4330 = pneg %p4329
        $region150: #{tpu_custom_call.1} parent=51 // pred_check_branch
          %4332 = sbr.rel (%p4330) target = $region152
        $region151: #{tpu_custom_call.1} parent=51 // pred_region
          %v4333 = vld [vmem:[#allocation3] sm:$0xff]
          %v4334 = vld [vmem:[#allocation3 + $0x8] sm:$0xff]
          %v4335 = vld [vmem:[#allocation10] sm:$0xff]
          %v4337 = vlaneseq
          %v4338 = vshrl.u32 %v4337, 7
          %v4339 = vsub.s32 0, %v4338
          %v4340 = vrot.slane %v4335, %v4339
          %v4341 = vlaneseq
          %v4342 = vshrl.u32 %v4341, 7
          %v4343 = vsub.s32 1, %v4342
          %v4344 = vrot.slane %v4335, %v4343
          %v4345 = vlaneseq
          %v4346 = vshrl.u32 %v4345, 7
          %v4347 = vsub.s32 2, %v4346
          %v4348 = vrot.slane %v4335, %v4347
          %v4349 = vlaneseq
          %v4350 = vshrl.u32 %v4349, 7
          %v4351 = vsub.s32 3, %v4350
          %v4352 = vrot.slane %v4335, %v4351
          %v4353 = vlaneseq
          %v4354 = vshrl.u32 %v4353, 7
          %v4355 = vsub.s32 4, %v4354
          %v4356 = vrot.slane %v4335, %v4355
          %v4357 = vlaneseq
          %v4358 = vshrl.u32 %v4357, 7
          %v4359 = vsub.s32 5, %v4358
          %v4360 = vrot.slane %v4335, %v4359
          %v4361 = vlaneseq
          %v4362 = vshrl.u32 %v4361, 7
          %v4363 = vsub.s32 6, %v4362
          %v4364 = vrot.slane %v4335, %v4363
          %v4365 = vlaneseq
          %v4366 = vshrl.u32 %v4365, 7
          %v4367 = vsub.s32 7, %v4366
          %v4368 = vrot.slane %v4335, %v4367
          %v4369 = vcombine.low %v4340, %v4344
          %v4370 = vcombine.low %v4348, %v4352
          %v4372 = vunpack.c.l.s4 1983009808
          %v4373 = vunpack.c.0.s8 %v4372
          %v4374 = vlaneseq
          %v4375 = vshrl.u32 %v4374, 7
          %v4376 = vsub.s32 %v4373, %v4375
          %v4377 = vrot.slane %v4369, %v4376
          %v4379 = vunpack.c.l.s4 1983009808
          %v4380 = vunpack.c.0.s8 %v4379
          %v4381 = vlaneseq
          %v4382 = vshrl.u32 %v4381, 7
          %v4383 = vsub.s32 %v4380, %v4382
          %v4384 = vrot.slane %v4370, %v4383
          %v4385 = vcombine.low %v4377, %v4384
          %v4386 = vcombine.low %v4356, %v4360
          %v4387 = vcombine.low %v4364, %v4368
          %v4389 = vunpack.c.l.s4 1983009808
          %v4390 = vunpack.c.0.s8 %v4389
          %v4391 = vlaneseq
          %v4392 = vshrl.u32 %v4391, 7
          %v4393 = vsub.s32 %v4390, %v4392
          %v4394 = vrot.slane %v4386, %v4393
          %v4396 = vunpack.c.l.s4 1983009808
          %v4397 = vunpack.c.0.s8 %v4396
          %v4398 = vlaneseq
          %v4399 = vshrl.u32 %v4398, 7
          %v4400 = vsub.s32 %v4397, %v4399
          %v4401 = vrot.slane %v4387, %v4400
          %v4402 = vcombine.low %v4394, %v4401
          %v4405 = vadd.f32 %v4333, %v4385
          %v4406 = vadd.f32 %v4334, %v4402
          %v4409 = vcombine.high %v4405, %v4405
          %v4411 = vunpack.c.l.s4 1983009808
          %v4412 = vunpack.c.0.s8 %v4411
          %v4413 = vlaneseq
          %v4414 = vshrl.u32 %v4413, 7
          %v4415 = vsub.s32 %v4412, %v4414
          %v4416 = vrot.slane %v4405, %v4415
          %v4418 = vunpack.c.l.s4 1983009808
          %v4419 = vunpack.c.0.s8 %v4418
          %v4420 = vlaneseq
          %v4421 = vshrl.u32 %v4420, 7
          %v4422 = vsub.s32 %v4419, %v4421
          %v4423 = vrot.slane %v4409, %v4422
          %v4424 = vcombine.high %v4416, %v4416
          %v4425 = vcombine.high %v4423, %v4423
          %v4426 = vcombine.high %v4406, %v4406
          %v4428 = vunpack.c.l.s4 1983009808
          %v4429 = vunpack.c.0.s8 %v4428
          %v4430 = vlaneseq
          %v4431 = vshrl.u32 %v4430, 7
          %v4432 = vsub.s32 %v4429, %v4431
          %v4433 = vrot.slane %v4406, %v4432
          %v4435 = vunpack.c.l.s4 1983009808
          %v4436 = vunpack.c.0.s8 %v4435
          %v4437 = vlaneseq
          %v4438 = vshrl.u32 %v4437, 7
          %v4439 = vsub.s32 %v4436, %v4438
          %v4440 = vrot.slane %v4426, %v4439
          %v4441 = vcombine.high %v4433, %v4433
          %v4442 = vcombine.high %v4440, %v4440
          %vm4451 = vcmask 1041408
          %v4452 = vsel %vm4451, %v4416, 0.0
          %v4453 = vrot.slane %v4452, 4
          %v4454 = vadd.f32 %v4452, %v4453
          %v4455 = vrot.slane %v4454, 2
          %v4456 = vadd.f32 %v4454, %v4455
          %v4457 = vrot.slane %v4456, 1
          %v4458 = vadd.f32 %v4456, %v4457
          %v4459 = vsel %vm4451, %v4424, 0.0
          %v4460 = vrot.slane %v4459, 4
          %v4461 = vadd.f32 %v4459, %v4460
          %v4462 = vrot.slane %v4461, 2
          %v4463 = vadd.f32 %v4461, %v4462
          %v4464 = vrot.slane %v4463, 1
          %v4465 = vadd.f32 %v4463, %v4464
          %v4466 = vsel %vm4451, %v4423, 0.0
          %v4467 = vrot.slane %v4466, 4
          %v4468 = vadd.f32 %v4466, %v4467
          %v4469 = vrot.slane %v4468, 2
          %v4470 = vadd.f32 %v4468, %v4469
          %v4471 = vrot.slane %v4470, 1
          %v4472 = vadd.f32 %v4470, %v4471
          %v4473 = vsel %vm4451, %v4425, 0.0
          %v4474 = vrot.slane %v4473, 4
          %v4475 = vadd.f32 %v4473, %v4474
          %v4476 = vrot.slane %v4475, 2
          %v4477 = vadd.f32 %v4475, %v4476
          %v4478 = vrot.slane %v4477, 1
          %v4479 = vadd.f32 %v4477, %v4478
          %v4480 = vsel %vm4451, %v4433, 0.0
          %v4481 = vrot.slane %v4480, 4
          %v4482 = vadd.f32 %v4480, %v4481
          %v4483 = vrot.slane %v4482, 2
          %v4484 = vadd.f32 %v4482, %v4483
          %v4485 = vrot.slane %v4484, 1
          %v4486 = vadd.f32 %v4484, %v4485
          %v4487 = vsel %vm4451, %v4441, 0.0
          %v4488 = vrot.slane %v4487, 4
          %v4489 = vadd.f32 %v4487, %v4488
          %v4490 = vrot.slane %v4489, 2
          %v4491 = vadd.f32 %v4489, %v4490
          %v4492 = vrot.slane %v4491, 1
          %v4493 = vadd.f32 %v4491, %v4492
          %v4494 = vsel %vm4451, %v4440, 0.0
          %v4495 = vrot.slane %v4494, 4
          %v4496 = vadd.f32 %v4494, %v4495
          %v4497 = vrot.slane %v4496, 2
          %v4498 = vadd.f32 %v4496, %v4497
          %v4499 = vrot.slane %v4498, 1
          %v4500 = vadd.f32 %v4498, %v4499
          %v4501 = vsel %vm4451, %v4442, 0.0
          %v4502 = vrot.slane %v4501, 4
          %v4503 = vadd.f32 %v4501, %v4502
          %v4504 = vrot.slane %v4503, 2
          %v4505 = vadd.f32 %v4503, %v4504
          %v4506 = vrot.slane %v4505, 1
          %v4507 = vadd.f32 %v4505, %v4506
          %v4508 = vrcp.pop 2.0
          %v4509 = vmul.f32 %v4458, %v4508
          %v4510 = vmul.f32 %v4465, %v4508
          %v4511 = vmul.f32 %v4472, %v4508
          %v4512 = vmul.f32 %v4479, %v4508
          %v4513 = vmul.f32 %v4486, %v4508
          %v4514 = vmul.f32 %v4493, %v4508
          %v4515 = vmul.f32 %v4500, %v4508
          %v4516 = vmul.f32 %v4507, %v4508
          %v4525 = vcombine.low %v4509, %v4510
          %v4526 = vcombine.low %v4511, %v4512
          %v4528 = vunpack.c.l.s4 1983009808
          %v4529 = vunpack.c.0.s8 %v4528
          %v4530 = vlaneseq
          %v4531 = vshrl.u32 %v4530, 7
          %v4532 = vsub.s32 %v4529, %v4531
          %v4533 = vrot.slane %v4525, %v4532
          %v4535 = vunpack.c.l.s4 1983009808
          %v4536 = vunpack.c.0.s8 %v4535
          %v4537 = vlaneseq
          %v4538 = vshrl.u32 %v4537, 7
          %v4539 = vsub.s32 %v4536, %v4538
          %v4540 = vrot.slane %v4526, %v4539
          %v4541 = vcombine.low %v4533, %v4540
          %v4542 = vcombine.low %v4513, %v4514
          %v4543 = vcombine.low %v4515, %v4516
          %v4545 = vunpack.c.l.s4 1983009808
          %v4546 = vunpack.c.0.s8 %v4545
          %v4547 = vlaneseq
          %v4548 = vshrl.u32 %v4547, 7
          %v4549 = vsub.s32 %v4546, %v4548
          %v4550 = vrot.slane %v4542, %v4549
          %v4552 = vunpack.c.l.s4 1983009808
          %v4553 = vunpack.c.0.s8 %v4552
          %v4554 = vlaneseq
          %v4555 = vshrl.u32 %v4554, 7
          %v4556 = vsub.s32 %v4553, %v4555
          %v4557 = vrot.slane %v4543, %v4556
          %v4558 = vcombine.low %v4550, %v4557
          %v4561 = vsub.f32 %v4405, %v4541
          %v4562 = vsub.f32 %v4406, %v4558
          %v4563 = vmul.f32 %v4561, %v4561
          %v4564 = vmul.f32 %v4562, %v4562
          %v4567 = vcombine.high %v4563, %v4563
          %v4569 = vunpack.c.l.s4 1983009808
          %v4570 = vunpack.c.0.s8 %v4569
          %v4571 = vlaneseq
          %v4572 = vshrl.u32 %v4571, 7
          %v4573 = vsub.s32 %v4570, %v4572
          %v4574 = vrot.slane %v4563, %v4573
          %v4576 = vunpack.c.l.s4 1983009808
          %v4577 = vunpack.c.0.s8 %v4576
          %v4578 = vlaneseq
          %v4579 = vshrl.u32 %v4578, 7
          %v4580 = vsub.s32 %v4577, %v4579
          %v4581 = vrot.slane %v4567, %v4580
          %v4582 = vcombine.high %v4574, %v4574
          %v4583 = vcombine.high %v4581, %v4581
          %v4584 = vcombine.high %v4564, %v4564
          %v4586 = vunpack.c.l.s4 1983009808
          %v4587 = vunpack.c.0.s8 %v4586
          %v4588 = vlaneseq
          %v4589 = vshrl.u32 %v4588, 7
          %v4590 = vsub.s32 %v4587, %v4589
          %v4591 = vrot.slane %v4564, %v4590
          %v4593 = vunpack.c.l.s4 1983009808
          %v4594 = vunpack.c.0.s8 %v4593
          %v4595 = vlaneseq
          %v4596 = vshrl.u32 %v4595, 7
          %v4597 = vsub.s32 %v4594, %v4596
          %v4598 = vrot.slane %v4584, %v4597
          %v4599 = vcombine.high %v4591, %v4591
          %v4600 = vcombine.high %v4598, %v4598
          %v4609 = vsel %vm4451, %v4574, 0.0
          %v4610 = vrot.slane %v4609, 4
          %v4611 = vadd.f32 %v4609, %v4610
          %v4612 = vrot.slane %v4611, 2
          %v4613 = vadd.f32 %v4611, %v4612
          %v4614 = vrot.slane %v4613, 1
          %v4615 = vadd.f32 %v4613, %v4614
          %v4616 = vsel %vm4451, %v4582, 0.0
          %v4617 = vrot.slane %v4616, 4
          %v4618 = vadd.f32 %v4616, %v4617
          %v4619 = vrot.slane %v4618, 2
          %v4620 = vadd.f32 %v4618, %v4619
          %v4621 = vrot.slane %v4620, 1
          %v4622 = vadd.f32 %v4620, %v4621
          %v4623 = vsel %vm4451, %v4581, 0.0
          %v4624 = vrot.slane %v4623, 4
          %v4625 = vadd.f32 %v4623, %v4624
          %v4626 = vrot.slane %v4625, 2
          %v4627 = vadd.f32 %v4625, %v4626
          %v4628 = vrot.slane %v4627, 1
          %v4629 = vadd.f32 %v4627, %v4628
          %v4630 = vsel %vm4451, %v4583, 0.0
          %v4631 = vrot.slane %v4630, 4
          %v4632 = vadd.f32 %v4630, %v4631
          %v4633 = vrot.slane %v4632, 2
          %v4634 = vadd.f32 %v4632, %v4633
          %v4635 = vrot.slane %v4634, 1
          %v4636 = vadd.f32 %v4634, %v4635
          %v4637 = vsel %vm4451, %v4591, 0.0
          %v4638 = vrot.slane %v4637, 4
          %v4639 = vadd.f32 %v4637, %v4638
          %v4640 = vrot.slane %v4639, 2
          %v4641 = vadd.f32 %v4639, %v4640
          %v4642 = vrot.slane %v4641, 1
          %v4643 = vadd.f32 %v4641, %v4642
          %v4644 = vsel %vm4451, %v4599, 0.0
          %v4645 = vrot.slane %v4644, 4
          %v4646 = vadd.f32 %v4644, %v4645
          %v4647 = vrot.slane %v4646, 2
          %v4648 = vadd.f32 %v4646, %v4647
          %v4649 = vrot.slane %v4648, 1
          %v4650 = vadd.f32 %v4648, %v4649
          %v4651 = vsel %vm4451, %v4598, 0.0
          %v4652 = vrot.slane %v4651, 4
          %v4653 = vadd.f32 %v4651, %v4652
          %v4654 = vrot.slane %v4653, 2
          %v4655 = vadd.f32 %v4653, %v4654
          %v4656 = vrot.slane %v4655, 1
          %v4657 = vadd.f32 %v4655, %v4656
          %v4658 = vsel %vm4451, %v4600, 0.0
          %v4659 = vrot.slane %v4658, 4
          %v4660 = vadd.f32 %v4658, %v4659
          %v4661 = vrot.slane %v4660, 2
          %v4662 = vadd.f32 %v4660, %v4661
          %v4663 = vrot.slane %v4662, 1
          %v4664 = vadd.f32 %v4662, %v4663
          %v4665 = vmul.f32 %v4615, %v4508
          %v4666 = vmul.f32 %v4622, %v4508
          %v4667 = vmul.f32 %v4629, %v4508
          %v4668 = vmul.f32 %v4636, %v4508
          %v4669 = vmul.f32 %v4643, %v4508
          %v4670 = vmul.f32 %v4650, %v4508
          %v4671 = vmul.f32 %v4657, %v4508
          %v4672 = vmul.f32 %v4664, %v4508
          %v4673 = vadd.f32 %v4665, 1e-05
          %v4674 = vadd.f32 %v4666, 1e-05
          %v4675 = vadd.f32 %v4667, 1e-05
          %v4676 = vadd.f32 %v4668, 1e-05
          %v4677 = vadd.f32 %v4669, 1e-05
          %v4678 = vadd.f32 %v4670, 1e-05
          %v4679 = vadd.f32 %v4671, 1e-05
          %v4680 = vadd.f32 %v4672, 1e-05
          %v4681 = vrsqrt.pop %v4673
          %v4682 = vrsqrt.pop %v4674
          %v4683 = vrsqrt.pop %v4675
          %v4684 = vrsqrt.pop %v4676
          %v4685 = vrsqrt.pop %v4677
          %v4686 = vrsqrt.pop %v4678
          %v4687 = vrsqrt.pop %v4679
          %v4688 = vrsqrt.pop %v4680
          %v4697 = vcombine.low %v4681, %v4682
          %v4698 = vcombine.low %v4683, %v4684
          %v4700 = vunpack.c.l.s4 1983009808
          %v4701 = vunpack.c.0.s8 %v4700
          %v4702 = vlaneseq
          %v4703 = vshrl.u32 %v4702, 7
          %v4704 = vsub.s32 %v4701, %v4703
          %v4705 = vrot.slane %v4697, %v4704
          %v4707 = vunpack.c.l.s4 1983009808
          %v4708 = vunpack.c.0.s8 %v4707
          %v4709 = vlaneseq
          %v4710 = vshrl.u32 %v4709, 7
          %v4711 = vsub.s32 %v4708, %v4710
          %v4712 = vrot.slane %v4698, %v4711
          %v4713 = vcombine.low %v4705, %v4712
          %v4714 = vcombine.low %v4685, %v4686
          %v4715 = vcombine.low %v4687, %v4688
          %v4717 = vunpack.c.l.s4 1983009808
          %v4718 = vunpack.c.0.s8 %v4717
          %v4719 = vlaneseq
          %v4720 = vshrl.u32 %v4719, 7
          %v4721 = vsub.s32 %v4718, %v4720
          %v4722 = vrot.slane %v4714, %v4721
          %v4724 = vunpack.c.l.s4 1983009808
          %v4725 = vunpack.c.0.s8 %v4724
          %v4726 = vlaneseq
          %v4727 = vshrl.u32 %v4726, 7
          %v4728 = vsub.s32 %v4725, %v4727
          %v4729 = vrot.slane %v4715, %v4728
          %v4730 = vcombine.low %v4722, %v4729
          %v4733 = vmul.f32 %v4561, %v4713
          %v4734 = vmul.f32 %v4562, %v4730
          %v4735 = vld [vmem:[#allocation11] sm:$0xff]
          %v4737 = vlaneseq
          %v4738 = vshrl.u32 %v4737, 7
          %v4739 = vsub.s32 0, %v4738
          %v4740 = vrot.slane %v4735, %v4739
          %v4741 = vlaneseq
          %v4742 = vshrl.u32 %v4741, 7
          %v4743 = vsub.s32 1, %v4742
          %v4744 = vrot.slane %v4735, %v4743
          %v4745 = vlaneseq
          %v4746 = vshrl.u32 %v4745, 7
          %v4747 = vsub.s32 2, %v4746
          %v4748 = vrot.slane %v4735, %v4747
          %v4749 = vlaneseq
          %v4750 = vshrl.u32 %v4749, 7
          %v4751 = vsub.s32 3, %v4750
          %v4752 = vrot.slane %v4735, %v4751
          %v4753 = vlaneseq
          %v4754 = vshrl.u32 %v4753, 7
          %v4755 = vsub.s32 4, %v4754
          %v4756 = vrot.slane %v4735, %v4755
          %v4757 = vlaneseq
          %v4758 = vshrl.u32 %v4757, 7
          %v4759 = vsub.s32 5, %v4758
          %v4760 = vrot.slane %v4735, %v4759
          %v4761 = vlaneseq
          %v4762 = vshrl.u32 %v4761, 7
          %v4763 = vsub.s32 6, %v4762
          %v4764 = vrot.slane %v4735, %v4763
          %v4765 = vlaneseq
          %v4766 = vshrl.u32 %v4765, 7
          %v4767 = vsub.s32 7, %v4766
          %v4768 = vrot.slane %v4735, %v4767
          %v4769 = vcombine.low %v4740, %v4744
          %v4770 = vcombine.low %v4748, %v4752
          %v4772 = vunpack.c.l.s4 1983009808
          %v4773 = vunpack.c.0.s8 %v4772
          %v4774 = vlaneseq
          %v4775 = vshrl.u32 %v4774, 7
          %v4776 = vsub.s32 %v4773, %v4775
          %v4777 = vrot.slane %v4769, %v4776
          %v4779 = vunpack.c.l.s4 1983009808
          %v4780 = vunpack.c.0.s8 %v4779
          %v4781 = vlaneseq
          %v4782 = vshrl.u32 %v4781, 7
          %v4783 = vsub.s32 %v4780, %v4782
          %v4784 = vrot.slane %v4770, %v4783
          %v4785 = vcombine.low %v4777, %v4784
          %v4786 = vcombine.low %v4756, %v4760
          %v4787 = vcombine.low %v4764, %v4768
          %v4789 = vunpack.c.l.s4 1983009808
          %v4790 = vunpack.c.0.s8 %v4789
          %v4791 = vlaneseq
          %v4792 = vshrl.u32 %v4791, 7
          %v4793 = vsub.s32 %v4790, %v4792
          %v4794 = vrot.slane %v4786, %v4793
          %v4796 = vunpack.c.l.s4 1983009808
          %v4797 = vunpack.c.0.s8 %v4796
          %v4798 = vlaneseq
          %v4799 = vshrl.u32 %v4798, 7
          %v4800 = vsub.s32 %v4797, %v4799
          %v4801 = vrot.slane %v4787, %v4800
          %v4802 = vcombine.low %v4794, %v4801
          %v4805 = vmul.f32 %v4733, %v4785
          %v4806 = vmul.f32 %v4734, %v4802
          %v4807 = vld [vmem:[#allocation13] sm:$0xff]
          %v4809 = vlaneseq
          %v4810 = vshrl.u32 %v4809, 7
          %v4811 = vsub.s32 0, %v4810
          %v4812 = vrot.slane %v4807, %v4811
          %v4813 = vlaneseq
          %v4814 = vshrl.u32 %v4813, 7
          %v4815 = vsub.s32 1, %v4814
          %v4816 = vrot.slane %v4807, %v4815
          %v4817 = vlaneseq
          %v4818 = vshrl.u32 %v4817, 7
          %v4819 = vsub.s32 2, %v4818
          %v4820 = vrot.slane %v4807, %v4819
          %v4821 = vlaneseq
          %v4822 = vshrl.u32 %v4821, 7
          %v4823 = vsub.s32 3, %v4822
          %v4824 = vrot.slane %v4807, %v4823
          %v4825 = vlaneseq
          %v4826 = vshrl.u32 %v4825, 7
          %v4827 = vsub.s32 4, %v4826
          %v4828 = vrot.slane %v4807, %v4827
          %v4829 = vlaneseq
          %v4830 = vshrl.u32 %v4829, 7
          %v4831 = vsub.s32 5, %v4830
          %v4832 = vrot.slane %v4807, %v4831
          %v4833 = vlaneseq
          %v4834 = vshrl.u32 %v4833, 7
          %v4835 = vsub.s32 6, %v4834
          %v4836 = vrot.slane %v4807, %v4835
          %v4837 = vlaneseq
          %v4838 = vshrl.u32 %v4837, 7
          %v4839 = vsub.s32 7, %v4838
          %v4840 = vrot.slane %v4807, %v4839
          %v4841 = vcombine.low %v4812, %v4816
          %v4842 = vcombine.low %v4820, %v4824
          %v4844 = vunpack.c.l.s4 1983009808
          %v4845 = vunpack.c.0.s8 %v4844
          %v4846 = vlaneseq
          %v4847 = vshrl.u32 %v4846, 7
          %v4848 = vsub.s32 %v4845, %v4847
          %v4849 = vrot.slane %v4841, %v4848
          %v4851 = vunpack.c.l.s4 1983009808
          %v4852 = vunpack.c.0.s8 %v4851
          %v4853 = vlaneseq
          %v4854 = vshrl.u32 %v4853, 7
          %v4855 = vsub.s32 %v4852, %v4854
          %v4856 = vrot.slane %v4842, %v4855
          %v4857 = vcombine.low %v4849, %v4856
          %v4858 = vcombine.low %v4828, %v4832
          %v4859 = vcombine.low %v4836, %v4840
          %v4861 = vunpack.c.l.s4 1983009808
          %v4862 = vunpack.c.0.s8 %v4861
          %v4863 = vlaneseq
          %v4864 = vshrl.u32 %v4863, 7
          %v4865 = vsub.s32 %v4862, %v4864
          %v4866 = vrot.slane %v4858, %v4865
          %v4868 = vunpack.c.l.s4 1983009808
          %v4869 = vunpack.c.0.s8 %v4868
          %v4870 = vlaneseq
          %v4871 = vshrl.u32 %v4870, 7
          %v4872 = vsub.s32 %v4869, %v4871
          %v4873 = vrot.slane %v4859, %v4872
          %v4874 = vcombine.low %v4866, %v4873
          %v4877 = vadd.f32 %v4805, %v4857
          %v4878 = vadd.f32 %v4806, %v4874
          %v4879 = vmax.f32 %v4877, 0.0
          %v4880 = vmax.f32 %v4878, 0.0
          %v4881 = vld [vmem:[#allocation14] sm:$0xff]
          %v4882 = vld [vmem:[#allocation14 + $0x8] sm:$0xff]
          %v4883 = vld [vmem:[#allocation14 + $0x10] sm:$0xff]
          %v4884 = vld [vmem:[#allocation14 + $0x18] sm:$0xff]
          %v4885 = vld [vmem:[#allocation14 + $0x20] sm:$0xff]
          %v4886 = vld [vmem:[#allocation14 + $0x28] sm:$0xff]
          %v4887 = vld [vmem:[#allocation14 + $0x30] sm:$0xff]
          %v4888 = vld [vmem:[#allocation14 + $0x38] sm:$0xff]
          %v4889 = vld [vmem:[#allocation14 + $0x40] sm:$0xff]
          %v4890 = vld [vmem:[#allocation14 + $0x48] sm:$0xff]
          %v4891 = vld [vmem:[#allocation14 + $0x50] sm:$0xff]
          %v4892 = vld [vmem:[#allocation14 + $0x58] sm:$0xff]
          %v4893 = vld [vmem:[#allocation14 + $0x60] sm:$0xff]
          %v4894 = vld [vmem:[#allocation14 + $0x68] sm:$0xff]
          %v4895 = vld [vmem:[#allocation14 + $0x70] sm:$0xff]
          %v4896 = vld [vmem:[#allocation14 + $0x78] sm:$0xff]
          %v4897 = vld [vmem:[#allocation14 + $0x80] sm:$0xff]
          %v4898 = vld [vmem:[#allocation14 + $0x88] sm:$0xff]
          %v4899 = vld [vmem:[#allocation14 + $0x90] sm:$0xff]
          %v4900 = vld [vmem:[#allocation14 + $0x98] sm:$0xff]
          %v4901 = vld [vmem:[#allocation14 + $0xa0] sm:$0xff]
          %v4902 = vld [vmem:[#allocation14 + $0xa8] sm:$0xff]
          %v4903 = vld [vmem:[#allocation14 + $0xb0] sm:$0xff]
          %v4904 = vld [vmem:[#allocation14 + $0xb8] sm:$0xff]
          %v4905 = vld [vmem:[#allocation14 + $0xc0] sm:$0xff]
          %v4906 = vld [vmem:[#allocation14 + $0xc8] sm:$0xff]
          %v4907 = vld [vmem:[#allocation14 + $0xd0] sm:$0xff]
          %v4908 = vld [vmem:[#allocation14 + $0xd8] sm:$0xff]
          %v4909 = vld [vmem:[#allocation14 + $0xe0] sm:$0xff]
          %v4910 = vld [vmem:[#allocation14 + $0xe8] sm:$0xff]
          %v4911 = vld [vmem:[#allocation14 + $0xf0] sm:$0xff]
          %v4912 = vld [vmem:[#allocation14 + $0xf8] sm:$0xff]
          %v4913 = vld [vmem:[#allocation14 + $0x100] sm:$0xff]
          %v4914 = vld [vmem:[#allocation14 + $0x108] sm:$0xff]
          %v4915 = vld [vmem:[#allocation14 + $0x110] sm:$0xff]
          %v4916 = vld [vmem:[#allocation14 + $0x118] sm:$0xff]
          %v4917 = vld [vmem:[#allocation14 + $0x120] sm:$0xff]
          %v4918 = vld [vmem:[#allocation14 + $0x128] sm:$0xff]
          %v4919 = vld [vmem:[#allocation14 + $0x130] sm:$0xff]
          %v4920 = vld [vmem:[#allocation14 + $0x138] sm:$0xff]
          %v4921 = vld [vmem:[#allocation14 + $0x140] sm:$0xff]
          %v4922 = vld [vmem:[#allocation14 + $0x148] sm:$0xff]
          %v4923 = vld [vmem:[#allocation14 + $0x150] sm:$0xff]
          %v4924 = vld [vmem:[#allocation14 + $0x158] sm:$0xff]
          %v4925 = vld [vmem:[#allocation14 + $0x160] sm:$0xff]
          %v4926 = vld [vmem:[#allocation14 + $0x168] sm:$0xff]
          %v4927 = vld [vmem:[#allocation14 + $0x170] sm:$0xff]
          %v4928 = vld [vmem:[#allocation14 + $0x178] sm:$0xff]
          %v4929 = vld [vmem:[#allocation14 + $0x180] sm:$0xff]
          %v4930 = vld [vmem:[#allocation14 + $0x188] sm:$0xff]
          %v4931 = vld [vmem:[#allocation14 + $0x190] sm:$0xff]
          %v4932 = vld [vmem:[#allocation14 + $0x198] sm:$0xff]
          %v4933 = vld [vmem:[#allocation14 + $0x1a0] sm:$0xff]
          %v4934 = vld [vmem:[#allocation14 + $0x1a8] sm:$0xff]
          %v4935 = vld [vmem:[#allocation14 + $0x1b0] sm:$0xff]
          %v4936 = vld [vmem:[#allocation14 + $0x1b8] sm:$0xff]
          %v4937 = vld [vmem:[#allocation14 + $0x1c0] sm:$0xff]
          %v4938 = vld [vmem:[#allocation14 + $0x1c8] sm:$0xff]
          %v4939 = vld [vmem:[#allocation14 + $0x1d0] sm:$0xff]
          %v4940 = vld [vmem:[#allocation14 + $0x1d8] sm:$0xff]
          %v4941 = vld [vmem:[#allocation14 + $0x1e0] sm:$0xff]
          %v4942 = vld [vmem:[#allocation14 + $0x1e8] sm:$0xff]
          %v4943 = vld [vmem:[#allocation14 + $0x1f0] sm:$0xff]
          %v4944 = vld [vmem:[#allocation14 + $0x1f8] sm:$0xff]
          %v4945 = vld [vmem:[#allocation14 + $0x200] sm:$0xff]
          %v4946 = vld [vmem:[#allocation14 + $0x208] sm:$0xff]
          %v4947 = vld [vmem:[#allocation14 + $0x210] sm:$0xff]
          %v4948 = vld [vmem:[#allocation14 + $0x218] sm:$0xff]
          %v4949 = vld [vmem:[#allocation14 + $0x220] sm:$0xff]
          %v4950 = vld [vmem:[#allocation14 + $0x228] sm:$0xff]
          %v4951 = vld [vmem:[#allocation14 + $0x230] sm:$0xff]
          %v4952 = vld [vmem:[#allocation14 + $0x238] sm:$0xff]
          %v4953 = vld [vmem:[#allocation14 + $0x240] sm:$0xff]
          %v4954 = vld [vmem:[#allocation14 + $0x248] sm:$0xff]
          %v4955 = vld [vmem:[#allocation14 + $0x250] sm:$0xff]
          %v4956 = vld [vmem:[#allocation14 + $0x258] sm:$0xff]
          %v4957 = vld [vmem:[#allocation14 + $0x260] sm:$0xff]
          %v4958 = vld [vmem:[#allocation14 + $0x268] sm:$0xff]
          %v4959 = vld [vmem:[#allocation14 + $0x270] sm:$0xff]
          %v4960 = vld [vmem:[#allocation14 + $0x278] sm:$0xff]
          %v4961 = vld [vmem:[#allocation14 + $0x280] sm:$0xff]
          %v4962 = vld [vmem:[#allocation14 + $0x288] sm:$0xff]
          %v4963 = vld [vmem:[#allocation14 + $0x290] sm:$0xff]
          %v4964 = vld [vmem:[#allocation14 + $0x298] sm:$0xff]
          %v4965 = vld [vmem:[#allocation14 + $0x2a0] sm:$0xff]
          %v4966 = vld [vmem:[#allocation14 + $0x2a8] sm:$0xff]
          %v4967 = vld [vmem:[#allocation14 + $0x2b0] sm:$0xff]
          %v4968 = vld [vmem:[#allocation14 + $0x2b8] sm:$0xff]
          %v4969 = vld [vmem:[#allocation14 + $0x2c0] sm:$0xff]
          %v4970 = vld [vmem:[#allocation14 + $0x2c8] sm:$0xff]
          %v4971 = vld [vmem:[#allocation14 + $0x2d0] sm:$0xff]
          %v4972 = vld [vmem:[#allocation14 + $0x2d8] sm:$0xff]
          %v4973 = vld [vmem:[#allocation14 + $0x2e0] sm:$0xff]
          %v4974 = vld [vmem:[#allocation14 + $0x2e8] sm:$0xff]
          %v4975 = vld [vmem:[#allocation14 + $0x2f0] sm:$0xff]
          %v4976 = vld [vmem:[#allocation14 + $0x2f8] sm:$0xff]
          %v4977 = vld [vmem:[#allocation14 + $0x300] sm:$0xff]
          %v4978 = vld [vmem:[#allocation14 + $0x308] sm:$0xff]
          %v4979 = vld [vmem:[#allocation14 + $0x310] sm:$0xff]
          %v4980 = vld [vmem:[#allocation14 + $0x318] sm:$0xff]
          %v4981 = vld [vmem:[#allocation14 + $0x320] sm:$0xff]
          %v4982 = vld [vmem:[#allocation14 + $0x328] sm:$0xff]
          %v4983 = vld [vmem:[#allocation14 + $0x330] sm:$0xff]
          %v4984 = vld [vmem:[#allocation14 + $0x338] sm:$0xff]
          %v4985 = vld [vmem:[#allocation14 + $0x340] sm:$0xff]
          %v4986 = vld [vmem:[#allocation14 + $0x348] sm:$0xff]
          %v4987 = vld [vmem:[#allocation14 + $0x350] sm:$0xff]
          %v4988 = vld [vmem:[#allocation14 + $0x358] sm:$0xff]
          %v4989 = vld [vmem:[#allocation14 + $0x360] sm:$0xff]
          %v4990 = vld [vmem:[#allocation14 + $0x368] sm:$0xff]
          %v4991 = vld [vmem:[#allocation14 + $0x370] sm:$0xff]
          %v4992 = vld [vmem:[#allocation14 + $0x378] sm:$0xff]
          %v4993 = vld [vmem:[#allocation14 + $0x380] sm:$0xff]
          %v4994 = vld [vmem:[#allocation14 + $0x388] sm:$0xff]
          %v4995 = vld [vmem:[#allocation14 + $0x390] sm:$0xff]
          %v4996 = vld [vmem:[#allocation14 + $0x398] sm:$0xff]
          %v4997 = vld [vmem:[#allocation14 + $0x3a0] sm:$0xff]
          %v4998 = vld [vmem:[#allocation14 + $0x3a8] sm:$0xff]
          %v4999 = vld [vmem:[#allocation14 + $0x3b0] sm:$0xff]
          %v5000 = vld [vmem:[#allocation14 + $0x3b8] sm:$0xff]
          %v5001 = vld [vmem:[#allocation14 + $0x3c0] sm:$0xff]
          %v5002 = vld [vmem:[#allocation14 + $0x3c8] sm:$0xff]
          %v5003 = vld [vmem:[#allocation14 + $0x3d0] sm:$0xff]
          %v5004 = vld [vmem:[#allocation14 + $0x3d8] sm:$0xff]
          %v5005 = vld [vmem:[#allocation14 + $0x3e0] sm:$0xff]
          %v5006 = vld [vmem:[#allocation14 + $0x3e8] sm:$0xff]
          %v5007 = vld [vmem:[#allocation14 + $0x3f0] sm:$0xff]
          %v5008 = vld [vmem:[#allocation14 + $0x3f8] sm:$0xff]
          %v5009 = vld [vmem:[#allocation16] sm:$0x1]
          %v5011 = vlaneseq
          %v5012 = vshrl.u32 %v5011, 7
          %v5013 = vsub.s32 0, %v5012
          %v5014 = vrot.slane %v5009, %v5013
          %v5018 = vcombine.high %v4879, %v4879
          %v5020 = vunpack.c.l.s4 1983009808
          %v5021 = vunpack.c.0.s8 %v5020
          %v5022 = vlaneseq
          %v5023 = vshrl.u32 %v5022, 7
          %v5024 = vsub.s32 %v5021, %v5023
          %v5025 = vrot.slane %v4879, %v5024
          %v5027 = vunpack.c.l.s4 1983009808
          %v5028 = vunpack.c.0.s8 %v5027
          %v5029 = vlaneseq
          %v5030 = vshrl.u32 %v5029, 7
          %v5031 = vsub.s32 %v5028, %v5030
          %v5032 = vrot.slane %v5018, %v5031
          %v5033 = vcombine.high %v5025, %v5025
          %v5034 = vcombine.high %v5032, %v5032
          %v5035 = vcombine.high %v4880, %v4880
          %v5037 = vunpack.c.l.s4 1983009808
          %v5038 = vunpack.c.0.s8 %v5037
          %v5039 = vlaneseq
          %v5040 = vshrl.u32 %v5039, 7
          %v5041 = vsub.s32 %v5038, %v5040
          %v5042 = vrot.slane %v4880, %v5041
          %v5044 = vunpack.c.l.s4 1983009808
          %v5045 = vunpack.c.0.s8 %v5044
          %v5046 = vlaneseq
          %v5047 = vshrl.u32 %v5046, 7
          %v5048 = vsub.s32 %v5045, %v5047
          %v5049 = vrot.slane %v5035, %v5048
          %v5050 = vcombine.high %v5042, %v5042
          %v5051 = vcombine.high %v5049, %v5049
          %5060 = vmatprep.subr.mxu0 0.0
          %5061 = vmatpush1.msra.mxu0 %v4896
          %5062 = vmatprep.subr.mxu0 0.0
          %5063 = vmatpush1.msra.mxu0 %v4895
          %5064 = vmatprep.subr.mxu0 0.0
          %5065 = vmatpush1.msra.mxu0 %v4894
          %5066 = vmatprep.subr.mxu0 0.0
          %5067 = vmatpush1.msra.mxu0 %v4893
          %5068 = vmatprep.subr.mxu0 0.0
          %5069 = vmatpush1.msra.mxu0 %v4892
          %5070 = vmatprep.subr.mxu0 0.0
          %5071 = vmatpush1.msra.mxu0 %v4891
          %5072 = vmatprep.subr.mxu0 0.0
          %5073 = vmatpush1.msra.mxu0 %v4890
          %5074 = vmatprep.subr.mxu0 0.0
          %5075 = vmatpush1.msra.mxu0 %v4889
          %5076 = vmatprep.subr.mxu0 0.0
          %5077 = vmatpush1.msra.mxu0 %v4888
          %5078 = vmatprep.subr.mxu0 0.0
          %5079 = vmatpush1.msra.mxu0 %v4887
          %5080 = vmatprep.subr.mxu0 0.0
          %5081 = vmatpush1.msra.mxu0 %v4886
          %5082 = vmatprep.subr.mxu0 0.0
          %5083 = vmatpush1.msra.mxu0 %v4885
          %5084 = vmatprep.subr.mxu0 0.0
          %5085 = vmatpush1.msra.mxu0 %v4884
          %5086 = vmatprep.subr.mxu0 0.0
          %5087 = vmatpush1.msra.mxu0 %v4883
          %5088 = vmatprep.subr.mxu0 0.0
          %5089 = vmatpush1.msra.mxu0 %v4882
          %5090 = vmatprep.subr.mxu0 0.0
          %5091 = vmatpush1.msra.mxu0 %v4881
          %5092 = vmatprep.subr.mxu0 0.0
          %5093 = vmatpush2.msra.mxu0 %v4912
          %5094 = vmatprep.subr.mxu0 0.0
          %5095 = vmatpush2.msra.mxu0 %v4911
          %5096 = vmatprep.subr.mxu0 0.0
          %5097 = vmatpush2.msra.mxu0 %v4910
          %5098 = vmatprep.subr.mxu0 0.0
          %5099 = vmatpush2.msra.mxu0 %v4909
          %5100 = vmatprep.subr.mxu0 0.0
          %5101 = vmatpush2.msra.mxu0 %v4908
          %5102 = vmatprep.subr.mxu0 0.0
          %5103 = vmatpush2.msra.mxu0 %v4907
          %5104 = vmatprep.subr.mxu0 0.0
          %5105 = vmatpush2.msra.mxu0 %v4906
          %5106 = vmatprep.subr.mxu0 0.0
          %5107 = vmatpush2.msra.mxu0 %v4905
          %5108 = vmatprep.subr.mxu0 0.0
          %5109 = vmatpush2.msra.mxu0 %v4904
          %5110 = vmatprep.subr.mxu0 0.0
          %5111 = vmatpush2.msra.mxu0 %v4903
          %5112 = vmatprep.subr.mxu0 0.0
          %5113 = vmatpush2.msra.mxu0 %v4902
          %5114 = vmatprep.subr.mxu0 0.0
          %5115 = vmatpush2.msra.mxu0 %v4901
          %5116 = vmatprep.subr.mxu0 0.0
          %5117 = vmatpush2.msra.mxu0 %v4900
          %5118 = vmatprep.subr.mxu0 0.0
          %5119 = vmatpush2.msra.mxu0 %v4899
          %5120 = vmatprep.subr.mxu0 0.0
          %5121 = vmatpush2.msra.mxu0 %v4898
          %5122 = vmatprep.subr.mxu0 0.0
          %5123 = vmatpush2.msra.mxu0 %v4897
          %5124 = vmatprep.mubr.f32.mxu0 %v5033
          %5125 = vmatmul.mubr.f32.gmra.mxu0 %v5025
          %v5126 = vpop.f32.mrf.mxu0
          %v5127 = vadd.f32 %v5014, %v5126
          %v5128 = vpop.f32.mrf.mxu0
          %5129 = vdwg.mxu0
          %5130 = vmatprep.subr.mxu0 0.0
          %5131 = vmatpush1.msra.mxu0 %v4928
          %5132 = vmatprep.subr.mxu0 0.0
          %5133 = vmatpush1.msra.mxu0 %v4927
          %5134 = vmatprep.subr.mxu0 0.0
          %5135 = vmatpush1.msra.mxu0 %v4926
          %5136 = vmatprep.subr.mxu0 0.0
          %5137 = vmatpush1.msra.mxu0 %v4925
          %5138 = vmatprep.subr.mxu0 0.0
          %5139 = vmatpush1.msra.mxu0 %v4924
          %5140 = vmatprep.subr.mxu0 0.0
          %5141 = vmatpush1.msra.mxu0 %v4923
          %5142 = vmatprep.subr.mxu0 0.0
          %5143 = vmatpush1.msra.mxu0 %v4922
          %5144 = vmatprep.subr.mxu0 0.0
          %5145 = vmatpush1.msra.mxu0 %v4921
          %5146 = vmatprep.subr.mxu0 0.0
          %5147 = vmatpush1.msra.mxu0 %v4920
          %5148 = vmatprep.subr.mxu0 0.0
          %5149 = vmatpush1.msra.mxu0 %v4919
          %5150 = vmatprep.subr.mxu0 0.0
          %5151 = vmatpush1.msra.mxu0 %v4918
          %5152 = vmatprep.subr.mxu0 0.0
          %5153 = vmatpush1.msra.mxu0 %v4917
          %5154 = vmatprep.subr.mxu0 0.0
          %5155 = vmatpush1.msra.mxu0 %v4916
          %5156 = vmatprep.subr.mxu0 0.0
          %5157 = vmatpush1.msra.mxu0 %v4915
          %5158 = vmatprep.subr.mxu0 0.0
          %5159 = vmatpush1.msra.mxu0 %v4914
          %5160 = vmatprep.subr.mxu0 0.0
          %5161 = vmatpush1.msra.mxu0 %v4913
          %5162 = vmatprep.subr.mxu0 0.0
          %5163 = vmatpush2.msra.mxu0 %v4944
          %5164 = vmatprep.subr.mxu0 0.0
          %5165 = vmatpush2.msra.mxu0 %v4943
          %5166 = vmatprep.subr.mxu0 0.0
          %5167 = vmatpush2.msra.mxu0 %v4942
          %5168 = vmatprep.subr.mxu0 0.0
          %5169 = vmatpush2.msra.mxu0 %v4941
          %5170 = vmatprep.subr.mxu0 0.0
          %5171 = vmatpush2.msra.mxu0 %v4940
          %5172 = vmatprep.subr.mxu0 0.0
          %5173 = vmatpush2.msra.mxu0 %v4939
          %5174 = vmatprep.subr.mxu0 0.0
          %5175 = vmatpush2.msra.mxu0 %v4938
          %5176 = vmatprep.subr.mxu0 0.0
          %5177 = vmatpush2.msra.mxu0 %v4937
          %5178 = vmatprep.subr.mxu0 0.0
          %5179 = vmatpush2.msra.mxu0 %v4936
          %5180 = vmatprep.subr.mxu0 0.0
          %5181 = vmatpush2.msra.mxu0 %v4935
          %5182 = vmatprep.subr.mxu0 0.0
          %5183 = vmatpush2.msra.mxu0 %v4934
          %5184 = vmatprep.subr.mxu0 0.0
          %5185 = vmatpush2.msra.mxu0 %v4933
          %5186 = vmatprep.subr.mxu0 0.0
          %5187 = vmatpush2.msra.mxu0 %v4932
          %5188 = vmatprep.subr.mxu0 0.0
          %5189 = vmatpush2.msra.mxu0 %v4931
          %5190 = vmatprep.subr.mxu0 0.0
          %5191 = vmatpush2.msra.mxu0 %v4930
          %5192 = vmatprep.subr.mxu0 0.0
          %5193 = vmatpush2.msra.mxu0 %v4929
          %5194 = vmatprep.mubr.f32.mxu0 %v5034
          %5195 = vmatmul.mubr.f32.gmra.mxu0 %v5032
          %v5196 = vpop.f32.mrf.mxu0
          %v5197 = vadd.f32 %v5127, %v5196
          %v5198 = vpop.f32.mrf.mxu0
          %5199 = vdwg.mxu0
          %5200 = vmatprep.subr.mxu0 0.0
          %5201 = vmatpush1.msra.mxu0 %v4960
          %5202 = vmatprep.subr.mxu0 0.0
          %5203 = vmatpush1.msra.mxu0 %v4959
          %5204 = vmatprep.subr.mxu0 0.0
          %5205 = vmatpush1.msra.mxu0 %v4958
          %5206 = vmatprep.subr.mxu0 0.0
          %5207 = vmatpush1.msra.mxu0 %v4957
          %5208 = vmatprep.subr.mxu0 0.0
          %5209 = vmatpush1.msra.mxu0 %v4956
          %5210 = vmatprep.subr.mxu0 0.0
          %5211 = vmatpush1.msra.mxu0 %v4955
          %5212 = vmatprep.subr.mxu0 0.0
          %5213 = vmatpush1.msra.mxu0 %v4954
          %5214 = vmatprep.subr.mxu0 0.0
          %5215 = vmatpush1.msra.mxu0 %v4953
          %5216 = vmatprep.subr.mxu0 0.0
          %5217 = vmatpush1.msra.mxu0 %v4952
          %5218 = vmatprep.subr.mxu0 0.0
          %5219 = vmatpush1.msra.mxu0 %v4951
          %5220 = vmatprep.subr.mxu0 0.0
          %5221 = vmatpush1.msra.mxu0 %v4950
          %5222 = vmatprep.subr.mxu0 0.0
          %5223 = vmatpush1.msra.mxu0 %v4949
          %5224 = vmatprep.subr.mxu0 0.0
          %5225 = vmatpush1.msra.mxu0 %v4948
          %5226 = vmatprep.subr.mxu0 0.0
          %5227 = vmatpush1.msra.mxu0 %v4947
          %5228 = vmatprep.subr.mxu0 0.0
          %5229 = vmatpush1.msra.mxu0 %v4946
          %5230 = vmatprep.subr.mxu0 0.0
          %5231 = vmatpush1.msra.mxu0 %v4945
          %5232 = vmatprep.subr.mxu0 0.0
          %5233 = vmatpush2.msra.mxu0 %v4976
          %5234 = vmatprep.subr.mxu0 0.0
          %5235 = vmatpush2.msra.mxu0 %v4975
          %5236 = vmatprep.subr.mxu0 0.0
          %5237 = vmatpush2.msra.mxu0 %v4974
          %5238 = vmatprep.subr.mxu0 0.0
          %5239 = vmatpush2.msra.mxu0 %v4973
          %5240 = vmatprep.subr.mxu0 0.0
          %5241 = vmatpush2.msra.mxu0 %v4972
          %5242 = vmatprep.subr.mxu0 0.0
          %5243 = vmatpush2.msra.mxu0 %v4971
          %5244 = vmatprep.subr.mxu0 0.0
          %5245 = vmatpush2.msra.mxu0 %v4970
          %5246 = vmatprep.subr.mxu0 0.0
          %5247 = vmatpush2.msra.mxu0 %v4969
          %5248 = vmatprep.subr.mxu0 0.0
          %5249 = vmatpush2.msra.mxu0 %v4968
          %5250 = vmatprep.subr.mxu0 0.0
          %5251 = vmatpush2.msra.mxu0 %v4967
          %5252 = vmatprep.subr.mxu0 0.0
          %5253 = vmatpush2.msra.mxu0 %v4966
          %5254 = vmatprep.subr.mxu0 0.0
          %5255 = vmatpush2.msra.mxu0 %v4965
          %5256 = vmatprep.subr.mxu0 0.0
          %5257 = vmatpush2.msra.mxu0 %v4964
          %5258 = vmatprep.subr.mxu0 0.0
          %5259 = vmatpush2.msra.mxu0 %v4963
          %5260 = vmatprep.subr.mxu0 0.0
          %5261 = vmatpush2.msra.mxu0 %v4962
          %5262 = vmatprep.subr.mxu0 0.0
          %5263 = vmatpush2.msra.mxu0 %v4961
          %5264 = vmatprep.mubr.f32.mxu0 %v5050
          %5265 = vmatmul.mubr.f32.gmra.mxu0 %v5042
          %v5266 = vpop.f32.mrf.mxu0
          %v5267 = vadd.f32 %v5197, %v5266
          %v5268 = vpop.f32.mrf.mxu0
          %5269 = vdwg.mxu0
          %5270 = vmatprep.subr.mxu0 0.0
          %5271 = vmatpush1.msra.mxu0 %v4992
          %5272 = vmatprep.subr.mxu0 0.0
          %5273 = vmatpush1.msra.mxu0 %v4991
          %5274 = vmatprep.subr.mxu0 0.0
          %5275 = vmatpush1.msra.mxu0 %v4990
          %5276 = vmatprep.subr.mxu0 0.0
          %5277 = vmatpush1.msra.mxu0 %v4989
          %5278 = vmatprep.subr.mxu0 0.0
          %5279 = vmatpush1.msra.mxu0 %v4988
          %5280 = vmatprep.subr.mxu0 0.0
          %5281 = vmatpush1.msra.mxu0 %v4987
          %5282 = vmatprep.subr.mxu0 0.0
          %5283 = vmatpush1.msra.mxu0 %v4986
          %5284 = vmatprep.subr.mxu0 0.0
          %5285 = vmatpush1.msra.mxu0 %v4985
          %5286 = vmatprep.subr.mxu0 0.0
          %5287 = vmatpush1.msra.mxu0 %v4984
          %5288 = vmatprep.subr.mxu0 0.0
          %5289 = vmatpush1.msra.mxu0 %v4983
          %5290 = vmatprep.subr.mxu0 0.0
          %5291 = vmatpush1.msra.mxu0 %v4982
          %5292 = vmatprep.subr.mxu0 0.0
          %5293 = vmatpush1.msra.mxu0 %v4981
          %5294 = vmatprep.subr.mxu0 0.0
          %5295 = vmatpush1.msra.mxu0 %v4980
          %5296 = vmatprep.subr.mxu0 0.0
          %5297 = vmatpush1.msra.mxu0 %v4979
          %5298 = vmatprep.subr.mxu0 0.0
          %5299 = vmatpush1.msra.mxu0 %v4978
          %5300 = vmatprep.subr.mxu0 0.0
          %5301 = vmatpush1.msra.mxu0 %v4977
          %5302 = vmatprep.subr.mxu0 0.0
          %5303 = vmatpush2.msra.mxu0 %v5008
          %5304 = vmatprep.subr.mxu0 0.0
          %5305 = vmatpush2.msra.mxu0 %v5007
          %5306 = vmatprep.subr.mxu0 0.0
          %5307 = vmatpush2.msra.mxu0 %v5006
          %5308 = vmatprep.subr.mxu0 0.0
          %5309 = vmatpush2.msra.mxu0 %v5005
          %5310 = vmatprep.subr.mxu0 0.0
          %5311 = vmatpush2.msra.mxu0 %v5004
          %5312 = vmatprep.subr.mxu0 0.0
          %5313 = vmatpush2.msra.mxu0 %v5003
          %5314 = vmatprep.subr.mxu0 0.0
          %5315 = vmatpush2.msra.mxu0 %v5002
          %5316 = vmatprep.subr.mxu0 0.0
          %5317 = vmatpush2.msra.mxu0 %v5001
          %5318 = vmatprep.subr.mxu0 0.0
          %5319 = vmatpush2.msra.mxu0 %v5000
          %5320 = vmatprep.subr.mxu0 0.0
          %5321 = vmatpush2.msra.mxu0 %v4999
          %5322 = vmatprep.subr.mxu0 0.0
          %5323 = vmatpush2.msra.mxu0 %v4998
          %5324 = vmatprep.subr.mxu0 0.0
          %5325 = vmatpush2.msra.mxu0 %v4997
          %5326 = vmatprep.subr.mxu0 0.0
          %5327 = vmatpush2.msra.mxu0 %v4996
          %5328 = vmatprep.subr.mxu0 0.0
          %5329 = vmatpush2.msra.mxu0 %v4995
          %5330 = vmatprep.subr.mxu0 0.0
          %5331 = vmatpush2.msra.mxu0 %v4994
          %5332 = vmatprep.subr.mxu0 0.0
          %5333 = vmatpush2.msra.mxu0 %v4993
          %5334 = vmatprep.mubr.f32.mxu0 %v5051
          %5335 = vmatmul.mubr.f32.gmra.mxu0 %v5049
          %v5336 = vpop.f32.mrf.mxu0
          %v5337 = vadd.f32 %v5267, %v5336
          %v5338 = vpop.f32.mrf.mxu0
          %5339 = vdwg.mxu0
          %v5340 = vmul.f32 %v5337, 1.442695
          %v5341 = vpow.pop %v5340
          %v5342 = vrsqrt.pop %v5341
          %v5343 = vmul.f32 %v5341, %v5342
          %vm5344 = vcmp.eq.f32.partialorder %v5341, inf
          %v5345 = vsel %vm5344, %v5341, %v5343
          %vm5346 = vcmp.eq.f32.partialorder %v5341, 0.0
          %v5347 = vand.u32 %v5341, 2147483648
          %v5348 = vsel %vm5346, %v5347, %v5345
          %v5349 = vld [vmem:[#allocation17] sm:$0x3]
          %5351 = vrot.lane.b32.xlu0 %v5349, 32
          %v5352 = vpop.permute.xlu0 %5351
          %v5354 = vmul.f32 %v5348, %v5352
          %5356 = vrot.lane.b32.xlu0 %v5354, 96
          %v5357 = vpop.permute.xlu0 %5356
          %v5359 = vadd.f32 %v5337, %v5357
          %vm5360 = vcmask 254976
          %5361 = vst.msk [vmem:[#allocation19] sm:$0x3] %vm5360, %v5359
          %5362 = vst.msk [vmem:[#allocation20] sm:$0x3] %vm5360, %v5337
          %5364 = vrot.lane.b32.xlu0 %v5341, 96
          %v5365 = vpop.permute.xlu0 %5364
          %5367 = vst.msk [vmem:[#allocation22] sm:$0x3] %vm5360, %v5365
        $region152: #{tpu_custom_call.1} parent=51 // pred_fallthru
          _
        // Predicated region
        $region153: #{tpu_custom_call.1} parent=51 // pred_check
          %p5368 = pneg %p218
        $region154: #{tpu_custom_call.1} parent=51 // pred_check_branch
          %5370 = sbr.rel (%p5368) target = $region156
        $region155: #{tpu_custom_call.1} parent=51 // pred_region
          %s5372 = ssub.s32 32, 32
          %5373 = vsyncadd [#allocation7], %s5372
          %s5375 = sshll.u32 [#allocation19], 4
          %s5376 = int_to_ptr.vmem [resolvable:$true] %s5375
          %5378 = dma.vmem_to_hbm [thread:$0]  %s5376, 32, %s9, [#allocation7]
        $region156: #{tpu_custom_call.1} parent=51 // pred_fallthru
          _
        // Predicated region
        $region157: #{tpu_custom_call.1} parent=51 // pred_check
          %p5379 = pneg %p239
        $region158: #{tpu_custom_call.1} parent=51 // pred_check_branch
          %5381 = sbr.rel (%p5379) target = $region160
        $region159: #{tpu_custom_call.1} parent=51 // pred_region
          %s5383 = ssub.s32 32, 32
          %5384 = vsyncadd [#allocation21], %s5383
          %s5386 = sshll.u32 [#allocation20], 4
          %s5387 = int_to_ptr.vmem [resolvable:$true] %s5386
          %5389 = dma.vmem_to_hbm [thread:$0]  %s5387, 32, %s10, [#allocation21]
        $region160: #{tpu_custom_call.1} parent=51 // pred_fallthru
          _
        // Predicated region
        $region161: #{tpu_custom_call.1} parent=51 // pred_check
          %p5390 = pneg %p260
        $region162: #{tpu_custom_call.1} parent=51 // pred_check_branch
          %5392 = sbr.rel (%p5390) target = $region164
        $region163: #{tpu_custom_call.1} parent=51 // pred_region
          %s5394 = ssub.s32 32, 32
          %5395 = vsyncadd [#allocation21], %s5394
          %s5397 = sshll.u32 [#allocation22], 4
          %s5398 = int_to_ptr.vmem [resolvable:$true] %s5397
          %5400 = dma.vmem_to_hbm [thread:$0]  %s5398, 32, %s11, [#allocation21]
        $region164: #{tpu_custom_call.1} parent=51 // pred_fallthru
          _
        // Predicated region
        $region165: #{tpu_custom_call.1} parent=51 // pred_check
          %p5401 = pneg %p218
        $region166: #{tpu_custom_call.1} parent=51 // pred_check_branch
          %5403 = sbr.rel (%p5401) target = $region168
        $region167: #{tpu_custom_call.1} parent=51 // pred_region
          %5404 = dma.done [#allocation7], 32
        $region168: #{tpu_custom_call.1} parent=51 // pred_fallthru
          _
        // Predicated region
        $region169: #{tpu_custom_call.1} parent=51 // pred_check
          %p5405 = pneg %p239
        $region170: #{tpu_custom_call.1} parent=51 // pred_check_branch
          %5407 = sbr.rel (%p5405) target = $region172
        $region171: #{tpu_custom_call.1} parent=51 // pred_region
          %5408 = dma.done [#allocation21], 32
        $region172: #{tpu_custom_call.1} parent=51 // pred_fallthru
          _
        // Predicated region
        $region173: #{tpu_custom_call.1} parent=51 // pred_check
          %p5409 = pneg %p260
        $region174: #{tpu_custom_call.1} parent=51 // pred_check_branch
          %5411 = sbr.rel (%p5409) target = $region176
        $region175: #{tpu_custom_call.1} parent=51 // pred_region
          %5412 = dma.done [#allocation21], 32
        $region176: #{tpu_custom_call.1} parent=51 // pred_fallthru
          _
      $region52: #{tpu_custom_call.1} parent=5 // pred_fallthru
        _
      %p5413 = scmp.le.s32.totalorder 2, %s27
      // Predicated region
      $region177: #{tpu_custom_call.1} parent=5 // pred_check
        %p5414 = pneg %p5413
      $region178: #{tpu_custom_call.1} parent=5 // pred_check_branch
        %5416 = sbr.rel (%p5414) target = $region180
      $region179: #{tpu_custom_call.1} parent=5 // pred_region
        %s5417 = ssub.s32 %s27, 2
      $region180: #{tpu_custom_call.1} parent=5 // pred_fallthru
        _
    $region6: #{tpu_custom_call.1} parent=1 // loop_footer
      %s31 = sadd.s32 1, %s27
    $region7: #{tpu_custom_call.1} parent=1 // loop_footer_branch
      %26 = sbr.rel target = $region3
    $region8: #{tpu_custom_call.1} parent=1 // loop_exit
      _
    %5418 = vsyncpa [#allocation6], 1
    %s5419 = scalar_lea.sflag [#allocation6], 1
    %5420 = vsyncpa %s5419, 1
    %5421 = vsyncpa [#allocation9], 1
    %s5422 = scalar_lea.sflag [#allocation9], 1
    %5423 = vsyncpa %s5422, 1
    %5424 = vsyncpa [#allocation12], 1
    %5425 = vsyncpa [#allocation15], 1
    %5426 = vsyncpa [#allocation18], 1
    %5427 = vsyncpa [#allocation7], 1
    %s5428 = scalar_lea.sflag [#allocation7], 1
    %5429 = vsyncpa %s5428, 1
    %5430 = vsyncpa [#allocation21], 1
  %5431 = vsyncmov [#allocation4]
  %s5432 = vpop.sfrf %5431
  %p5433 = scmp.eq.s32.totalorder %s5432, 0
  %p5434 = pneg %p5433
  %5436 = shalt.err (%p5434)

</llo_original>
